<compile_context>
chip_gen: v7x
topology: tpu7x:2x2x1
jax: 0.10.0
libtpu: 0.0.40
codegen_flags: <defaults>
</compile_context>

<pallas_src>
import jax
import jax.numpy as jnp
from jax.experimental import pallas as pl
from jax.experimental.pallas import tpu as pltpu

# ---- demo dimensions (real module: vec_size=40535, topic_num=100) ----
BATCH = 8
VEC_SIZE = 1000          # scaled-down stand-in for 40535 (non-multiple of the
                         # pad unit on purpose, to exercise the padding path)
H1 = 768
H2 = 256
TOPIC_NUM = 100
T_PAD = 128              # topic_num padded to a full lane register
BN_EPS = 1e-5

# Streaming / padding configuration (see header for production values).
TILE_V = 256             # vec_size streaming tile (K for fc1, N for fc6)
PAD_MULT = 512           # vec_size pad unit, decoupled from TILE_V
NH1_SPLIT = 2            # fc1 output-column tiles: 2 on v7x (megacore), 1 on v5e/v6e
TILE_H1 = H1 // NH1_SPLIT
VMEM_LIMIT = 48 * 1024 * 1024   # fits v7x's 64 MiB; v6e may raise to ~96-112 MiB


def _round_up(n, m):
    return ((n + m - 1) // m) * m


VEC_PAD = _round_up(VEC_SIZE, PAD_MULT)
assert VEC_PAD % TILE_V == 0, "TILE_V must divide VEC_PAD (keep padding waste fixed)"
assert H1 % TILE_H1 == 0 and TILE_H1 % 128 == 0


def _pad_cols(a, to):
    pad = to - a.shape[1]
    return a if pad == 0 else jnp.pad(a, ((0, 0), (0, pad)))


def _pad_rows(a, to):
    pad = to - a.shape[0]
    return a if pad == 0 else jnp.pad(a, ((0, pad), (0, 0)))


def _bn_train(h, gamma, beta):
    """BatchNorm1d in training mode: batch stats, biased variance, eps=1e-5."""
    mu = jnp.mean(h, axis=0, keepdims=True)
    var = jnp.mean((h - mu) * (h - mu), axis=0, keepdims=True)
    return gamma * (h - mu) * jax.lax.rsqrt(var + BN_EPS) + beta


# ---------------------------------------------------------------------------
# Kernel A: fc1 weight stream.  grid = (H1 col tiles "parallel", K "arbitrary")
# ---------------------------------------------------------------------------
def fc1_stream_kernel(x_ref, w1_ref, h1pre_ref, acc_ref):
    k = pl.program_id(1)

    @pl.when(k == 0)
    def _init():
        acc_ref[...] = jnp.zeros_like(acc_ref)

    acc_ref[...] += jnp.dot(
        x_ref[...], w1_ref[...], preferred_element_type=jnp.float32
    )

    @pl.when(k == pl.num_programs(1) - 1)
    def _store():
        h1pre_ref[...] = acc_ref[...]


# ---------------------------------------------------------------------------
# Kernel A2: fused epilogue (BN1/relu, fc2/BN2/relu, mean|log_var, reparam,
#            fc4/relu, fc5/BN5/relu).  Single grid step, all VMEM resident.
# ---------------------------------------------------------------------------
def epilogue_kernel(
    h1pre_ref, b1_ref, g1_ref, be1_ref,
    w2_ref, b2_ref, g2_ref, be2_ref,
    wmv_ref, bmv_ref,
    w4_ref, b4_ref,
    w5_ref, b5_ref, g5_ref, be5_ref,
    eps_ref,
    h5_ref, mean_ref, logvar_ref, z_ref,
):
    bf16, f32 = jnp.bfloat16, jnp.float32

    h1 = h1pre_ref[...] + b1_ref[...]
    h1 = jnp.maximum(_bn_train(h1, g1_ref[...], be1_ref[...]), 0.0)

    h2 = (
        jnp.dot(h1.astype(bf16), w2_ref[...], preferred_element_type=f32)
        + b2_ref[...]
    )
    h2 = jnp.maximum(_bn_train(h2, g2_ref[...], be2_ref[...]), 0.0)

    # Fused [mean | log_var] matmul: lane-dense 2*T_PAD = 256 output cols.
    mv = (
        jnp.dot(h2.astype(bf16), wmv_ref[...], preferred_element_type=f32)
        + bmv_ref[...]
    )
    mu = mv[:, :T_PAD]
    lv = mv[:, T_PAD:]

    # reparameterize: z = mu + eps * exp(log_var / 2)
    z = mu + eps_ref[...] * jnp.exp(lv * 0.5)

    h4 = (
        jnp.dot(z.astype(bf16), w4_ref[...], preferred_element_type=f32)
        + b4_ref[...]
    )
    h4 = jnp.maximum(h4, 0.0)

    h5 = (
        jnp.dot(h4.astype(bf16), w5_ref[...], preferred_element_type=f32)
        + b5_ref[...]
    )
    h5 = jnp.maximum(_bn_train(h5, g5_ref[...], be5_ref[...]), 0.0)

    h5_ref[...] = h5.astype(h5_ref.dtype)
    mean_ref[...] = mu
    logvar_ref[...] = lv
    z_ref[...] = z


# ---------------------------------------------------------------------------
# Kernel B: fc6 (N-streamed, "parallel") + sigmoid, bf16 writeback
# ---------------------------------------------------------------------------
def decoder_fc6_kernel(h5_ref, w6_ref, b6_ref, out_ref):
    logits = (
        jnp.dot(h5_ref[...], w6_ref[...], preferred_element_type=jnp.float32)
        + b6_ref[...]
    )
    out_ref[...] = jax.nn.sigmoid(logits).astype(out_ref.dtype)


# ---------------------------------------------------------------------------
# Wrapper
# ---------------------------------------------------------------------------
def vae_forward(x, kp, eps_noise):
    """x: (B, VEC_SIZE) f32; kp: prepared (padded/bf16/fused) params;
    eps_noise: (B, TOPIC_NUM) f32 standard-normal draws.
    Returns (x_hat, mean, log_var, z) matching the PyTorch forward
    (x_hat is bf16 to halve the bandwidth-critical writeback)."""
    B = x.shape[0]
    bf16, f32 = jnp.bfloat16, jnp.float32

    xp = _pad_cols(x, VEC_PAD).astype(bf16)
    epsp = _pad_cols(eps_noise, T_PAD)

    kt = VEC_PAD // TILE_V   # fc1 K tiles
    nh = H1 // TILE_H1       # fc1 output-column tiles (megacore split on v7x)
    nt = VEC_PAD // TILE_V   # fc6 N tiles

    # ----- Kernel A: stream w1, accumulate pre-BN h1 -----
    cost_a = pl.CostEstimate(
        flops=2 * B * VEC_PAD * H1,
        transcendentals=0,
        bytes_accessed=2 * (B * VEC_PAD * nh + VEC_PAD * H1) + 4 * B * H1,
    )
    h1pre = pl.pallas_call(
        fc1_stream_kernel,
        out_shape=jax.ShapeDtypeStruct((B, H1), f32),
        grid_spec=pltpu.PrefetchScalarGridSpec(
            num_scalar_prefetch=0,
            grid=(nh, kt),
            in_specs=[
                pl.BlockSpec((B, TILE_V), lambda j, k: (0, k)),       # x (streamed)
                pl.BlockSpec((TILE_V, TILE_H1), lambda j, k: (k, j)), # w1 (streamed)
            ],
            out_specs=pl.BlockSpec((B, TILE_H1), lambda j, k: (0, j)),
            scratch_shapes=[pltpu.VMEM((B, TILE_H1), f32)],
        ),
        compiler_params=pltpu.CompilerParams(
            dimension_semantics=("parallel", "arbitrary"),
            vmem_limit_bytes=VMEM_LIMIT,
        ),
        cost_estimate=cost_a,
    )(xp, kp["w1"])

    # ----- Kernel A2: tiny fused epilogue (single step) -----
    def res(shape):
        # VMEM-resident operand: full-array block, constant block index.
        # NOTE: these could be single-buffered (pipeline_mode=pl.Buffered(1))
        # to reclaim ~1.3 MiB of VMEM headroom; left double-buffered here for
        # maximum toolchain compatibility (total residents are tiny anyway).
        return pl.BlockSpec(shape, lambda i: (0, 0))

    h5, mean_p, logvar_p, z_p = pl.pallas_call(
        epilogue_kernel,
        out_shape=(
            jax.ShapeDtypeStruct((B, H1), bf16),     # h5 (fed to kernel B)
            jax.ShapeDtypeStruct((B, T_PAD), f32),   # mean (padded)
            jax.ShapeDtypeStruct((B, T_PAD), f32),   # log_var (padded)
            jax.ShapeDtypeStruct((B, T_PAD), f32),   # z (padded)
        ),
        grid_spec=pltpu.PrefetchScalarGridSpec(
            num_scalar_prefetch=0,
            grid=(1,),
            in_specs=[
                res((B, H1)),                                    # h1pre
                res((1, H1)), res((1, H1)), res((1, H1)),        # b1, g1, be1
                res((H1, H2)), res((1, H2)), res((1, H2)), res((1, H2)),
                res((H2, 2 * T_PAD)), res((1, 2 * T_PAD)),       # wmv, bmv
                res((T_PAD, H2)), res((1, H2)),                  # w4, b4
                res((H2, H1)), res((1, H1)), res((1, H1)), res((1, H1)),
                res((B, T_PAD)),                                 # eps
            ],
            out_specs=[
                res((B, H1)), res((B, T_PAD)), res((B, T_PAD)), res((B, T_PAD)),
            ],
        ),
        compiler_params=pltpu.CompilerParams(
            dimension_semantics=("arbitrary",),
            vmem_limit_bytes=VMEM_LIMIT,
        ),
    )(
        h1pre,
        kp["b1"], kp["g1"], kp["be1"],
        kp["w2"], kp["b2"], kp["g2"], kp["be2"],
        kp["wmv"], kp["bmv"],
        kp["w4"], kp["b4"],
        kp["w5"], kp["b5"], kp["g5"], kp["be5"],
        epsp,
    )

    # ----- Kernel B: stream w6, sigmoid, bf16 writeback -----
    cost_b = pl.CostEstimate(
        flops=2 * B * H1 * VEC_PAD,
        transcendentals=B * VEC_PAD,
        bytes_accessed=2 * (B * H1 + H1 * VEC_PAD + B * VEC_PAD) + 4 * VEC_PAD,
    )
    xhat_p = pl.pallas_call(
        decoder_fc6_kernel,
        out_shape=jax.ShapeDtypeStruct((B, VEC_PAD), bf16),
        grid_spec=pltpu.PrefetchScalarGridSpec(
            num_scalar_prefetch=0,
            grid=(nt,),
            in_specs=[
                pl.BlockSpec((B, H1), lambda n: (0, 0)),        # h5 (resident)
                pl.BlockSpec((H1, TILE_V), lambda n: (0, n)),   # w6 (streamed)
                pl.BlockSpec((1, TILE_V), lambda n: (0, n)),    # b6 (streamed)
            ],
            out_specs=pl.BlockSpec((B, TILE_V), lambda n: (0, n)),
        ),
        compiler_params=pltpu.CompilerParams(
            dimension_semantics=("parallel",),         # megacore split on v7x
            vmem_limit_bytes=VMEM_LIMIT,
        ),
        cost_estimate=cost_b,
    )(h5, kp["w6"], kp["b6"])

    return (
        xhat_p[:, :VEC_SIZE],
        mean_p[:, :TOPIC_NUM],
        logvar_p[:, :TOPIC_NUM],
        z_p[:, :TOPIC_NUM],
    )


# ---------------------------------------------------------------------------
# Parameter init (PyTorch-Linear-like) and kernel-ready preparation
# ---------------------------------------------------------------------------
def _init_linear(key, fan_in, fan_out):
    kw, kb = jax.random.split(key)
    bound = 1.0 / float(jnp.sqrt(jnp.float32(fan_in)))
    w = jax.random.uniform(kw, (fan_in, fan_out), jnp.float32, -bound, bound)
    b = jax.random.uniform(kb, (1, fan_out), jnp.float32, -bound, bound)
    return w, b


def init_params(key):
    keys = jax.random.split(key, 7)
    p = {}
    p["w1"], p["b1"] = _init_linear(keys[0], VEC_SIZE, H1)
    p["g1"] = jnp.ones((1, H1), jnp.float32)
    p["be1"] = jnp.zeros((1, H1), jnp.float32)

    p["w2"], p["b2"] = _init_linear(keys[1], H1, H2)
    p["g2"] = jnp.ones((1, H2), jnp.float32)
    p["be2"] = jnp.zeros((1, H2), jnp.float32)

    p["wm"], p["bm"] = _init_linear(keys[2], H2, TOPIC_NUM)
    p["wv"], p["bv"] = _init_linear(keys[3], H2, TOPIC_NUM)

    p["w4"], p["b4"] = _init_linear(keys[4], TOPIC_NUM, H2)

    p["w5"], p["b5"] = _init_linear(keys[5], H2, H1)
    p["g5"] = jnp.ones((1, H1), jnp.float32)
    p["be5"] = jnp.zeros((1, H1), jnp.float32)

    p["w6"], p["b6"] = _init_linear(keys[6], H1, VEC_SIZE)
    return p


def prepare_params(p):
    """Pad to tile-aligned shapes, fuse mean|var heads, cast weights to bf16."""
    bf16 = jnp.bfloat16
    kp = {}
    kp["w1"] = _pad_rows(p["w1"], VEC_PAD).astype(bf16)
    kp["b1"], kp["g1"], kp["be1"] = p["b1"], p["g1"], p["be1"]

    kp["w2"] = p["w2"].astype(bf16)
    kp["b2"], kp["g2"], kp["be2"] = p["b2"], p["g2"], p["be2"]

    kp["wmv"] = jnp.concatenate(
        [_pad_cols(p["wm"], T_PAD), _pad_cols(p["wv"], T_PAD)], axis=1
    ).astype(bf16)
    kp["bmv"] = jnp.concatenate(
        [_pad_cols(p["bm"], T_PAD), _pad_cols(p["bv"], T_PAD)], axis=1
    )

    kp["w4"] = _pad_rows(p["w4"], T_PAD).astype(bf16)
    kp["b4"] = p["b4"]

    kp["w5"] = p["w5"].astype(bf16)
    kp["b5"], kp["g5"], kp["be5"] = p["b5"], p["g5"], p["be5"]

    kp["w6"] = _pad_cols(p["w6"], VEC_PAD).astype(bf16)
    kp["b6"] = _pad_cols(p["b6"], VEC_PAD)
    return kp


# ---------------------------------------------------------------------------
# Pure-JAX reference (same padded bf16 weights / f32 accumulation)
# ---------------------------------------------------------------------------
def vae_reference(x, kp, eps_noise):
    bf16, f32 = jnp.bfloat16, jnp.float32
    xp = _pad_cols(x, VEC_PAD).astype(bf16)
    epsp = _pad_cols(eps_noise, T_PAD)

    h1 = jnp.dot(xp, kp["w1"], preferred_element_type=f32) + kp["b1"]
    h1 = jnp.maximum(_bn_train(h1, kp["g1"], kp["be1"]), 0.0)

    h2 = jnp.dot(h1.astype(bf16), kp["w2"], preferred_element_type=f32) + kp["b2"]
    h2 = jnp.maximum(_bn_train(h2, kp["g2"], kp["be2"]), 0.0)

    mv = jnp.dot(h2.astype(bf16), kp["wmv"], preferred_element_type=f32) + kp["bmv"]
    mu, lv = mv[:, :T_PAD], mv[:, T_PAD:]
    z = mu + epsp * jnp.exp(lv * 0.5)

    h4 = jnp.maximum(
        jnp.dot(z.astype(bf16), kp["w4"], preferred_element_type=f32) + kp["b4"], 0.0
    )
    h5 = jnp.dot(h4.astype(bf16), kp["w5"], preferred_element_type=f32) + kp["b5"]
    h5 = jnp.maximum(_bn_train(h5, kp["g5"], kp["be5"]), 0.0)

    logits = (
        jnp.dot(h5.astype(bf16), kp["w6"], preferred_element_type=f32) + kp["b6"]
    )
    out = jax.nn.sigmoid(logits)
    return (
        out[:, :VEC_SIZE],
        mu[:, :TOPIC_NUM],
        lv[:, :TOPIC_NUM],
        z[:, :TOPIC_NUM],
    )


if __name__ == "__main__":
    key = jax.random.PRNGKey(0)
    k_params, k_x, k_eps = jax.random.split(key, 3)

    raw_params = init_params(k_params)
    kparams = prepare_params(raw_params)

    # bag-of-words-like non-negative input; eps supplied (torch.randn_like analog)
    # NOTE: for production throughput, batch B=64-256 per call so the 124 MiB
    # weight stream is amortized over many samples (kernels are M-agnostic).
    x = jnp.abs(jax.random.normal(k_x, (BATCH, VEC_SIZE), jnp.float32))
    eps_noise = jax.random.normal(k_eps, (BATCH, TOPIC_NUM), jnp.float32)

    x_hat, mean, log_var, z = jax.block_until_ready(
        jax.jit(vae_forward)(x, kparams, eps_noise)
    )
    r_hat, r_mean, r_lv, r_z = jax.block_until_ready(
        jax.jit(vae_reference)(x, kparams, eps_noise)
    )

    assert x_hat.shape == (BATCH, VEC_SIZE)
    assert mean.shape == (BATCH, TOPIC_NUM)
    assert log_var.shape == (BATCH, TOPIC_NUM)
    assert z.shape == (BATCH, TOPIC_NUM)
    assert bool(jnp.all(jnp.isfinite(x_hat.astype(jnp.float32))))
    xh32 = x_hat.astype(jnp.float32)
    assert bool(jnp.all((xh32 >= 0.0) & (xh32 <= 1.0)))  # sigmoid range

    # x_hat is bf16 (deliberate: halves writeback bytes) -> slightly wider tol.
    assert bool(jnp.allclose(xh32, r_hat, rtol=1e-2, atol=1e-2)), "x_hat"
    for got, want, name in (
        (mean, r_mean, "mean"),
        (log_var, r_lv, "log_var"),
        (z, r_z, "z"),
    ):
        assert bool(jnp.allclose(got, want, rtol=5e-3, atol=5e-3)), name

    print("KERNEL_OK")
</pallas_src>

<mosaic_0001>
module attributes {stable_mosaic.version = 11 : i64} {
  func.func @fc1_stream_kernel(%arg0: i32, %arg1: i32, %arg2: memref<8x256xbf16, #tpu.memory_space<vmem>>, %arg3: memref<256x384xbf16, #tpu.memory_space<vmem>>, %arg4: memref<8x384xf32, #tpu.memory_space<vmem>>, %arg5: memref<8x384xf32, #tpu.memory_space<vmem>>) attributes {dimension_semantics = [#tpu.dimension_semantics<parallel>, #tpu.dimension_semantics<arbitrary>], iteration_bounds = array<i64: 2, 4>, scalar_prefetch = 0 : i64, scratch_operands = 1 : i64, tpu.core_type = #tpu.core_type<tc>, window_params = [{transform_indices = @transform_0, window_bounds = array<i64: 8, 256>}, {transform_indices = @transform_1, window_bounds = array<i64: 256, 384>}, {transform_indices = @transform_2, window_bounds = array<i64: 8, 384>}]} {
    %c0_i32 = arith.constant 0 : i32
    %0 = arith.cmpi eq, %arg1, %c0_i32 : i32
    %1 = arith.extui %0 : i1 to i32
    %c0_i32_0 = arith.constant 0 : i32
    %2 = arith.cmpi ne, %1, %c0_i32_0 : i32
    scf.if %2 {
      %cst_9 = arith.constant 0.000000e+00 : f32
      %12 = vector.broadcast %cst_9 : f32 to vector<8x384xf32>
      %c0_10 = arith.constant 0 : index
      %c0_11 = arith.constant 0 : index
      %13 = vector.load %arg5[%c0_10, %c0_11] : memref<8x384xf32, #tpu.memory_space<vmem>>, vector<8x384xf32>
      tpu.vector_store %arg5[%c0_10, %c0_11], %12 {strides = array<i32>} : memref<8x384xf32, #tpu.memory_space<vmem>>, vector<8x384xf32>,
    } else {
    }
    %c0 = arith.constant 0 : index
    %c0_1 = arith.constant 0 : index
    %3 = vector.load %arg5[%c0, %c0_1] : memref<8x384xf32, #tpu.memory_space<vmem>>, vector<8x384xf32>
    %c0_2 = arith.constant 0 : index
    %c0_3 = arith.constant 0 : index
    %4 = vector.load %arg2[%c0_2, %c0_3] : memref<8x256xbf16, #tpu.memory_space<vmem>>, vector<8x256xbf16>
    %c0_4 = arith.constant 0 : index
    %c0_5 = arith.constant 0 : index
    %5 = vector.load %arg3[%c0_4, %c0_5] : memref<256x384xbf16, #tpu.memory_space<vmem>>, vector<256x384xbf16>
    %cst = arith.constant dense<0.000000e+00> : vector<8x384xf32>
    %6 = tpu.matmul %4, %5, %cst {dimension_numbers = #tpu.dot_dimension_numbers<[1], [0], [0], [1], [0, 0, 1, 1], [], []>} : vector<8x256xbf16>, vector<256x384xbf16>, vector<8x384xf32> -> vector<8x384xf32>
    %7 = arith.addf %3, %6 : vector<8x384xf32>
    %c0_6 = arith.constant 0 : index
    %c0_7 = arith.constant 0 : index
    %8 = vector.load %arg5[%c0_6, %c0_7] : memref<8x384xf32, #tpu.memory_space<vmem>>, vector<8x384xf32>
    tpu.vector_store %arg5[%c0_6, %c0_7], %7 {strides = array<i32>} : memref<8x384xf32, #tpu.memory_space<vmem>>, vector<8x384xf32>,
    %c3_i32 = arith.constant 3 : i32
    %9 = arith.cmpi eq, %arg1, %c3_i32 : i32
    %10 = arith.extui %9 : i1 to i32
    %c0_i32_8 = arith.constant 0 : i32
    %11 = arith.cmpi ne, %10, %c0_i32_8 : i32
    scf.if %11 {
      %c0_9 = arith.constant 0 : index
      %c0_10 = arith.constant 0 : index
      %12 = vector.load %arg5[%c0_9, %c0_10] : memref<8x384xf32, #tpu.memory_space<vmem>>, vector<8x384xf32>
      %c0_11 = arith.constant 0 : index
      %c0_12 = arith.constant 0 : index
      %13 = vector.load %arg4[%c0_11, %c0_12] : memref<8x384xf32, #tpu.memory_space<vmem>>, vector<8x384xf32>
      tpu.vector_store %arg4[%c0_11, %c0_12], %12 {strides = array<i32>} : memref<8x384xf32, #tpu.memory_space<vmem>>, vector<8x384xf32>,
    } else {
    }
    return
  }
  func.func @transform_0(%arg0: i32, %arg1: i32) -> (i32, i32) {
    %c0_i32 = arith.constant 0 : i32
    %c0_i32_0 = arith.constant 0 : i32
    return %c0_i32, %arg1 : i32, i32
  }
  func.func @transform_1(%arg0: i32, %arg1: i32) -> (i32, i32) {
    %c0_i32 = arith.constant 0 : i32
    return %arg1, %arg0 : i32, i32
  }
  func.func @transform_2(%arg0: i32, %arg1: i32) -> (i32, i32) {
    %c0_i32 = arith.constant 0 : i32
    %c0_i32_0 = arith.constant 0 : i32
    return %c0_i32, %arg0 : i32, i32
  }
}

module attributes {stable_mosaic.version = 11 : i64} {
  func.func @decoder_fc6_kernel(%arg0: i32, %arg1: memref<8x768xbf16, #tpu.memory_space<vmem>>, %arg2: memref<768x256xbf16, #tpu.memory_space<vmem>>, %arg3: memref<1x256xf32, #tpu.memory_space<vmem>>, %arg4: memref<8x256xbf16, #tpu.memory_space<vmem>>) attributes {dimension_semantics = [#tpu.dimension_semantics<parallel>], iteration_bounds = array<i64: 4>, scalar_prefetch = 0 : i64, scratch_operands = 0 : i64, tpu.core_type = #tpu.core_type<tc>, window_params = [{pipeline_mode = #tpu.pipeline_mode<synchronous>, transform_indices = @transform_0, window_bounds = array<i64: 8, 768>}, {transform_indices = @transform_1, window_bounds = array<i64: 768, 256>}, {transform_indices = @transform_2, window_bounds = array<i64: 1, 256>}, {transform_indices = @transform_3, window_bounds = array<i64: 8, 256>}]} {
    %c0 = arith.constant 0 : index
    %c0_0 = arith.constant 0 : index
    %0 = vector.load %arg1[%c0, %c0_0] : memref<8x768xbf16, #tpu.memory_space<vmem>>, vector<8x768xbf16>
    %c0_1 = arith.constant 0 : index
    %c0_2 = arith.constant 0 : index
    %1 = vector.load %arg2[%c0_1, %c0_2] : memref<768x256xbf16, #tpu.memory_space<vmem>>, vector<768x256xbf16>
    %cst = arith.constant dense<0.000000e+00> : vector<8x256xf32>
    %2 = tpu.matmul %0, %1, %cst {dimension_numbers = #tpu.dot_dimension_numbers<[1], [0], [0], [1], [0, 0, 1, 1], [], []>} : vector<8x768xbf16>, vector<768x256xbf16>, vector<8x256xf32> -> vector<8x256xf32>
    %c0_3 = arith.constant 0 : index
    %c0_4 = arith.constant 0 : index
    %3 = vector.load %arg3[%c0_3, %c0_4] : memref<1x256xf32, #tpu.memory_space<vmem>>, vector<1x256xf32>
    %4 = vector.broadcast %3 : vector<1x256xf32> to vector<8x256xf32>
    %5 = arith.addf %2, %4 : vector<8x256xf32>
    %6 = arith.negf %5 : vector<8x256xf32>
    %7 = math.exp %6 : vector<8x256xf32>
    %cst_5 = arith.constant 1.000000e+00 : f32
    %8 = vector.broadcast %cst_5 : f32 to vector<8x256xf32>
    %9 = arith.addf %8, %7 : vector<8x256xf32>
    %10 = arith.divf %8, %9 : vector<8x256xf32>
    %11 = arith.truncf %10 : vector<8x256xf32> to vector<8x256xbf16>
    %c0_6 = arith.constant 0 : index
    %c0_7 = arith.constant 0 : index
    %12 = vector.load %arg4[%c0_6, %c0_7] : memref<8x256xbf16, #tpu.memory_space<vmem>>, vector<8x256xbf16>
    tpu.vector_store %arg4[%c0_6, %c0_7], %11 {strides = array<i32>} : memref<8x256xbf16, #tpu.memory_space<vmem>>, vector<8x256xbf16>,
    return
  }
  func.func @transform_0(%arg0: i32) -> (i32, i32) {
    %c0_i32 = arith.constant 0 : i32
    %c0_i32_0 = arith.constant 0 : i32
    %c0_i32_1 = arith.constant 0 : i32
    return %c0_i32, %c0_i32_0 : i32, i32
  }
  func.func @transform_1(%arg0: i32) -> (i32, i32) {
    %c0_i32 = arith.constant 0 : i32
    %c0_i32_0 = arith.constant 0 : i32
    return %c0_i32, %arg0 : i32, i32
  }
  func.func @transform_2(%arg0: i32) -> (i32, i32) {
    %c0_i32 = arith.constant 0 : i32
    %c0_i32_0 = arith.constant 0 : i32
    return %c0_i32, %arg0 : i32, i32
  }
  func.func @transform_3(%arg0: i32) -> (i32, i32) {
    %c0_i32 = arith.constant 0 : i32
    %c0_i32_0 = arith.constant 0 : i32
    return %c0_i32, %arg0 : i32, i32
  }
}

module attributes {stable_mosaic.version = 11 : i64} {
  func.func @epilogue_kernel(%arg0: i32, %arg1: memref<8x768xf32, #tpu.memory_space<vmem>>, %arg2: memref<1x768xf32, #tpu.memory_space<vmem>>, %arg3: memref<1x768xf32, #tpu.memory_space<vmem>>, %arg4: memref<1x768xf32, #tpu.memory_space<vmem>>, %arg5: memref<768x256xbf16, #tpu.memory_space<vmem>>, %arg6: memref<1x256xf32, #tpu.memory_space<vmem>>, %arg7: memref<1x256xf32, #tpu.memory_space<vmem>>, %arg8: memref<1x256xf32, #tpu.memory_space<vmem>>, %arg9: memref<256x256xbf16, #tpu.memory_space<vmem>>, %arg10: memref<1x256xf32, #tpu.memory_space<vmem>>, %arg11: memref<128x256xbf16, #tpu.memory_space<vmem>>, %arg12: memref<1x256xf32, #tpu.memory_space<vmem>>, %arg13: memref<256x768xbf16, #tpu.memory_space<vmem>>, %arg14: memref<1x768xf32, #tpu.memory_space<vmem>>, %arg15: memref<1x768xf32, #tpu.memory_space<vmem>>, %arg16: memref<1x768xf32, #tpu.memory_space<vmem>>, %arg17: memref<8x128xf32, #tpu.memory_space<vmem>>, %arg18: memref<8x768xbf16, #tpu.memory_space<vmem>>, %arg19: memref<8x128xf32, #tpu.memory_space<vmem>>, %arg20: memref<8x128xf32, #tpu.memory_space<vmem>>, %arg21: memref<8x128xf32, #tpu.memory_space<vmem>>) attributes {dimension_semantics = [#tpu.dimension_semantics<arbitrary>], iteration_bounds = array<i64: 1>, scalar_prefetch = 0 : i64, scratch_operands = 0 : i64, tpu.core_type = #tpu.core_type<tc>, window_params = [{pipeline_mode = #tpu.pipeline_mode<synchronous>, transform_indices = @transform_0, window_bounds = array<i64: 8, 768>}, {pipeline_mode = #tpu.pipeline_mode<synchronous>, transform_indices = @transform_1, window_bounds = array<i64: 1, 768>}, {pipeline_mode = #tpu.pipeline_mode<synchronous>, transform_indices = @transform_2, window_bounds = array<i64: 1, 768>}, {pipeline_mode = #tpu.pipeline_mode<synchronous>, transform_indices = @transform_3, window_bounds = array<i64: 1, 768>}, {pipeline_mode = #tpu.pipeline_mode<synchronous>, transform_indices = @transform_4, window_bounds = array<i64: 768, 256>}, {pipeline_mode = #tpu.pipeline_mode<synchronous>, transform_indices = @transform_5, window_bounds = array<i64: 1, 256>}, {pipeline_mode = #tpu.pipeline_mode<synchronous>, transform_indices = @transform_6, window_bounds = array<i64: 1, 256>}, {pipeline_mode = #tpu.pipeline_mode<synchronous>, transform_indices = @transform_7, window_bounds = array<i64: 1, 256>}, {pipeline_mode = #tpu.pipeline_mode<synchronous>, transform_indices = @transform_8, window_bounds = array<i64: 256, 256>}, {pipeline_mode = #tpu.pipeline_mode<synchronous>, transform_indices = @transform_9, window_bounds = array<i64: 1, 256>}, {pipeline_mode = #tpu.pipeline_mode<synchronous>, transform_indices = @transform_10, window_bounds = array<i64: 128, 256>}, {pipeline_mode = #tpu.pipeline_mode<synchronous>, transform_indices = @transform_11, window_bounds = array<i64: 1, 256>}, {pipeline_mode = #tpu.pipeline_mode<synchronous>, transform_indices = @transform_12, window_bounds = array<i64: 256, 768>}, {pipeline_mode = #tpu.pipeline_mode<synchronous>, transform_indices = @transform_13, window_bounds = array<i64: 1, 768>}, {pipeline_mode = #tpu.pipeline_mode<synchronous>, transform_indices = @transform_14, window_bounds = array<i64: 1, 768>}, {pipeline_mode = #tpu.pipeline_mode<synchronous>, transform_indices = @transform_15, window_bounds = array<i64: 1, 768>}, {pipeline_mode = #tpu.pipeline_mode<synchronous>, transform_indices = @transform_16, window_bounds = array<i64: 8, 128>}, {pipeline_mode = #tpu.pipeline_mode<synchronous>, transform_indices = @transform_17, window_bounds = array<i64: 8, 768>}, {pipeline_mode = #tpu.pipeline_mode<synchronous>, transform_indices = @transform_18, window_bounds = array<i64: 8, 128>}, {pipeline_mode = #tpu.pipeline_mode<synchronous>, transform_indices = @transform_19, window_bounds = array<i64: 8, 128>}, {pipeline_mode = #tpu.pipeline_mode<synchronous>, transform_indices = @transform_20, window_bounds = array<i64: 8, 128>}]} {
    %c0 = arith.constant 0 : index
    %c0_0 = arith.constant 0 : index
    %0 = vector.load %arg1[%c0, %c0_0] : memref<8x768xf32, #tpu.memory_space<vmem>>, vector<8x768xf32>
    %c0_1 = arith.constant 0 : index
    %c0_2 = arith.constant 0 : index
    %1 = vector.load %arg2[%c0_1, %c0_2] : memref<1x768xf32, #tpu.memory_space<vmem>>, vector<1x768xf32>
    %2 = vector.broadcast %1 : vector<1x768xf32> to vector<8x768xf32>
    %3 = arith.addf %0, %2 : vector<8x768xf32>
    %c0_3 = arith.constant 0 : index
    %c0_4 = arith.constant 0 : index
    %4 = vector.load %arg3[%c0_3, %c0_4] : memref<1x768xf32, #tpu.memory_space<vmem>>, vector<1x768xf32>
    %c0_5 = arith.constant 0 : index
    %c0_6 = arith.constant 0 : index
    %5 = vector.load %arg4[%c0_5, %c0_6] : memref<1x768xf32, #tpu.memory_space<vmem>>, vector<1x768xf32>
    %cst = arith.constant dense<0.000000e+00> : vector<768xf32>
    %6 = vector.multi_reduction <add>, %3, %cst [0] : vector<8x768xf32> to vector<768xf32>
    %7 = vector.shape_cast %6 : vector<768xf32> to vector<1x768xf32>
    %cst_7 = arith.constant 8.000000e+00 : f32
    %8 = vector.broadcast %cst_7 : f32 to vector<1x768xf32>
    %9 = arith.divf %7, %8 : vector<1x768xf32>
    %10 = vector.broadcast %9 : vector<1x768xf32> to vector<8x768xf32>
    %11 = arith.subf %3, %10 : vector<8x768xf32>
    %12 = vector.broadcast %9 : vector<1x768xf32> to vector<8x768xf32>
    %13 = arith.subf %3, %12 : vector<8x768xf32>
    %14 = arith.mulf %11, %13 : vector<8x768xf32>
    %cst_8 = arith.constant dense<0.000000e+00> : vector<768xf32>
    %15 = vector.multi_reduction <add>, %14, %cst_8 [0] : vector<8x768xf32> to vector<768xf32>
    %16 = vector.shape_cast %15 : vector<768xf32> to vector<1x768xf32>
    %cst_9 = arith.constant 8.000000e+00 : f32
    %17 = vector.broadcast %cst_9 : f32 to vector<1x768xf32>
    %18 = arith.divf %16, %17 : vector<1x768xf32>
    %19 = vector.broadcast %9 : vector<1x768xf32> to vector<8x768xf32>
    %20 = arith.subf %3, %19 : vector<8x768xf32>
    %21 = vector.broadcast %4 : vector<1x768xf32> to vector<8x768xf32>
    %22 = arith.mulf %21, %20 : vector<8x768xf32>
    %cst_10 = arith.constant 9.99999974E-6 : f32
    %23 = vector.broadcast %cst_10 : f32 to vector<1x768xf32>
    %24 = arith.addf %18, %23 : vector<1x768xf32>
    %25 = math.rsqrt %24 : vector<1x768xf32>
    %26 = vector.broadcast %25 : vector<1x768xf32> to vector<8x768xf32>
    %27 = arith.mulf %22, %26 : vector<8x768xf32>
    %28 = vector.broadcast %5 : vector<1x768xf32> to vector<8x768xf32>
    %29 = arith.addf %27, %28 : vector<8x768xf32>
    %cst_11 = arith.constant 0.000000e+00 : f32
    %30 = vector.broadcast %cst_11 : f32 to vector<8x768xf32>
    %31 = arith.maximumf %29, %30 : vector<8x768xf32>
    %32 = arith.truncf %31 : vector<8x768xf32> to vector<8x768xbf16>
    %c0_12 = arith.constant 0 : index
    %c0_13 = arith.constant 0 : index
    %33 = vector.load %arg5[%c0_12, %c0_13] : memref<768x256xbf16, #tpu.memory_space<vmem>>, vector<768x256xbf16>
    %cst_14 = arith.constant dense<0.000000e+00> : vector<8x256xf32>
    %34 = tpu.matmul %32, %33, %cst_14 {dimension_numbers = #tpu.dot_dimension_numbers<[1], [0], [0], [1], [0, 0, 1, 1], [], []>} : vector<8x768xbf16>, vector<768x256xbf16>, vector<8x256xf32> -> vector<8x256xf32>
    %c0_15 = arith.constant 0 : index
    %c0_16 = arith.constant 0 : index
    %35 = vector.load %arg6[%c0_15, %c0_16] : memref<1x256xf32, #tpu.memory_space<vmem>>, vector<1x256xf32>
    %36 = vector.broadcast %35 : vector<1x256xf32> to vector<8x256xf32>
    %37 = arith.addf %34, %36 : vector<8x256xf32>
    %c0_17 = arith.constant 0 : index
    %c0_18 = arith.constant 0 : index
    %38 = vector.load %arg7[%c0_17, %c0_18] : memref<1x256xf32, #tpu.memory_space<vmem>>, vector<1x256xf32>
    %c0_19 = arith.constant 0 : index
    %c0_20 = arith.constant 0 : index
    %39 = vector.load %arg8[%c0_19, %c0_20] : memref<1x256xf32, #tpu.memory_space<vmem>>, vector<1x256xf32>
    %cst_21 = arith.constant dense<0.000000e+00> : vector<256xf32>
    %40 = vector.multi_reduction <add>, %37, %cst_21 [0] : vector<8x256xf32> to vector<256xf32>
    %41 = vector.shape_cast %40 : vector<256xf32> to vector<1x256xf32>
    %cst_22 = arith.constant 8.000000e+00 : f32
    %42 = vector.broadcast %cst_22 : f32 to vector<1x256xf32>
    %43 = arith.divf %41, %42 : vector<1x256xf32>
    %44 = vector.broadcast %43 : vector<1x256xf32> to vector<8x256xf32>
    %45 = arith.subf %37, %44 : vector<8x256xf32>
    %46 = vector.broadcast %43 : vector<1x256xf32> to vector<8x256xf32>
    %47 = arith.subf %37, %46 : vector<8x256xf32>
    %48 = arith.mulf %45, %47 : vector<8x256xf32>
    %cst_23 = arith.constant dense<0.000000e+00> : vector<256xf32>
    %49 = vector.multi_reduction <add>, %48, %cst_23 [0] : vector<8x256xf32> to vector<256xf32>
    %50 = vector.shape_cast %49 : vector<256xf32> to vector<1x256xf32>
    %cst_24 = arith.constant 8.000000e+00 : f32
    %51 = vector.broadcast %cst_24 : f32 to vector<1x256xf32>
    %52 = arith.divf %50, %51 : vector<1x256xf32>
    %53 = vector.broadcast %43 : vector<1x256xf32> to vector<8x256xf32>
    %54 = arith.subf %37, %53 : vector<8x256xf32>
    %55 = vector.broadcast %38 : vector<1x256xf32> to vector<8x256xf32>
    %56 = arith.mulf %55, %54 : vector<8x256xf32>
    %cst_25 = arith.constant 9.99999974E-6 : f32
    %57 = vector.broadcast %cst_25 : f32 to vector<1x256xf32>
    %58 = arith.addf %52, %57 : vector<1x256xf32>
    %59 = math.rsqrt %58 : vector<1x256xf32>
    %60 = vector.broadcast %59 : vector<1x256xf32> to vector<8x256xf32>
    %61 = arith.mulf %56, %60 : vector<8x256xf32>
    %62 = vector.broadcast %39 : vector<1x256xf32> to vector<8x256xf32>
    %63 = arith.addf %61, %62 : vector<8x256xf32>
    %cst_26 = arith.constant 0.000000e+00 : f32
    %64 = vector.broadcast %cst_26 : f32 to vector<8x256xf32>
    %65 = arith.maximumf %63, %64 : vector<8x256xf32>
    %66 = arith.truncf %65 : vector<8x256xf32> to vector<8x256xbf16>
    %c0_27 = arith.constant 0 : index
    %c0_28 = arith.constant 0 : index
    %67 = vector.load %arg9[%c0_27, %c0_28] : memref<256x256xbf16, #tpu.memory_space<vmem>>, vector<256x256xbf16>
    %cst_29 = arith.constant dense<0.000000e+00> : vector<8x256xf32>
    %68 = tpu.matmul %66, %67, %cst_29 {dimension_numbers = #tpu.dot_dimension_numbers<[1], [0], [0], [1], [0, 0, 1, 1], [], []>} : vector<8x256xbf16>, vector<256x256xbf16>, vector<8x256xf32> -> vector<8x256xf32>
    %c0_30 = arith.constant 0 : index
    %c0_31 = arith.constant 0 : index
    %69 = vector.load %arg10[%c0_30, %c0_31] : memref<1x256xf32, #tpu.memory_space<vmem>>, vector<1x256xf32>
    %70 = vector.broadcast %69 : vector<1x256xf32> to vector<8x256xf32>
    %71 = arith.addf %68, %70 : vector<8x256xf32>
    %72 = vector.extract_strided_slice %71 {offsets = [0, 0], sizes = [8, 128], strides = [1, 1]} : vector<8x256xf32> to vector<8x128xf32>
    %73 = vector.extract_strided_slice %71 {offsets = [0, 128], sizes = [8, 128], strides = [1, 1]} : vector<8x256xf32> to vector<8x128xf32>
    %c0_32 = arith.constant 0 : index
    %c0_33 = arith.constant 0 : index
    %74 = vector.load %arg17[%c0_32, %c0_33] : memref<8x128xf32, #tpu.memory_space<vmem>>, vector<8x128xf32>
    %cst_34 = arith.constant 5.000000e-01 : f32
    %75 = vector.broadcast %cst_34 : f32 to vector<8x128xf32>
    %76 = arith.mulf %73, %75 : vector<8x128xf32>
    %77 = math.exp %76 : vector<8x128xf32>
    %78 = arith.mulf %74, %77 : vector<8x128xf32>
    %79 = arith.addf %72, %78 : vector<8x128xf32>
    %80 = arith.truncf %79 : vector<8x128xf32> to vector<8x128xbf16>
    %c0_35 = arith.constant 0 : index
    %c0_36 = arith.constant 0 : index
    %81 = vector.load %arg11[%c0_35, %c0_36] : memref<128x256xbf16, #tpu.memory_space<vmem>>, vector<128x256xbf16>
    %cst_37 = arith.constant dense<0.000000e+00> : vector<8x256xf32>
    %82 = tpu.matmul %80, %81, %cst_37 {dimension_numbers = #tpu.dot_dimension_numbers<[1], [0], [0], [1], [0, 0, 1, 1], [], []>} : vector<8x128xbf16>, vector<128x256xbf16>, vector<8x256xf32> -> vector<8x256xf32>
    %c0_38 = arith.constant 0 : index
    %c0_39 = arith.constant 0 : index
    %83 = vector.load %arg12[%c0_38, %c0_39] : memref<1x256xf32, #tpu.memory_space<vmem>>, vector<1x256xf32>
    %84 = vector.broadcast %83 : vector<1x256xf32> to vector<8x256xf32>
    %85 = arith.addf %82, %84 : vector<8x256xf32>
    %cst_40 = arith.constant 0.000000e+00 : f32
    %86 = vector.broadcast %cst_40 : f32 to vector<8x256xf32>
    %87 = arith.maximumf %85, %86 : vector<8x256xf32>
    %88 = arith.truncf %87 : vector<8x256xf32> to vector<8x256xbf16>
    %c0_41 = arith.constant 0 : index
    %c0_42 = arith.constant 0 : index
    %89 = vector.load %arg13[%c0_41, %c0_42] : memref<256x768xbf16, #tpu.memory_space<vmem>>, vector<256x768xbf16>
    %cst_43 = arith.constant dense<0.000000e+00> : vector<8x768xf32>
    %90 = tpu.matmul %88, %89, %cst_43 {dimension_numbers = #tpu.dot_dimension_numbers<[1], [0], [0], [1], [0, 0, 1, 1], [], []>} : vector<8x256xbf16>, vector<256x768xbf16>, vector<8x768xf32> -> vector<8x768xf32>
    %c0_44 = arith.constant 0 : index
    %c0_45 = arith.constant 0 : index
    %91 = vector.load %arg14[%c0_44, %c0_45] : memref<1x768xf32, #tpu.memory_space<vmem>>, vector<1x768xf32>
    %92 = vector.broadcast %91 : vector<1x768xf32> to vector<8x768xf32>
    %93 = arith.addf %90, %92 : vector<8x768xf32>
    %c0_46 = arith.constant 0 : index
    %c0_47 = arith.constant 0 : index
    %94 = vector.load %arg15[%c0_46, %c0_47] : memref<1x768xf32, #tpu.memory_space<vmem>>, vector<1x768xf32>
    %c0_48 = arith.constant 0 : index
    %c0_49 = arith.constant 0 : index
    %95 = vector.load %arg16[%c0_48, %c0_49] : memref<1x768xf32, #tpu.memory_space<vmem>>, vector<1x768xf32>
    %cst_50 = arith.constant dense<0.000000e+00> : vector<768xf32>
    %96 = vector.multi_reduction <add>, %93, %cst_50 [0] : vector<8x768xf32> to vector<768xf32>
    %97 = vector.shape_cast %96 : vector<768xf32> to vector<1x768xf32>
    %cst_51 = arith.constant 8.000000e+00 : f32
    %98 = vector.broadcast %cst_51 : f32 to vector<1x768xf32>
    %99 = arith.divf %97, %98 : vector<1x768xf32>
    %100 = vector.broadcast %99 : vector<1x768xf32> to vector<8x768xf32>
    %101 = arith.subf %93, %100 : vector<8x768xf32>
    %102 = vector.broadcast %99 : vector<1x768xf32> to vector<8x768xf32>
    %103 = arith.subf %93, %102 : vector<8x768xf32>
    %104 = arith.mulf %101, %103 : vector<8x768xf32>
    %cst_52 = arith.constant dense<0.000000e+00> : vector<768xf32>
    %105 = vector.multi_reduction <add>, %104, %cst_52 [0] : vector<8x768xf32> to vector<768xf32>
    %106 = vector.shape_cast %105 : vector<768xf32> to vector<1x768xf32>
    %cst_53 = arith.constant 8.000000e+00 : f32
    %107 = vector.broadcast %cst_53 : f32 to vector<1x768xf32>
    %108 = arith.divf %106, %107 : vector<1x768xf32>
    %109 = vector.broadcast %99 : vector<1x768xf32> to vector<8x768xf32>
    %110 = arith.subf %93, %109 : vector<8x768xf32>
    %111 = vector.broadcast %94 : vector<1x768xf32> to vector<8x768xf32>
    %112 = arith.mulf %111, %110 : vector<8x768xf32>
    %cst_54 = arith.constant 9.99999974E-6 : f32
    %113 = vector.broadcast %cst_54 : f32 to vector<1x768xf32>
    %114 = arith.addf %108, %113 : vector<1x768xf32>
    %115 = math.rsqrt %114 : vector<1x768xf32>
    %116 = vector.broadcast %115 : vector<1x768xf32> to vector<8x768xf32>
    %117 = arith.mulf %112, %116 : vector<8x768xf32>
    %118 = vector.broadcast %95 : vector<1x768xf32> to vector<8x768xf32>
    %119 = arith.addf %117, %118 : vector<8x768xf32>
    %cst_55 = arith.constant 0.000000e+00 : f32
    %120 = vector.broadcast %cst_55 : f32 to vector<8x768xf32>
    %121 = arith.maximumf %119, %120 : vector<8x768xf32>
    %122 = arith.truncf %121 : vector<8x768xf32> to vector<8x768xbf16>
    %c0_56 = arith.constant 0 : index
    %c0_57 = arith.constant 0 : index
    %123 = vector.load %arg18[%c0_56, %c0_57] : memref<8x768xbf16, #tpu.memory_space<vmem>>, vector<8x768xbf16>
    tpu.vector_store %arg18[%c0_56, %c0_57], %122 {strides = array<i32>} : memref<8x768xbf16, #tpu.memory_space<vmem>>, vector<8x768xbf16>,
    %c0_58 = arith.constant 0 : index
    %c0_59 = arith.constant 0 : index
    %124 = vector.load %arg19[%c0_58, %c0_59] : memref<8x128xf32, #tpu.memory_space<vmem>>, vector<8x128xf32>
    tpu.vector_store %arg19[%c0_58, %c0_59], %72 {strides = array<i32>} : memref<8x128xf32, #tpu.memory_space<vmem>>, vector<8x128xf32>,
    %c0_60 = arith.constant 0 : index
    %c0_61 = arith.constant 0 : index
    %125 = vector.load %arg20[%c0_60, %c0_61] : memref<8x128xf32, #tpu.memory_space<vmem>>, vector<8x128xf32>
    tpu.vector_store %arg20[%c0_60, %c0_61], %73 {strides = array<i32>} : memref<8x128xf32, #tpu.memory_space<vmem>>, vector<8x128xf32>,
    %c0_62 = arith.constant 0 : index
    %c0_63 = arith.constant 0 : index
    %126 = vector.load %arg21[%c0_62, %c0_63] : memref<8x128xf32, #tpu.memory_space<vmem>>, vector<8x128xf32>
    tpu.vector_store %arg21[%c0_62, %c0_63], %79 {strides = array<i32>} : memref<8x128xf32, #tpu.memory_space<vmem>>, vector<8x128xf32>,
    return
  }
  func.func @transform_0(%arg0: i32) -> (i32, i32) {
    %c0_i32 = arith.constant 0 : i32
    %c0_i32_0 = arith.constant 0 : i32
    %c0_i32_1 = arith.constant 0 : i32
    return %c0_i32, %c0_i32_0 : i32, i32
  }
  func.func @transform_1(%arg0: i32) -> (i32, i32) {
    %c0_i32 = arith.constant 0 : i32
    %c0_i32_0 = arith.constant 0 : i32
    %c0_i32_1 = arith.constant 0 : i32
    return %c0_i32, %c0_i32_0 : i32, i32
  }
  func.func @transform_2(%arg0: i32) -> (i32, i32) {
    %c0_i32 = arith.constant 0 : i32
    %c0_i32_0 = arith.constant 0 : i32
    %c0_i32_1 = arith.constant 0 : i32
    return %c0_i32, %c0_i32_0 : i32, i32
  }
  func.func @transform_3(%arg0: i32) -> (i32, i32) {
    %c0_i32 = arith.constant 0 : i32
    %c0_i32_0 = arith.constant 0 : i32
    %c0_i32_1 = arith.constant 0 : i32
    return %c0_i32, %c0_i32_0 : i32, i32
  }
  func.func @transform_4(%arg0: i32) -> (i32, i32) {
    %c0_i32 = arith.constant 0 : i32
    %c0_i32_0 = arith.constant 0 : i32
    %c0_i32_1 = arith.constant 0 : i32
    return %c0_i32, %c0_i32_0 : i32, i32
  }
  func.func @transform_5(%arg0: i32) -> (i32, i32) {
    %c0_i32 = arith.constant 0 : i32
    %c0_i32_0 = arith.constant 0 : i32
    %c0_i32_1 = arith.constant 0 : i32
    return %c0_i32, %c0_i32_0 : i32, i32
  }
  func.func @transform_6(%arg0: i32) -> (i32, i32) {
    %c0_i32 = arith.constant 0 : i32
    %c0_i32_0 = arith.constant 0 : i32
    %c0_i32_1 = arith.constant 0 : i32
    return %c0_i32, %c0_i32_0 : i32, i32
  }
  func.func @transform_7(%arg0: i32) -> (i32, i32) {
    %c0_i32 = arith.constant 0 : i32
    %c0_i32_0 = arith.constant 0 : i32
    %c0_i32_1 = arith.constant 0 : i32
    return %c0_i32, %c0_i32_0 : i32, i32
  }
  func.func @transform_8(%arg0: i32) -> (i32, i32) {
    %c0_i32 = arith.constant 0 : i32
    %c0_i32_0 = arith.constant 0 : i32
    %c0_i32_1 = arith.constant 0 : i32
    return %c0_i32, %c0_i32_0 : i32, i32
  }
  func.func @transform_9(%arg0: i32) -> (i32, i32) {
    %c0_i32 = arith.constant 0 : i32
    %c0_i32_0 = arith.constant 0 : i32
    %c0_i32_1 = arith.constant 0 : i32
    return %c0_i32, %c0_i32_0 : i32, i32
  }
  func.func @transform_10(%arg0: i32) -> (i32, i32) {
    %c0_i32 = arith.constant 0 : i32
    %c0_i32_0 = arith.constant 0 : i32
    %c0_i32_1 = arith.constant 0 : i32
    return %c0_i32, %c0_i32_0 : i32, i32
  }
  func.func @transform_11(%arg0: i32) -> (i32, i32) {
    %c0_i32 = arith.constant 0 : i32
    %c0_i32_0 = arith.constant 0 : i32
    %c0_i32_1 = arith.constant 0 : i32
    return %c0_i32, %c0_i32_0 : i32, i32
  }
  func.func @transform_12(%arg0: i32) -> (i32, i32) {
    %c0_i32 = arith.constant 0 : i32
    %c0_i32_0 = arith.constant 0 : i32
    %c0_i32_1 = arith.constant 0 : i32
    return %c0_i32, %c0_i32_0 : i32, i32
  }
  func.func @transform_13(%arg0: i32) -> (i32, i32) {
    %c0_i32 = arith.constant 0 : i32
    %c0_i32_0 = arith.constant 0 : i32
    %c0_i32_1 = arith.constant 0 : i32
    return %c0_i32, %c0_i32_0 : i32, i32
  }
  func.func @transform_14(%arg0: i32) -> (i32, i32) {
    %c0_i32 = arith.constant 0 : i32
    %c0_i32_0 = arith.constant 0 : i32
    %c0_i32_1 = arith.constant 0 : i32
    return %c0_i32, %c0_i32_0 : i32, i32
  }
  func.func @transform_15(%arg0: i32) -> (i32, i32) {
    %c0_i32 = arith.constant 0 : i32
    %c0_i32_0 = arith.constant 0 : i32
    %c0_i32_1 = arith.constant 0 : i32
    return %c0_i32, %c0_i32_0 : i32, i32
  }
  func.func @transform_16(%arg0: i32) -> (i32, i32) {
    %c0_i32 = arith.constant 0 : i32
    %c0_i32_0 = arith.constant 0 : i32
    %c0_i32_1 = arith.constant 0 : i32
    return %c0_i32, %c0_i32_0 : i32, i32
  }
  func.func @transform_17(%arg0: i32) -> (i32, i32) {
    %c0_i32 = arith.constant 0 : i32
    %c0_i32_0 = arith.constant 0 : i32
    %c0_i32_1 = arith.constant 0 : i32
    return %c0_i32, %c0_i32_0 : i32, i32
  }
  func.func @transform_18(%arg0: i32) -> (i32, i32) {
    %c0_i32 = arith.constant 0 : i32
    %c0_i32_0 = arith.constant 0 : i32
    %c0_i32_1 = arith.constant 0 : i32
    return %c0_i32, %c0_i32_0 : i32, i32
  }
  func.func @transform_19(%arg0: i32) -> (i32, i32) {
    %c0_i32 = arith.constant 0 : i32
    %c0_i32_0 = arith.constant 0 : i32
    %c0_i32_1 = arith.constant 0 : i32
    return %c0_i32, %c0_i32_0 : i32, i32
  }
  func.func @transform_20(%arg0: i32) -> (i32, i32) {
    %c0_i32 = arith.constant 0 : i32
    %c0_i32_0 = arith.constant 0 : i32
    %c0_i32_1 = arith.constant 0 : i32
    return %c0_i32, %c0_i32_0 : i32, i32
  }
}

</mosaic_0001>

<llo_original>
// kernel: vae_forward.3
$region0: #{vae_forward.3}
  #allocation0 [shape = 'u32[]', space=smem, size = 0x4, offset = 0x4, fixed_abs, tag = 'smem constant byte address 0x4 - core index']
  #allocation1 [shape = 'u32[144,128]{1,0:T(1,128)}', space=vmem, size = 0x12000, scoped, tag = 'internal scratch']
  #allocation2 [shape = 'f32[8,384]{1,0:T(8,128)}', space=vmem, size = 0x3000, scoped, tag = 'scratch operand']
  %s0 = inlined_call_operand.vmem [shape: bf16[8,1024], index: 0, kind: input, shape index: {}]
  %s1 = inlined_call_operand.hbm [shape: bf16[1024,768], index: 1, kind: input, shape index: {}]
  %s2 = inlined_call_operand.vmem [shape: f32[8,768], index: 2, kind: output, shape index: {}]
  %s3 = sld [smem:[#allocation0]]
  $region53: #{vae_forward.3} parent=0
    _
  %s5 = ssub.s32 1, %s3
  %s6 = scalar_select 0, %s5, %s3
  $region1: #{vae_forward.3} parent=0
    #allocation3 [shape = 'u8[393216]{0}', space=vmem, size = 0x60000, scoped, tag = 'input window, operand 1']
    #allocation4 [shape = 's32[2]{0}', space=sflag, size = 0x8, scoped, tag = 'scoped memory for vae_forward.3']
    %7 = vsyncpa [#allocation4], 0
    %s8 = scalar_lea.sflag [#allocation4], 1
    %9 = vsyncpa %s8, 0
    loop: start=0, step=1, limit=10
    $region2: #{vae_forward.3} parent=1 // loop_pre_header
      _
    $region3: #{vae_forward.3} parent=1 // loop_header
      %s11 = sphi 0, %s15
      %p12 = scmp.ge.s32.totalorder %s11, 10
      %s18 = sphi 0, %s30
      %s19 = sphi 0, %s26
      %s20 = sphi 0, %s18
      %s21 = sphi 0, %s19
      %s22 = sphi 0, %s20
      %s23 = sphi 0, %s21
      %s33 = sphi 0, %s35
      %s36 = sphi 0, %s33
      %s37 = sphi 0, %s36
      %s53 = sphi 0, %s37
      %s61 = sphi 0, %s63
      %s64 = sphi 0, %s61
      %s65 = sphi 0, %s64
      %s81 = sphi 0, %s65
      %s87 = sphi 0, %s89
      %s90 = sphi 0, %s87
      %s91 = sphi 0, %s90
      %s107 = sphi 0, %s91
    $region4: #{vae_forward.3} parent=1 // loop_header_branch
      %14 = sbr.rel (%p12) target = $region8
    $region5: #{vae_forward.3} parent=1 // loop_body
      %s16 = ssub.s32 %s11, 1
      %s17 = ssub.s32 %s11, 2
      %s24 = sadd.s32 1, %s19
      %p25 = scmp.ge.s32.totalorder %s24, 4
      %s26 = scalar_select %p25, 0, %s24
      %s27 = sadd.s32 1, %s18
      %s28 = scalar_select %p25, %s27, %s18
      %p29 = scmp.ge.s32.totalorder %s28, 2
      %s30 = scalar_select %p29, 0, %s28
      %s31 = ssub.s32 %s19, %s26
      %p32 = scmp.eq.s32.totalorder %s31, 0
      %s34 = sadd.s32 %s33, 1
      %s35 = scalar_select %p32, %s33, %s34
      %p38 = pneg %p32
      %p39 = scmp.eq.s32.totalorder %s11, 7
      %p40 = por %p38, %p39
      %p41 = scmp.ne.s32.totalorder %s33, %s36
      %p42 = scmp.eq.s32.totalorder %s11, 0
      %p43 = por %p41, %p42
      %p44 = scmp.ne.s32.totalorder %s33, %s36
      %p45 = scmp.eq.s32.totalorder %s16, 7
      %p46 = por %p44, %p45
      %p47 = scmp.ne.s32.totalorder %s36, %s37
      %p48 = scmp.eq.s32.totalorder %s16, 0
      %p49 = por %p47, %p48
      %p50 = scmp.ne.s32.totalorder %s36, %s37
      %p51 = scmp.eq.s32.totalorder %s17, 7
      %p52 = por %p50, %p51
      %p54 = scmp.ne.s32.totalorder %s37, %s53
      %p55 = scmp.eq.s32.totalorder %s17, 0
      %p56 = por %p54, %p55
      %s57 = ssub.s32 %s19, %s26
      %s58 = ssub.s32 %s18, %s30
      %s59 = sor.u32 %s57, %s58
      %p60 = scmp.eq.s32.totalorder %s59, 0
      %s62 = sadd.s32 %s61, 1
      %s63 = scalar_select %p60, %s61, %s62
      %p66 = pneg %p60
      %p67 = scmp.eq.s32.totalorder %s11, 7
      %p68 = por %p66, %p67
      %p69 = scmp.ne.s32.totalorder %s61, %s64
      %p70 = scmp.eq.s32.totalorder %s11, 0
      %p71 = por %p69, %p70
      %p72 = scmp.ne.s32.totalorder %s61, %s64
      %p73 = scmp.eq.s32.totalorder %s16, 7
      %p74 = por %p72, %p73
      %p75 = scmp.ne.s32.totalorder %s64, %s65
      %p76 = scmp.eq.s32.totalorder %s16, 0
      %p77 = por %p75, %p76
      %p78 = scmp.ne.s32.totalorder %s64, %s65
      %p79 = scmp.eq.s32.totalorder %s17, 7
      %p80 = por %p78, %p79
      %p82 = scmp.ne.s32.totalorder %s65, %s81
      %p83 = scmp.eq.s32.totalorder %s17, 0
      %p84 = por %p82, %p83
      %s85 = ssub.s32 %s18, %s30
      %p86 = scmp.eq.s32.totalorder %s85, 0
      %s88 = sadd.s32 %s87, 1
      %s89 = scalar_select %p86, %s87, %s88
      %p92 = pneg %p86
      %p93 = scmp.eq.s32.totalorder %s11, 7
      %p94 = por %p92, %p93
      %p95 = scmp.ne.s32.totalorder %s87, %s90
      %p96 = scmp.eq.s32.totalorder %s11, 0
      %p97 = por %p95, %p96
      %p98 = scmp.ne.s32.totalorder %s87, %s90
      %p99 = scmp.eq.s32.totalorder %s16, 7
      %p100 = por %p98, %p99
      %p101 = scmp.ne.s32.totalorder %s90, %s91
      %p102 = scmp.eq.s32.totalorder %s16, 0
      %p103 = por %p101, %p102
      %p104 = scmp.ne.s32.totalorder %s90, %s91
      %p105 = scmp.eq.s32.totalorder %s17, 7
      %p106 = por %p104, %p105
      %p108 = scmp.ne.s32.totalorder %s91, %s107
      %p109 = scmp.eq.s32.totalorder %s17, 0
      %p110 = por %p108, %p109
      %p111 = scmp.le.s32.totalorder 1, %s11
      %p112 = scmp.lt.s32.totalorder %s11, 9
      %p113 = pnand %p111, %p112
      %p114 = pneg %p113
      // Predicated region
      $region9: #{vae_forward.3} parent=5 // pred_check
        _
      $region10: #{vae_forward.3} parent=5 // pred_check_branch
        %116 = sbr.rel (%p113) target = $region12
      $region11: #{vae_forward.3} parent=5 // pred_region
        %s117 = ssub.s32 %s11, 1
      $region12: #{vae_forward.3} parent=5 // pred_fallthru
        _
      %p118 = scmp.lt.s32.totalorder %s11, 8
      // Predicated region
      $region13: #{vae_forward.3} parent=5 // pred_check
        %p119 = pneg %p118
      $region14: #{vae_forward.3} parent=5 // pred_check_branch
        %121 = sbr.rel (%p119) target = $region16
      $region15: #{vae_forward.3} parent=5 // pred_region
        // Predicated region
        $region17: #{vae_forward.3} parent=15 // pred_check
          %p122 = pneg %p43
        $region18: #{vae_forward.3} parent=15 // pred_check_branch
          %124 = sbr.rel (%p122) target = $region20
        $region19: #{vae_forward.3} parent=15 // pred_region
          %s125 = smul.u32 2, %s19
          %p126 = scmp.lt.s32.totalorder %s125, 7
          %s127 = scalar_select %p126, %s125, 7
          %s128 = smul.addr %s127, 4
          %s129 = scalar_lea.vmem %s0, %s128
          %s130 = smul.u32 2, %s19
        $region20: #{vae_forward.3} parent=15 // pred_fallthru
          _
        // Predicated region
        $region21: #{vae_forward.3} parent=15 // pred_check
          %p131 = pneg %p71
        $region22: #{vae_forward.3} parent=15 // pred_check_branch
          %133 = sbr.rel (%p131) target = $region24
        $region23: #{vae_forward.3} parent=15 // pred_region
          %s134 = sand.u32 %s61, 1
          %s135 = scalar_lea.sflag [#allocation4], %s134
          %s136 = sand.u32 %s61, 1
          %s137 = smul.addr %s136, 384
          %s138 = scalar_lea.vmem [#allocation3], %s137
          %s139 = smul.u32 32, %s19
          %s140 = smul.u32 3, %s18
          %s142 = ssub.s32 6144, 6144
          %143 = vsyncadd %s135, %s142
          %s144 = smul.addr %s139, 6
          %s145 = sadd.s32 %s140, %s144
          %s146 = smul.addr %s145, 64
          %s147 = scalar_lea.hbm %s1, %s146
          %s148 = sshll.u32 %s138, 4
          %s149 = int_to_ptr.vmem [resolvable:$true] %s148
          %154 = dma.hbm_to_vmem [thread:$0]  %s147, 6144, %s149, %s135, 384, 192, 12
        $region24: #{vae_forward.3} parent=15 // pred_fallthru
          _
      $region16: #{vae_forward.3} parent=5 // pred_fallthru
        _
      %p155 = scmp.le.s32.totalorder 1, %s11
      %p156 = scmp.lt.s32.totalorder %s11, 9
      %p157 = pnand %p155, %p156
      %p158 = pneg %p157
      // Predicated region
      $region25: #{vae_forward.3} parent=5 // pred_check
        _
      $region26: #{vae_forward.3} parent=5 // pred_check_branch
        %160 = sbr.rel (%p157) target = $region28
      $region27: #{vae_forward.3} parent=5 // pred_region
        %s161 = ssub.s32 %s11, 1
        %s162 = sand.u32 %s64, 1
        %s163 = scalar_lea.sflag [#allocation4], %s162
        %s164 = sand.u32 %s64, 1
        %s165 = smul.addr %s164, 384
        %s166 = scalar_lea.vmem [#allocation3], %s165
        // Predicated region
        $region29: #{vae_forward.3} parent=27 // pred_check
          %p167 = pneg %p77
        $region30: #{vae_forward.3} parent=27 // pred_check_branch
          %169 = sbr.rel (%p167) target = $region32
        $region31: #{vae_forward.3} parent=27 // pred_region
          %170 = dma.done %s163, 6144
        $region32: #{vae_forward.3} parent=27 // pred_fallthru
          _
        %s171 = smul.u32 2, %s21
        %p172 = scmp.lt.s32.totalorder %s171, 7
        %s173 = scalar_select %p172, %s171, 7
        %s174 = smul.addr %s173, 4
        %s175 = scalar_lea.vmem %s0, %s174
        %p176 = pneg %p49
        %p177 = pneg %p46
        %s178 = sand.u32 %s64, 1
        %s179 = scalar_lea.sflag [#allocation4], %s178
        %s180 = sand.u32 %s64, 1
        %s181 = smul.addr %s180, 384
        %s182 = scalar_lea.vmem [#allocation3], %s181
        %p183 = pneg %p77
        %p184 = pneg %p74
        %p185 = pneg %p103
        %p186 = pneg %p100
        %s187 = smul.u32 3, %s20
        %p188 = scmp.lt.s32.totalorder %s187, 5
        %s189 = scalar_select %p188, %s187, 5
        %s190 = smul.addr %s189, 8
        %s191 = scalar_lea.vmem %s2, %s190
        %s192 = smul.u32 2, %s21
        %p193 = scmp.lt.s32.totalorder %s192, 7
        %s194 = scalar_select %p193, %s192, 7
        %s195 = smul.addr %s194, 4
        %s196 = scalar_lea.vmem %s0, %s195
        %s197 = smul.u32 2, %s21
        %s198 = smul.u32 32, %s21
        %s199 = smul.u32 3, %s20
        %s200 = smul.u32 3, %s20
        %p201 = scmp.lt.s32.totalorder %s200, 5
        %s202 = scalar_select %p201, %s200, 5
        %s203 = smul.addr %s202, 8
        %s204 = scalar_lea.vmem %s2, %s203
        %s205 = smul.u32 3, %s20
        %p207 = scmp.eq.s32.totalorder %s21, 0
        // Predicated region
        $region33: #{vae_forward.3} parent=27 // pred_check
          %p208 = pneg %p207
        $region34: #{vae_forward.3} parent=27 // pred_check_branch
          %210 = sbr.rel (%p208) target = $region36
        $region35: #{vae_forward.3} parent=27 // pred_region
          %211 = vst [vmem:[#allocation2] sm:$0xff] 0.0
          %212 = vst [vmem:[#allocation2 + $0x8] sm:$0xff] 0.0
          %213 = vst [vmem:[#allocation2 + $0x10] sm:$0xff] 0.0
        $region36: #{vae_forward.3} parent=27 // pred_fallthru
          _
        %v214 = vld [vmem:[#allocation2] sm:$0xff]
        %v215 = vld [vmem:[#allocation2 + $0x8] sm:$0xff]
        %v216 = vld [vmem:[#allocation2 + $0x10] sm:$0xff]
        %v217 = vld [vmem:[%s196] sm:$0xff]
        %v218 = vld [vmem:[%s166] sm:$0xff]
        %v219 = vld [vmem:[%s166 + $0x8] sm:$0xf]
        %v220 = vld [vmem:[%s166 + $0xc] sm:$0xff]
        %v221 = vld [vmem:[%s166 + $0x14] sm:$0xf]
        %v222 = vld [vmem:[%s166 + $0x18] sm:$0xff]
        %v223 = vld [vmem:[%s166 + $0x20] sm:$0xf]
        %v224 = vld [vmem:[%s166 + $0x24] sm:$0xff]
        %v225 = vld [vmem:[%s166 + $0x2c] sm:$0xf]
        %v226 = vld [vmem:[%s166 + $0x30] sm:$0xff]
        %v227 = vld [vmem:[%s166 + $0x38] sm:$0xf]
        %v228 = vld [vmem:[%s166 + $0x3c] sm:$0xff]
        %v229 = vld [vmem:[%s166 + $0x44] sm:$0xf]
        %v230 = vld [vmem:[%s166 + $0x48] sm:$0xff]
        %v231 = vld [vmem:[%s166 + $0x50] sm:$0xf]
        %v232 = vld [vmem:[%s166 + $0x54] sm:$0xff]
        %v233 = vld [vmem:[%s166 + $0x5c] sm:$0xf]
        %v234 = vld [vmem:[%s166 + $0x60] sm:$0xff]
        %v235 = vld [vmem:[%s166 + $0x68] sm:$0xf]
        %v236 = vld [vmem:[%s166 + $0x6c] sm:$0xff]
        %v237 = vld [vmem:[%s166 + $0x74] sm:$0xf]
        %v238 = vld [vmem:[%s166 + $0x78] sm:$0xff]
        %v239 = vld [vmem:[%s166 + $0x80] sm:$0xf]
        %v240 = vld [vmem:[%s166 + $0x84] sm:$0xff]
        %v241 = vld [vmem:[%s166 + $0x8c] sm:$0xf]
        %v242 = vld [vmem:[%s166 + $0x90] sm:$0xff]
        %v243 = vld [vmem:[%s166 + $0x98] sm:$0xf]
        %v244 = vld [vmem:[%s166 + $0x9c] sm:$0xff]
        %v245 = vld [vmem:[%s166 + $0xa4] sm:$0xf]
        %v246 = vld [vmem:[%s166 + $0xa8] sm:$0xff]
        %v247 = vld [vmem:[%s166 + $0xb0] sm:$0xf]
        %v248 = vld [vmem:[%s166 + $0xb4] sm:$0xff]
        %v249 = vld [vmem:[%s166 + $0xbc] sm:$0xf]
        %v250 = vld [vmem:[%s166 + $0xc0] sm:$0xff]
        %v251 = vld [vmem:[%s166 + $0xc8] sm:$0xf]
        %v252 = vld [vmem:[%s166 + $0xcc] sm:$0xff]
        %v253 = vld [vmem:[%s166 + $0xd4] sm:$0xf]
        %v254 = vld [vmem:[%s166 + $0xd8] sm:$0xff]
        %v255 = vld [vmem:[%s166 + $0xe0] sm:$0xf]
        %v256 = vld [vmem:[%s166 + $0xe4] sm:$0xff]
        %v257 = vld [vmem:[%s166 + $0xec] sm:$0xf]
        %v258 = vld [vmem:[%s166 + $0xf0] sm:$0xff]
        %v259 = vld [vmem:[%s166 + $0xf8] sm:$0xf]
        %v260 = vld [vmem:[%s166 + $0xfc] sm:$0xff]
        %v261 = vld [vmem:[%s166 + $0x104] sm:$0xf]
        %v262 = vld [vmem:[%s166 + $0x108] sm:$0xff]
        %v263 = vld [vmem:[%s166 + $0x110] sm:$0xf]
        %v264 = vld [vmem:[%s166 + $0x114] sm:$0xff]
        %v265 = vld [vmem:[%s166 + $0x11c] sm:$0xf]
        %v266 = vld [vmem:[%s166 + $0x120] sm:$0xff]
        %v267 = vld [vmem:[%s166 + $0x128] sm:$0xf]
        %v268 = vld [vmem:[%s166 + $0x12c] sm:$0xff]
        %v269 = vld [vmem:[%s166 + $0x134] sm:$0xf]
        %v270 = vld [vmem:[%s166 + $0x138] sm:$0xff]
        %v271 = vld [vmem:[%s166 + $0x140] sm:$0xf]
        %v272 = vld [vmem:[%s166 + $0x144] sm:$0xff]
        %v273 = vld [vmem:[%s166 + $0x14c] sm:$0xf]
        %v274 = vld [vmem:[%s166 + $0x150] sm:$0xff]
        %v275 = vld [vmem:[%s166 + $0x158] sm:$0xf]
        %v276 = vld [vmem:[%s166 + $0x15c] sm:$0xff]
        %v277 = vld [vmem:[%s166 + $0x164] sm:$0xf]
        %v278 = vld [vmem:[%s166 + $0x168] sm:$0xff]
        %v279 = vld [vmem:[%s166 + $0x170] sm:$0xf]
        %v280 = vld [vmem:[%s166 + $0x174] sm:$0xff]
        %v281 = vld [vmem:[%s166 + $0x17c] sm:$0xf]
        %v283 = vunpack.c.l.b16 %v217
        %v284 = vunpack.c.h.b16 %v217
        %v285 = vpack.c.b16 %v283, %v283
        %v286 = vpack.c.b16 %v284, %v284
        %v353 = vunpack.c.l.b16 %v218
        %v354 = vunpack.c.h.b16 %v218
        %v355 = vunpack.c.l.b16 %v219
        %v356 = vunpack.c.l.b16 %v220
        %v357 = vunpack.c.h.b16 %v220
        %v358 = vunpack.c.l.b16 %v221
        %v359 = vunpack.c.l.b16 %v222
        %v360 = vunpack.c.h.b16 %v222
        %v361 = vunpack.c.l.b16 %v223
        %v362 = vunpack.c.l.b16 %v224
        %v363 = vunpack.c.h.b16 %v224
        %v364 = vunpack.c.l.b16 %v225
        %v365 = vunpack.c.l.b16 %v226
        %v366 = vunpack.c.h.b16 %v226
        %v367 = vunpack.c.l.b16 %v227
        %v368 = vunpack.c.l.b16 %v228
        %v369 = vunpack.c.h.b16 %v228
        %v370 = vunpack.c.l.b16 %v229
        %v371 = vunpack.c.l.b16 %v230
        %v372 = vunpack.c.h.b16 %v230
        %v373 = vunpack.c.l.b16 %v231
        %v374 = vunpack.c.l.b16 %v232
        %v375 = vunpack.c.h.b16 %v232
        %v376 = vunpack.c.l.b16 %v233
        %v377 = vunpack.c.l.b16 %v234
        %v378 = vunpack.c.h.b16 %v234
        %v379 = vunpack.c.l.b16 %v235
        %v380 = vunpack.c.l.b16 %v236
        %v381 = vunpack.c.h.b16 %v236
        %v382 = vunpack.c.l.b16 %v237
        %v383 = vunpack.c.l.b16 %v238
        %v384 = vunpack.c.h.b16 %v238
        %v385 = vunpack.c.l.b16 %v239
        %v386 = vunpack.c.l.b16 %v240
        %v387 = vunpack.c.h.b16 %v240
        %v388 = vunpack.c.l.b16 %v241
        %v389 = vunpack.c.l.b16 %v242
        %v390 = vunpack.c.h.b16 %v242
        %v391 = vunpack.c.l.b16 %v243
        %v392 = vunpack.c.l.b16 %v244
        %v393 = vunpack.c.h.b16 %v244
        %v394 = vunpack.c.l.b16 %v245
        %v395 = vunpack.c.l.b16 %v246
        %v396 = vunpack.c.h.b16 %v246
        %v397 = vunpack.c.l.b16 %v247
        %v398 = vunpack.c.l.b16 %v248
        %v399 = vunpack.c.h.b16 %v248
        %v400 = vunpack.c.l.b16 %v249
        %v401 = vunpack.c.l.b16 %v250
        %v402 = vunpack.c.h.b16 %v250
        %v403 = vunpack.c.l.b16 %v251
        %v404 = vunpack.c.l.b16 %v252
        %v405 = vunpack.c.h.b16 %v252
        %v406 = vunpack.c.l.b16 %v253
        %v407 = vunpack.c.l.b16 %v254
        %v408 = vunpack.c.h.b16 %v254
        %v409 = vunpack.c.l.b16 %v255
        %v410 = vunpack.c.l.b16 %v256
        %v411 = vunpack.c.h.b16 %v256
        %v412 = vunpack.c.l.b16 %v257
        %v413 = vunpack.c.l.b16 %v258
        %v414 = vunpack.c.h.b16 %v258
        %v415 = vunpack.c.l.b16 %v259
        %v416 = vunpack.c.l.b16 %v260
        %v417 = vunpack.c.h.b16 %v260
        %v418 = vunpack.c.l.b16 %v261
        %v419 = vunpack.c.l.b16 %v262
        %v420 = vunpack.c.h.b16 %v262
        %v421 = vunpack.c.l.b16 %v263
        %v422 = vunpack.c.l.b16 %v264
        %v423 = vunpack.c.h.b16 %v264
        %v424 = vunpack.c.l.b16 %v265
        %v425 = vunpack.c.l.b16 %v266
        %v426 = vunpack.c.h.b16 %v266
        %v427 = vunpack.c.l.b16 %v267
        %v428 = vunpack.c.l.b16 %v268
        %v429 = vunpack.c.h.b16 %v268
        %v430 = vunpack.c.l.b16 %v269
        %v431 = vunpack.c.l.b16 %v270
        %v432 = vunpack.c.h.b16 %v270
        %v433 = vunpack.c.l.b16 %v271
        %v434 = vunpack.c.l.b16 %v272
        %v435 = vunpack.c.h.b16 %v272
        %v436 = vunpack.c.l.b16 %v273
        %v437 = vunpack.c.l.b16 %v274
        %v438 = vunpack.c.h.b16 %v274
        %v439 = vunpack.c.l.b16 %v275
        %v440 = vunpack.c.l.b16 %v276
        %v441 = vunpack.c.h.b16 %v276
        %v442 = vunpack.c.l.b16 %v277
        %v443 = vunpack.c.l.b16 %v278
        %v444 = vunpack.c.h.b16 %v278
        %v445 = vunpack.c.l.b16 %v279
        %v446 = vunpack.c.l.b16 %v280
        %v447 = vunpack.c.h.b16 %v280
        %v448 = vunpack.c.l.b16 %v281
        %v449 = vpack.c.b16 %v356, %v353
        %v450 = vpack.c.b16 %v357, %v354
        %v451 = vpack.c.b16 %v358, %v355
        %v452 = vpack.c.b16 %v362, %v359
        %v453 = vpack.c.b16 %v363, %v360
        %v454 = vpack.c.b16 %v364, %v361
        %v455 = vpack.c.b16 %v368, %v365
        %v456 = vpack.c.b16 %v369, %v366
        %v457 = vpack.c.b16 %v370, %v367
        %v458 = vpack.c.b16 %v374, %v371
        %v459 = vpack.c.b16 %v375, %v372
        %v460 = vpack.c.b16 %v376, %v373
        %v461 = vpack.c.b16 %v380, %v377
        %v462 = vpack.c.b16 %v381, %v378
        %v463 = vpack.c.b16 %v382, %v379
        %v464 = vpack.c.b16 %v386, %v383
        %v465 = vpack.c.b16 %v387, %v384
        %v466 = vpack.c.b16 %v388, %v385
        %v467 = vpack.c.b16 %v392, %v389
        %v468 = vpack.c.b16 %v393, %v390
        %v469 = vpack.c.b16 %v394, %v391
        %v470 = vpack.c.b16 %v398, %v395
        %v471 = vpack.c.b16 %v399, %v396
        %v472 = vpack.c.b16 %v400, %v397
        %v473 = vpack.c.b16 %v404, %v401
        %v474 = vpack.c.b16 %v405, %v402
        %v475 = vpack.c.b16 %v406, %v403
        %v476 = vpack.c.b16 %v410, %v407
        %v477 = vpack.c.b16 %v411, %v408
        %v478 = vpack.c.b16 %v412, %v409
        %v479 = vpack.c.b16 %v416, %v413
        %v480 = vpack.c.b16 %v417, %v414
        %v481 = vpack.c.b16 %v418, %v415
        %v482 = vpack.c.b16 %v422, %v419
        %v483 = vpack.c.b16 %v423, %v420
        %v484 = vpack.c.b16 %v424, %v421
        %v485 = vpack.c.b16 %v428, %v425
        %v486 = vpack.c.b16 %v429, %v426
        %v487 = vpack.c.b16 %v430, %v427
        %v488 = vpack.c.b16 %v434, %v431
        %v489 = vpack.c.b16 %v435, %v432
        %v490 = vpack.c.b16 %v436, %v433
        %v491 = vpack.c.b16 %v440, %v437
        %v492 = vpack.c.b16 %v441, %v438
        %v493 = vpack.c.b16 %v442, %v439
        %v494 = vpack.c.b16 %v446, %v443
        %v495 = vpack.c.b16 %v447, %v444
        %v496 = vpack.c.b16 %v448, %v445
        %545 = vmatprep.subr.bf16.mxu0 %v450
        %546 = vmatpush1.bf16.msra.mxu0 %v449
        %547 = vmatprep.subr.bf16.mxu0 %v453
        %548 = vmatpush1.bf16.msra.mxu0 %v452
        %549 = vmatprep.subr.bf16.mxu0 %v456
        %550 = vmatpush1.bf16.msra.mxu0 %v455
        %551 = vmatprep.subr.bf16.mxu0 %v459
        %552 = vmatpush1.bf16.msra.mxu0 %v458
        %553 = vmatprep.subr.bf16.mxu0 %v462
        %554 = vmatpush1.bf16.msra.mxu0 %v461
        %555 = vmatprep.subr.bf16.mxu0 %v465
        %556 = vmatpush1.bf16.msra.mxu0 %v464
        %557 = vmatprep.subr.bf16.mxu0 %v468
        %558 = vmatpush1.bf16.msra.mxu0 %v467
        %559 = vmatprep.subr.bf16.mxu0 %v471
        %560 = vmatpush1.bf16.msra.mxu0 %v470
        %561 = vmatprep.subr.bf16.mxu0 %v474
        %562 = vmatpush1.bf16.msra.mxu0 %v473
        %563 = vmatprep.subr.bf16.mxu0 %v477
        %564 = vmatpush1.bf16.msra.mxu0 %v476
        %565 = vmatprep.subr.bf16.mxu0 %v480
        %566 = vmatpush1.bf16.msra.mxu0 %v479
        %567 = vmatprep.subr.bf16.mxu0 %v483
        %568 = vmatpush1.bf16.msra.mxu0 %v482
        %569 = vmatprep.subr.bf16.mxu0 %v486
        %570 = vmatpush1.bf16.msra.mxu0 %v485
        %571 = vmatprep.subr.bf16.mxu0 %v489
        %572 = vmatpush1.bf16.msra.mxu0 %v488
        %573 = vmatprep.subr.bf16.mxu0 %v492
        %574 = vmatpush1.bf16.msra.mxu0 %v491
        %575 = vmatprep.subr.bf16.mxu0 %v495
        %576 = vmatpush1.bf16.msra.mxu0 %v494
        %577 = vmatprep.mubr.bf16.mxu0 %v286
        %578 = vmatmul.mubr.bf16.gmra.mrb[0].mxu0 %v285
        %v579 = vpop.f32.mrb[0].mxu0
        %v580 = vadd.f32 0.0, %v579
        %v581 = vpop.f32.mrb[0].mxu0
        %v582 = vadd.f32 0.0, %v581
        %v583 = vpop.f32.mrb[0].mxu0
        %v584 = vpop.f32.mrb[0].mxu0
        %585 = vdwg.mxu0
        %586 = vmatprep.subr.bf16.mxu0 0
        %587 = vmatpush1.bf16.msra.mxu0 %v451
        %588 = vmatprep.subr.bf16.mxu0 0
        %589 = vmatpush1.bf16.msra.mxu0 %v454
        %590 = vmatprep.subr.bf16.mxu0 0
        %591 = vmatpush1.bf16.msra.mxu0 %v457
        %592 = vmatprep.subr.bf16.mxu0 0
        %593 = vmatpush1.bf16.msra.mxu0 %v460
        %594 = vmatprep.subr.bf16.mxu0 0
        %595 = vmatpush1.bf16.msra.mxu0 %v463
        %596 = vmatprep.subr.bf16.mxu0 0
        %597 = vmatpush1.bf16.msra.mxu0 %v466
        %598 = vmatprep.subr.bf16.mxu0 0
        %599 = vmatpush1.bf16.msra.mxu0 %v469
        %600 = vmatprep.subr.bf16.mxu0 0
        %601 = vmatpush1.bf16.msra.mxu0 %v472
        %602 = vmatprep.subr.bf16.mxu0 0
        %603 = vmatpush1.bf16.msra.mxu0 %v475
        %604 = vmatprep.subr.bf16.mxu0 0
        %605 = vmatpush1.bf16.msra.mxu0 %v478
        %606 = vmatprep.subr.bf16.mxu0 0
        %607 = vmatpush1.bf16.msra.mxu0 %v481
        %608 = vmatprep.subr.bf16.mxu0 0
        %609 = vmatpush1.bf16.msra.mxu0 %v484
        %610 = vmatprep.subr.bf16.mxu0 0
        %611 = vmatpush1.bf16.msra.mxu0 %v487
        %612 = vmatprep.subr.bf16.mxu0 0
        %613 = vmatpush1.bf16.msra.mxu0 %v490
        %614 = vmatprep.subr.bf16.mxu0 0
        %615 = vmatpush1.bf16.msra.mxu0 %v493
        %616 = vmatprep.subr.bf16.mxu0 0
        %617 = vmatpush1.bf16.msra.mxu0 %v496
        %618 = vmatprep.mubr.bf16.mxu0 %v286
        %619 = vmatmul.mubr.bf16.gmra.mrb[0].mxu0 %v285
        %v620 = vpop.f32.mrb[0].mxu0
        %v621 = vadd.f32 0.0, %v620
        %v622 = vpop.f32.mrb[0].mxu0
        %v623 = vpop.f32.mrb[0].mxu0
        %v624 = vpop.f32.mrb[0].mxu0
        %625 = vdwg.mxu0
        %v626 = vadd.f32 %v214, %v580
        %v627 = vadd.f32 %v215, %v582
        %v628 = vadd.f32 %v216, %v621
        %629 = vst [vmem:[#allocation2] sm:$0xff] %v626
        %630 = vst [vmem:[#allocation2 + $0x8] sm:$0xff] %v627
        %631 = vst [vmem:[#allocation2 + $0x10] sm:$0xff] %v628
        %p632 = scmp.eq.s32.totalorder %s21, 3
        // Predicated region
        $region37: #{vae_forward.3} parent=27 // pred_check
          %p633 = pneg %p632
        $region38: #{vae_forward.3} parent=27 // pred_check_branch
          %635 = sbr.rel (%p633) target = $region40
        $region39: #{vae_forward.3} parent=27 // pred_region
          %v636 = vld [vmem:[#allocation2] sm:$0xff]
          %v637 = vld [vmem:[#allocation2 + $0x8] sm:$0xff]
          %v638 = vld [vmem:[#allocation2 + $0x10] sm:$0xff]
          %639 = vst [vmem:[%s204] sm:$0xff] %v636
          %640 = vst [vmem:[%s204 + $0x8] sm:$0xff] %v637
          %641 = vst [vmem:[%s204 + $0x10] sm:$0xff] %v638
        $region40: #{vae_forward.3} parent=27 // pred_fallthru
          _
        %s642 = smul.u32 3, %s20
        %p643 = scmp.lt.s32.totalorder %s642, 5
        %s644 = scalar_select %p643, %s642, 5
        %s645 = smul.addr %s644, 8
        %s646 = scalar_lea.vmem %s2, %s645
        // Predicated region
        $region41: #{vae_forward.3} parent=27 // pred_check
          %p647 = pneg %p100
        $region42: #{vae_forward.3} parent=27 // pred_check_branch
          %649 = sbr.rel (%p647) target = $region44
        $region43: #{vae_forward.3} parent=27 // pred_region
          %s650 = smul.u32 3, %s20
        $region44: #{vae_forward.3} parent=27 // pred_fallthru
          _
      $region28: #{vae_forward.3} parent=5 // pred_fallthru
        _
      %p651 = scmp.le.s32.totalorder 2, %s11
      // Predicated region
      $region45: #{vae_forward.3} parent=5 // pred_check
        %p652 = pneg %p651
      $region46: #{vae_forward.3} parent=5 // pred_check_branch
        %654 = sbr.rel (%p652) target = $region48
      $region47: #{vae_forward.3} parent=5 // pred_region
        %s655 = ssub.s32 %s11, 2
        // Predicated region
        $region49: #{vae_forward.3} parent=47 // pred_check
          %p656 = pneg %p106
        $region50: #{vae_forward.3} parent=47 // pred_check_branch
          %658 = sbr.rel (%p656) target = $region52
        $region51: #{vae_forward.3} parent=47 // pred_region
          %s659 = smul.u32 3, %s22
          %p660 = scmp.lt.s32.totalorder %s659, 5
          %s661 = scalar_select %p660, %s659, 5
          %s662 = smul.addr %s661, 8
          %s663 = scalar_lea.vmem %s2, %s662
        $region52: #{vae_forward.3} parent=47 // pred_fallthru
          _
      $region48: #{vae_forward.3} parent=5 // pred_fallthru
        _
    $region6: #{vae_forward.3} parent=1 // loop_footer
      %s15 = sadd.s32 1, %s11
    $region7: #{vae_forward.3} parent=1 // loop_footer_branch
      %10 = sbr.rel target = $region3
    $region8: #{vae_forward.3} parent=1 // loop_exit
      _
    %664 = vsyncpa [#allocation4], 1
    %s665 = scalar_lea.sflag [#allocation4], 1
    %666 = vsyncpa %s665, 1

// kernel: vae_forward.5
$region0: #{vae_forward.5}
  #allocation0 [shape = 'u32[]', space=smem, size = 0x4, offset = 0x4, fixed_abs, tag = 'smem constant byte address 0x4 - core index']
  #allocation1 [shape = 'u32[144,128]{1,0:T(1,128)}', space=vmem, size = 0x12000, scoped, tag = 'internal scratch']
  %s0 = inlined_call_operand.vmem [shape: bf16[8,768], index: 0, kind: input, shape index: {}]
  %s1 = inlined_call_operand.vmem [shape: bf16[768,1024], index: 1, kind: input, shape index: {}]
  %s2 = inlined_call_operand.vmem [shape: f32[1,1024], index: 2, kind: input, shape index: {}]
  %s3 = inlined_call_operand.hbm [shape: bf16[8,1024], index: 3, kind: output, shape index: {}]
  %s4 = sld [smem:[#allocation0]]
  $region83: #{vae_forward.5} parent=0
    _
  %s6 = ssub.s32 1, %s4
  %s7 = scalar_select 0, %s6, %s4
  $region1: #{vae_forward.5} parent=0
    #allocation2 [shape = 'u8[786432]{0}', space=vmem, size = 0xc0000, scoped, tag = 'input window, operand 1']
    #allocation3 [shape = 'u8[8192]{0}', space=vmem, size = 0x2000, scoped, tag = 'output window, operand 0']
    #allocation4 [shape = 's32[2]{0}', space=sflag, size = 0x8, scoped, tag = 'scoped memory for vae_forward.5']
    %8 = vsyncpa [#allocation4], 0
    %s9 = scalar_lea.sflag [#allocation4], 1
    %10 = vsyncpa %s9, 0
    loop: start=0, step=1, limit=6
    $region2: #{vae_forward.5} parent=1 // loop_pre_header
      _
    $region3: #{vae_forward.5} parent=1 // loop_header
      %s12 = sphi 0, %s16
      %p13 = scmp.ge.s32.totalorder %s12, 6
      %s20 = sphi 0, %s20
      %s22 = sphi 0, %s20
      %s23 = sphi 0, %s22
      %s37 = sphi 0, %s23
      %s43 = sphi 0, %s45
      %s46 = sphi 0, %s43
      %s47 = sphi 0, %s46
      %s63 = sphi 0, %s47
      %s69 = sphi 0, %s71
      %s72 = sphi 0, %s69
      %s73 = sphi 0, %s72
      %s89 = sphi 0, %s73
      %s95 = sphi 0, %s97
      %s98 = sphi 0, %s95
      %s99 = sphi 0, %s98
      %s115 = sphi 0, %s99
    $region4: #{vae_forward.5} parent=1 // loop_header_branch
      %15 = sbr.rel (%p13) target = $region8
    $region5: #{vae_forward.5} parent=1 // loop_body
      %s17 = ssub.s32 %s12, 1
      %s18 = ssub.s32 %s12, 2
      %s19 = sadd.s32 %s12, 1
      %s21 = sadd.s32 %s20, 1
      %p24 = scmp.eq.s32.totalorder %s12, 3
      %p25 = scmp.ne.s32.totalorder %s20, %s22
      %p26 = scmp.eq.s32.totalorder %s12, 0
      %p27 = por %p25, %p26
      %p28 = scmp.ne.s32.totalorder %s20, %s22
      %p29 = scmp.eq.s32.totalorder %s17, 3
      %p30 = por %p28, %p29
      %p31 = scmp.ne.s32.totalorder %s22, %s23
      %p32 = scmp.eq.s32.totalorder %s17, 0
      %p33 = por %p31, %p32
      %p34 = scmp.ne.s32.totalorder %s22, %s23
      %p35 = scmp.eq.s32.totalorder %s18, 3
      %p36 = por %p34, %p35
      %p38 = scmp.ne.s32.totalorder %s23, %s37
      %p39 = scmp.eq.s32.totalorder %s18, 0
      %p40 = por %p38, %p39
      %s41 = ssub.s32 %s12, %s19
      %p42 = scmp.eq.s32.totalorder %s41, 0
      %s44 = sadd.s32 %s43, 1
      %s45 = scalar_select %p42, %s43, %s44
      %p48 = pneg %p42
      %p49 = scmp.eq.s32.totalorder %s12, 3
      %p50 = por %p48, %p49
      %p51 = scmp.ne.s32.totalorder %s43, %s46
      %p52 = scmp.eq.s32.totalorder %s12, 0
      %p53 = por %p51, %p52
      %p54 = scmp.ne.s32.totalorder %s43, %s46
      %p55 = scmp.eq.s32.totalorder %s17, 3
      %p56 = por %p54, %p55
      %p57 = scmp.ne.s32.totalorder %s46, %s47
      %p58 = scmp.eq.s32.totalorder %s17, 0
      %p59 = por %p57, %p58
      %p60 = scmp.ne.s32.totalorder %s46, %s47
      %p61 = scmp.eq.s32.totalorder %s18, 3
      %p62 = por %p60, %p61
      %p64 = scmp.ne.s32.totalorder %s47, %s63
      %p65 = scmp.eq.s32.totalorder %s18, 0
      %p66 = por %p64, %p65
      %s67 = ssub.s32 %s12, %s19
      %p68 = scmp.eq.s32.totalorder %s67, 0
      %s70 = sadd.s32 %s69, 1
      %s71 = scalar_select %p68, %s69, %s70
      %p74 = pneg %p68
      %p75 = scmp.eq.s32.totalorder %s12, 3
      %p76 = por %p74, %p75
      %p77 = scmp.ne.s32.totalorder %s69, %s72
      %p78 = scmp.eq.s32.totalorder %s12, 0
      %p79 = por %p77, %p78
      %p80 = scmp.ne.s32.totalorder %s69, %s72
      %p81 = scmp.eq.s32.totalorder %s17, 3
      %p82 = por %p80, %p81
      %p83 = scmp.ne.s32.totalorder %s72, %s73
      %p84 = scmp.eq.s32.totalorder %s17, 0
      %p85 = por %p83, %p84
      %p86 = scmp.ne.s32.totalorder %s72, %s73
      %p87 = scmp.eq.s32.totalorder %s18, 3
      %p88 = por %p86, %p87
      %p90 = scmp.ne.s32.totalorder %s73, %s89
      %p91 = scmp.eq.s32.totalorder %s18, 0
      %p92 = por %p90, %p91
      %s93 = ssub.s32 %s12, %s19
      %p94 = scmp.eq.s32.totalorder %s93, 0
      %s96 = sadd.s32 %s95, 1
      %s97 = scalar_select %p94, %s95, %s96
      %p100 = pneg %p94
      %p101 = scmp.eq.s32.totalorder %s12, 3
      %p102 = por %p100, %p101
      %p103 = scmp.ne.s32.totalorder %s95, %s98
      %p104 = scmp.eq.s32.totalorder %s12, 0
      %p105 = por %p103, %p104
      %p106 = scmp.ne.s32.totalorder %s95, %s98
      %p107 = scmp.eq.s32.totalorder %s17, 3
      %p108 = por %p106, %p107
      %p109 = scmp.ne.s32.totalorder %s98, %s99
      %p110 = scmp.eq.s32.totalorder %s17, 0
      %p111 = por %p109, %p110
      %p112 = scmp.ne.s32.totalorder %s98, %s99
      %p113 = scmp.eq.s32.totalorder %s18, 3
      %p114 = por %p112, %p113
      %p116 = scmp.ne.s32.totalorder %s99, %s115
      %p117 = scmp.eq.s32.totalorder %s18, 0
      %p118 = por %p116, %p117
      %p119 = scmp.le.s32.totalorder 1, %s12
      %p120 = scmp.lt.s32.totalorder %s12, 5
      %p121 = pnand %p119, %p120
      %p122 = pneg %p121
      // Predicated region
      $region9: #{vae_forward.5} parent=5 // pred_check
        _
      $region10: #{vae_forward.5} parent=5 // pred_check_branch
        %124 = sbr.rel (%p121) target = $region12
      $region11: #{vae_forward.5} parent=5 // pred_region
        %s125 = ssub.s32 %s12, 1
        // Predicated region
        $region13: #{vae_forward.5} parent=11 // pred_check
          %p126 = pneg %p33
        $region14: #{vae_forward.5} parent=11 // pred_check_branch
          %128 = sbr.rel (%p126) target = $region16
        $region15: #{vae_forward.5} parent=11 // pred_region
          _
        $region16: #{vae_forward.5} parent=11 // pred_fallthru
          _
      $region12: #{vae_forward.5} parent=5 // pred_fallthru
        _
      %p129 = scmp.lt.s32.totalorder %s12, 4
      // Predicated region
      $region17: #{vae_forward.5} parent=5 // pred_check
        %p130 = pneg %p129
      $region18: #{vae_forward.5} parent=5 // pred_check_branch
        %132 = sbr.rel (%p130) target = $region20
      $region19: #{vae_forward.5} parent=5 // pred_region
        // Predicated region
        $region21: #{vae_forward.5} parent=19 // pred_check
          %p133 = pneg %p53
        $region22: #{vae_forward.5} parent=19 // pred_check_branch
          %135 = sbr.rel (%p133) target = $region24
        $region23: #{vae_forward.5} parent=19 // pred_region
          %s136 = sand.u32 %s43, 1
          %s137 = sand.u32 %s43, 1
          %s138 = smul.addr %s137, 768
          %s139 = scalar_lea.vmem [#allocation2], %s138
          %s140 = smul.u32 2, %s12
          %s141 = smul.addr %s140, 4
          %s142 = scalar_lea.vmem %s1, %s141
          // Predicated region
          $region25: #{vae_forward.5} parent=23 // pred_check
            _
          $region26: #{vae_forward.5} parent=23 // pred_check_branch
            %144 = sbr.rel (0) target = $region28
          $region27: #{vae_forward.5} parent=23 // pred_region
            // Predicated region
            $region29: #{vae_forward.5} parent=27 // pred_check
              _
            $region30: #{vae_forward.5} parent=27 // pred_check_branch
              %146 = sbr.rel (0) target = $region32
            $region31: #{vae_forward.5} parent=27 // pred_region
              // Predicated region
              $region44: #{vae_forward.5} parent=31 // pred_check
                _
              $region45: #{vae_forward.5} parent=31 // pred_check_branch
                %351 = sbr.rel (0) target = $region47
              $region46: #{vae_forward.5} parent=31 // pred_region
                loop: start=0, step=1, limit=1
                $region48: #{vae_forward.5} parent=46 // loop_pre_header
                  _
                $region49: #{vae_forward.5} parent=46 // loop_header
                  %s353 = sphi 0, %s357
                  %p354 = scmp.ge.s32.totalorder %s353, 1
                  %s358 = sphi %s142, %s142
                  %s359 = sphi %s139, %s139
                $region50: #{vae_forward.5} parent=46 // loop_header_branch
                  %356 = sbr.rel (%p354) target = $region54
                $region51: #{vae_forward.5} parent=46 // loop_body
                  %v360 = vld [vmem:[%s358] sm:$0xff]
                  %361 = vst [vmem:[%s359] sm:$0xff] %v360
                  %v362 = vld [vmem:[%s358 + $0x20] sm:$0xff]
                  %363 = vst [vmem:[%s359 + $0x8] sm:$0xff] %v362
                  %v364 = vld [vmem:[%s358 + $0x40] sm:$0xff]
                  %365 = vst [vmem:[%s359 + $0x10] sm:$0xff] %v364
                  %v366 = vld [vmem:[%s358 + $0x60] sm:$0xff]
                  %367 = vst [vmem:[%s359 + $0x18] sm:$0xff] %v366
                  %v368 = vld [vmem:[%s358 + $0x80] sm:$0xff]
                  %369 = vst [vmem:[%s359 + $0x20] sm:$0xff] %v368
                  %v370 = vld [vmem:[%s358 + $0xa0] sm:$0xff]
                  %371 = vst [vmem:[%s359 + $0x28] sm:$0xff] %v370
                  %v372 = vld [vmem:[%s358 + $0xc0] sm:$0xff]
                  %373 = vst [vmem:[%s359 + $0x30] sm:$0xff] %v372
                  %v374 = vld [vmem:[%s358 + $0xe0] sm:$0xff]
                  %375 = vst [vmem:[%s359 + $0x38] sm:$0xff] %v374
                  %v376 = vld [vmem:[%s358 + $0x100] sm:$0xff]
                  %377 = vst [vmem:[%s359 + $0x40] sm:$0xff] %v376
                  %v378 = vld [vmem:[%s358 + $0x120] sm:$0xff]
                  %379 = vst [vmem:[%s359 + $0x48] sm:$0xff] %v378
                  %v380 = vld [vmem:[%s358 + $0x140] sm:$0xff]
                  %381 = vst [vmem:[%s359 + $0x50] sm:$0xff] %v380
                  %v382 = vld [vmem:[%s358 + $0x160] sm:$0xff]
                  %383 = vst [vmem:[%s359 + $0x58] sm:$0xff] %v382
                  %v384 = vld [vmem:[%s358 + $0x180] sm:$0xff]
                  %385 = vst [vmem:[%s359 + $0x60] sm:$0xff] %v384
                  %v386 = vld [vmem:[%s358 + $0x1a0] sm:$0xff]
                  %387 = vst [vmem:[%s359 + $0x68] sm:$0xff] %v386
                  %v388 = vld [vmem:[%s358 + $0x1c0] sm:$0xff]
                  %389 = vst [vmem:[%s359 + $0x70] sm:$0xff] %v388
                  %v390 = vld [vmem:[%s358 + $0x1e0] sm:$0xff]
                  %391 = vst [vmem:[%s359 + $0x78] sm:$0xff] %v390
                  %v392 = vld [vmem:[%s358 + $0x200] sm:$0xff]
                  %393 = vst [vmem:[%s359 + $0x80] sm:$0xff] %v392
                  %v394 = vld [vmem:[%s358 + $0x220] sm:$0xff]
                  %395 = vst [vmem:[%s359 + $0x88] sm:$0xff] %v394
                  %v396 = vld [vmem:[%s358 + $0x240] sm:$0xff]
                  %397 = vst [vmem:[%s359 + $0x90] sm:$0xff] %v396
                  %v398 = vld [vmem:[%s358 + $0x260] sm:$0xff]
                  %399 = vst [vmem:[%s359 + $0x98] sm:$0xff] %v398
                  %v400 = vld [vmem:[%s358 + $0x280] sm:$0xff]
                  %401 = vst [vmem:[%s359 + $0xa0] sm:$0xff] %v400
                  %v402 = vld [vmem:[%s358 + $0x2a0] sm:$0xff]
                  %403 = vst [vmem:[%s359 + $0xa8] sm:$0xff] %v402
                  %v404 = vld [vmem:[%s358 + $0x2c0] sm:$0xff]
                  %405 = vst [vmem:[%s359 + $0xb0] sm:$0xff] %v404
                  %v406 = vld [vmem:[%s358 + $0x2e0] sm:$0xff]
                  %407 = vst [vmem:[%s359 + $0xb8] sm:$0xff] %v406
                  %v408 = vld [vmem:[%s358 + $0x300] sm:$0xff]
                  %409 = vst [vmem:[%s359 + $0xc0] sm:$0xff] %v408
                  %v410 = vld [vmem:[%s358 + $0x320] sm:$0xff]
                  %411 = vst [vmem:[%s359 + $0xc8] sm:$0xff] %v410
                  %v412 = vld [vmem:[%s358 + $0x340] sm:$0xff]
                  %413 = vst [vmem:[%s359 + $0xd0] sm:$0xff] %v412
                  %v414 = vld [vmem:[%s358 + $0x360] sm:$0xff]
                  %415 = vst [vmem:[%s359 + $0xd8] sm:$0xff] %v414
                  %v416 = vld [vmem:[%s358 + $0x380] sm:$0xff]
                  %417 = vst [vmem:[%s359 + $0xe0] sm:$0xff] %v416
                  %v418 = vld [vmem:[%s358 + $0x3a0] sm:$0xff]
                  %419 = vst [vmem:[%s359 + $0xe8] sm:$0xff] %v418
                  %v420 = vld [vmem:[%s358 + $0x3c0] sm:$0xff]
                  %421 = vst [vmem:[%s359 + $0xf0] sm:$0xff] %v420
                  %v422 = vld [vmem:[%s358 + $0x3e0] sm:$0xff]
                  %423 = vst [vmem:[%s359 + $0xf8] sm:$0xff] %v422
                  %v424 = vld [vmem:[%s358 + $0x400] sm:$0xff]
                  %425 = vst [vmem:[%s359 + $0x100] sm:$0xff] %v424
                  %v426 = vld [vmem:[%s358 + $0x420] sm:$0xff]
                  %427 = vst [vmem:[%s359 + $0x108] sm:$0xff] %v426
                  %v428 = vld [vmem:[%s358 + $0x440] sm:$0xff]
                  %429 = vst [vmem:[%s359 + $0x110] sm:$0xff] %v428
                  %v430 = vld [vmem:[%s358 + $0x460] sm:$0xff]
                  %431 = vst [vmem:[%s359 + $0x118] sm:$0xff] %v430
                  %v432 = vld [vmem:[%s358 + $0x480] sm:$0xff]
                  %433 = vst [vmem:[%s359 + $0x120] sm:$0xff] %v432
                  %v434 = vld [vmem:[%s358 + $0x4a0] sm:$0xff]
                  %435 = vst [vmem:[%s359 + $0x128] sm:$0xff] %v434
                  %v436 = vld [vmem:[%s358 + $0x4c0] sm:$0xff]
                  %437 = vst [vmem:[%s359 + $0x130] sm:$0xff] %v436
                  %v438 = vld [vmem:[%s358 + $0x4e0] sm:$0xff]
                  %439 = vst [vmem:[%s359 + $0x138] sm:$0xff] %v438
                  %v440 = vld [vmem:[%s358 + $0x500] sm:$0xff]
                  %441 = vst [vmem:[%s359 + $0x140] sm:$0xff] %v440
                  %v442 = vld [vmem:[%s358 + $0x520] sm:$0xff]
                  %443 = vst [vmem:[%s359 + $0x148] sm:$0xff] %v442
                  %v444 = vld [vmem:[%s358 + $0x540] sm:$0xff]
                  %445 = vst [vmem:[%s359 + $0x150] sm:$0xff] %v444
                  %v446 = vld [vmem:[%s358 + $0x560] sm:$0xff]
                  %447 = vst [vmem:[%s359 + $0x158] sm:$0xff] %v446
                  %v448 = vld [vmem:[%s358 + $0x580] sm:$0xff]
                  %449 = vst [vmem:[%s359 + $0x160] sm:$0xff] %v448
                  %v450 = vld [vmem:[%s358 + $0x5a0] sm:$0xff]
                  %451 = vst [vmem:[%s359 + $0x168] sm:$0xff] %v450
                  %v452 = vld [vmem:[%s358 + $0x5c0] sm:$0xff]
                  %453 = vst [vmem:[%s359 + $0x170] sm:$0xff] %v452
                  %v454 = vld [vmem:[%s358 + $0x5e0] sm:$0xff]
                  %455 = vst [vmem:[%s359 + $0x178] sm:$0xff] %v454
                  %v456 = vld [vmem:[%s358 + $0x600] sm:$0xff]
                  %457 = vst [vmem:[%s359 + $0x180] sm:$0xff] %v456
                  %v458 = vld [vmem:[%s358 + $0x620] sm:$0xff]
                  %459 = vst [vmem:[%s359 + $0x188] sm:$0xff] %v458
                  %v460 = vld [vmem:[%s358 + $0x640] sm:$0xff]
                  %461 = vst [vmem:[%s359 + $0x190] sm:$0xff] %v460
                  %v462 = vld [vmem:[%s358 + $0x660] sm:$0xff]
                  %463 = vst [vmem:[%s359 + $0x198] sm:$0xff] %v462
                  %v464 = vld [vmem:[%s358 + $0x680] sm:$0xff]
                  %465 = vst [vmem:[%s359 + $0x1a0] sm:$0xff] %v464
                  %v466 = vld [vmem:[%s358 + $0x6a0] sm:$0xff]
                  %467 = vst [vmem:[%s359 + $0x1a8] sm:$0xff] %v466
                  %v468 = vld [vmem:[%s358 + $0x6c0] sm:$0xff]
                  %469 = vst [vmem:[%s359 + $0x1b0] sm:$0xff] %v468
                  %v470 = vld [vmem:[%s358 + $0x6e0] sm:$0xff]
                  %471 = vst [vmem:[%s359 + $0x1b8] sm:$0xff] %v470
                  %v472 = vld [vmem:[%s358 + $0x700] sm:$0xff]
                  %473 = vst [vmem:[%s359 + $0x1c0] sm:$0xff] %v472
                  %v474 = vld [vmem:[%s358 + $0x720] sm:$0xff]
                  %475 = vst [vmem:[%s359 + $0x1c8] sm:$0xff] %v474
                  %v476 = vld [vmem:[%s358 + $0x740] sm:$0xff]
                  %477 = vst [vmem:[%s359 + $0x1d0] sm:$0xff] %v476
                  %v478 = vld [vmem:[%s358 + $0x760] sm:$0xff]
                  %479 = vst [vmem:[%s359 + $0x1d8] sm:$0xff] %v478
                  %v480 = vld [vmem:[%s358 + $0x780] sm:$0xff]
                  %481 = vst [vmem:[%s359 + $0x1e0] sm:$0xff] %v480
                  %v482 = vld [vmem:[%s358 + $0x7a0] sm:$0xff]
                  %483 = vst [vmem:[%s359 + $0x1e8] sm:$0xff] %v482
                  %v484 = vld [vmem:[%s358 + $0x7c0] sm:$0xff]
                  %485 = vst [vmem:[%s359 + $0x1f0] sm:$0xff] %v484
                  %v486 = vld [vmem:[%s358 + $0x7e0] sm:$0xff]
                  %487 = vst [vmem:[%s359 + $0x1f8] sm:$0xff] %v486
                  %v488 = vld [vmem:[%s358 + $0x800] sm:$0xff]
                  %489 = vst [vmem:[%s359 + $0x200] sm:$0xff] %v488
                  %v490 = vld [vmem:[%s358 + $0x820] sm:$0xff]
                  %491 = vst [vmem:[%s359 + $0x208] sm:$0xff] %v490
                  %v492 = vld [vmem:[%s358 + $0x840] sm:$0xff]
                  %493 = vst [vmem:[%s359 + $0x210] sm:$0xff] %v492
                  %v494 = vld [vmem:[%s358 + $0x860] sm:$0xff]
                  %495 = vst [vmem:[%s359 + $0x218] sm:$0xff] %v494
                  %v496 = vld [vmem:[%s358 + $0x880] sm:$0xff]
                  %497 = vst [vmem:[%s359 + $0x220] sm:$0xff] %v496
                  %v498 = vld [vmem:[%s358 + $0x8a0] sm:$0xff]
                  %499 = vst [vmem:[%s359 + $0x228] sm:$0xff] %v498
                  %v500 = vld [vmem:[%s358 + $0x8c0] sm:$0xff]
                  %501 = vst [vmem:[%s359 + $0x230] sm:$0xff] %v500
                  %v502 = vld [vmem:[%s358 + $0x8e0] sm:$0xff]
                  %503 = vst [vmem:[%s359 + $0x238] sm:$0xff] %v502
                  %v504 = vld [vmem:[%s358 + $0x900] sm:$0xff]
                  %505 = vst [vmem:[%s359 + $0x240] sm:$0xff] %v504
                  %v506 = vld [vmem:[%s358 + $0x920] sm:$0xff]
                  %507 = vst [vmem:[%s359 + $0x248] sm:$0xff] %v506
                  %v508 = vld [vmem:[%s358 + $0x940] sm:$0xff]
                  %509 = vst [vmem:[%s359 + $0x250] sm:$0xff] %v508
                  %v510 = vld [vmem:[%s358 + $0x960] sm:$0xff]
                  %511 = vst [vmem:[%s359 + $0x258] sm:$0xff] %v510
                  %v512 = vld [vmem:[%s358 + $0x980] sm:$0xff]
                  %513 = vst [vmem:[%s359 + $0x260] sm:$0xff] %v512
                  %v514 = vld [vmem:[%s358 + $0x9a0] sm:$0xff]
                  %515 = vst [vmem:[%s359 + $0x268] sm:$0xff] %v514
                  %v516 = vld [vmem:[%s358 + $0x9c0] sm:$0xff]
                  %517 = vst [vmem:[%s359 + $0x270] sm:$0xff] %v516
                  %v518 = vld [vmem:[%s358 + $0x9e0] sm:$0xff]
                  %519 = vst [vmem:[%s359 + $0x278] sm:$0xff] %v518
                  %v520 = vld [vmem:[%s358 + $0xa00] sm:$0xff]
                  %521 = vst [vmem:[%s359 + $0x280] sm:$0xff] %v520
                  %v522 = vld [vmem:[%s358 + $0xa20] sm:$0xff]
                  %523 = vst [vmem:[%s359 + $0x288] sm:$0xff] %v522
                  %v524 = vld [vmem:[%s358 + $0xa40] sm:$0xff]
                  %525 = vst [vmem:[%s359 + $0x290] sm:$0xff] %v524
                  %v526 = vld [vmem:[%s358 + $0xa60] sm:$0xff]
                  %527 = vst [vmem:[%s359 + $0x298] sm:$0xff] %v526
                  %v528 = vld [vmem:[%s358 + $0xa80] sm:$0xff]
                  %529 = vst [vmem:[%s359 + $0x2a0] sm:$0xff] %v528
                  %v530 = vld [vmem:[%s358 + $0xaa0] sm:$0xff]
                  %531 = vst [vmem:[%s359 + $0x2a8] sm:$0xff] %v530
                  %v532 = vld [vmem:[%s358 + $0xac0] sm:$0xff]
                  %533 = vst [vmem:[%s359 + $0x2b0] sm:$0xff] %v532
                  %v534 = vld [vmem:[%s358 + $0xae0] sm:$0xff]
                  %535 = vst [vmem:[%s359 + $0x2b8] sm:$0xff] %v534
                  %v536 = vld [vmem:[%s358 + $0xb00] sm:$0xff]
                  %537 = vst [vmem:[%s359 + $0x2c0] sm:$0xff] %v536
                  %v538 = vld [vmem:[%s358 + $0xb20] sm:$0xff]
                  %539 = vst [vmem:[%s359 + $0x2c8] sm:$0xff] %v538
                  %v540 = vld [vmem:[%s358 + $0xb40] sm:$0xff]
                  %541 = vst [vmem:[%s359 + $0x2d0] sm:$0xff] %v540
                  %v542 = vld [vmem:[%s358 + $0xb60] sm:$0xff]
                  %543 = vst [vmem:[%s359 + $0x2d8] sm:$0xff] %v542
                  %v544 = vld [vmem:[%s358 + $0xb80] sm:$0xff]
                  %545 = vst [vmem:[%s359 + $0x2e0] sm:$0xff] %v544
                  %v546 = vld [vmem:[%s358 + $0xba0] sm:$0xff]
                  %547 = vst [vmem:[%s359 + $0x2e8] sm:$0xff] %v546
                  %v548 = vld [vmem:[%s358 + $0xbc0] sm:$0xff]
                  %549 = vst [vmem:[%s359 + $0x2f0] sm:$0xff] %v548
                  %v550 = vld [vmem:[%s358 + $0xbe0] sm:$0xff]
                  %551 = vst [vmem:[%s359 + $0x2f8] sm:$0xff] %v550
                $region52: #{vae_forward.5} parent=46 // loop_footer
                  %s357 = sadd.s32 1, %s353
                $region53: #{vae_forward.5} parent=46 // loop_footer_branch
                  %352 = sbr.rel target = $region49
                $region54: #{vae_forward.5} parent=46 // loop_exit
                  _
              $region47: #{vae_forward.5} parent=31 // pred_fallthru
                _
              // Predicated region
              $region55: #{vae_forward.5} parent=31 // pred_check
                _
              $region56: #{vae_forward.5} parent=31 // pred_check_branch
                %553 = sbr.rel target = $region58
              $region57: #{vae_forward.5} parent=31 // pred_region
                _
              $region58: #{vae_forward.5} parent=31 // pred_fallthru
                _
            $region32: #{vae_forward.5} parent=27 // pred_fallthru
              _
            // Predicated region
            $region33: #{vae_forward.5} parent=27 // pred_check
              _
            $region34: #{vae_forward.5} parent=27 // pred_check_branch
              %148 = sbr.rel target = $region36
            $region35: #{vae_forward.5} parent=27 // pred_region
              loop: start=0, step=1, limit=1
              $region37: #{vae_forward.5} parent=35 // loop_pre_header
                _
              $region38: #{vae_forward.5} parent=35 // loop_header
                %s151 = sphi 0, %s155
                %p152 = scmp.ge.s32.totalorder %s151, 1
                %s156 = sphi %s142, %s142
                %s157 = sphi %s139, %s139
              $region39: #{vae_forward.5} parent=35 // loop_header_branch
                %154 = sbr.rel (%p152) target = $region43
              $region40: #{vae_forward.5} parent=35 // loop_body
                %v158 = vld [vmem:[%s156] sm:$0xff]
                %159 = vst [vmem:[%s157] sm:$0xff] %v158
                %v160 = vld [vmem:[%s156 + $0x20] sm:$0xff]
                %161 = vst [vmem:[%s157 + $0x8] sm:$0xff] %v160
                %v162 = vld [vmem:[%s156 + $0x40] sm:$0xff]
                %163 = vst [vmem:[%s157 + $0x10] sm:$0xff] %v162
                %v164 = vld [vmem:[%s156 + $0x60] sm:$0xff]
                %165 = vst [vmem:[%s157 + $0x18] sm:$0xff] %v164
                %v166 = vld [vmem:[%s156 + $0x80] sm:$0xff]
                %167 = vst [vmem:[%s157 + $0x20] sm:$0xff] %v166
                %v168 = vld [vmem:[%s156 + $0xa0] sm:$0xff]
                %169 = vst [vmem:[%s157 + $0x28] sm:$0xff] %v168
                %v170 = vld [vmem:[%s156 + $0xc0] sm:$0xff]
                %171 = vst [vmem:[%s157 + $0x30] sm:$0xff] %v170
                %v172 = vld [vmem:[%s156 + $0xe0] sm:$0xff]
                %173 = vst [vmem:[%s157 + $0x38] sm:$0xff] %v172
                %v174 = vld [vmem:[%s156 + $0x100] sm:$0xff]
                %175 = vst [vmem:[%s157 + $0x40] sm:$0xff] %v174
                %v176 = vld [vmem:[%s156 + $0x120] sm:$0xff]
                %177 = vst [vmem:[%s157 + $0x48] sm:$0xff] %v176
                %v178 = vld [vmem:[%s156 + $0x140] sm:$0xff]
                %179 = vst [vmem:[%s157 + $0x50] sm:$0xff] %v178
                %v180 = vld [vmem:[%s156 + $0x160] sm:$0xff]
                %181 = vst [vmem:[%s157 + $0x58] sm:$0xff] %v180
                %v182 = vld [vmem:[%s156 + $0x180] sm:$0xff]
                %183 = vst [vmem:[%s157 + $0x60] sm:$0xff] %v182
                %v184 = vld [vmem:[%s156 + $0x1a0] sm:$0xff]
                %185 = vst [vmem:[%s157 + $0x68] sm:$0xff] %v184
                %v186 = vld [vmem:[%s156 + $0x1c0] sm:$0xff]
                %187 = vst [vmem:[%s157 + $0x70] sm:$0xff] %v186
                %v188 = vld [vmem:[%s156 + $0x1e0] sm:$0xff]
                %189 = vst [vmem:[%s157 + $0x78] sm:$0xff] %v188
                %v190 = vld [vmem:[%s156 + $0x200] sm:$0xff]
                %191 = vst [vmem:[%s157 + $0x80] sm:$0xff] %v190
                %v192 = vld [vmem:[%s156 + $0x220] sm:$0xff]
                %193 = vst [vmem:[%s157 + $0x88] sm:$0xff] %v192
                %v194 = vld [vmem:[%s156 + $0x240] sm:$0xff]
                %195 = vst [vmem:[%s157 + $0x90] sm:$0xff] %v194
                %v196 = vld [vmem:[%s156 + $0x260] sm:$0xff]
                %197 = vst [vmem:[%s157 + $0x98] sm:$0xff] %v196
                %v198 = vld [vmem:[%s156 + $0x280] sm:$0xff]
                %199 = vst [vmem:[%s157 + $0xa0] sm:$0xff] %v198
                %v200 = vld [vmem:[%s156 + $0x2a0] sm:$0xff]
                %201 = vst [vmem:[%s157 + $0xa8] sm:$0xff] %v200
                %v202 = vld [vmem:[%s156 + $0x2c0] sm:$0xff]
                %203 = vst [vmem:[%s157 + $0xb0] sm:$0xff] %v202
                %v204 = vld [vmem:[%s156 + $0x2e0] sm:$0xff]
                %205 = vst [vmem:[%s157 + $0xb8] sm:$0xff] %v204
                %v206 = vld [vmem:[%s156 + $0x300] sm:$0xff]
                %207 = vst [vmem:[%s157 + $0xc0] sm:$0xff] %v206
                %v208 = vld [vmem:[%s156 + $0x320] sm:$0xff]
                %209 = vst [vmem:[%s157 + $0xc8] sm:$0xff] %v208
                %v210 = vld [vmem:[%s156 + $0x340] sm:$0xff]
                %211 = vst [vmem:[%s157 + $0xd0] sm:$0xff] %v210
                %v212 = vld [vmem:[%s156 + $0x360] sm:$0xff]
                %213 = vst [vmem:[%s157 + $0xd8] sm:$0xff] %v212
                %v214 = vld [vmem:[%s156 + $0x380] sm:$0xff]
                %215 = vst [vmem:[%s157 + $0xe0] sm:$0xff] %v214
                %v216 = vld [vmem:[%s156 + $0x3a0] sm:$0xff]
                %217 = vst [vmem:[%s157 + $0xe8] sm:$0xff] %v216
                %v218 = vld [vmem:[%s156 + $0x3c0] sm:$0xff]
                %219 = vst [vmem:[%s157 + $0xf0] sm:$0xff] %v218
                %v220 = vld [vmem:[%s156 + $0x3e0] sm:$0xff]
                %221 = vst [vmem:[%s157 + $0xf8] sm:$0xff] %v220
                %v222 = vld [vmem:[%s156 + $0x400] sm:$0xff]
                %223 = vst [vmem:[%s157 + $0x100] sm:$0xff] %v222
                %v224 = vld [vmem:[%s156 + $0x420] sm:$0xff]
                %225 = vst [vmem:[%s157 + $0x108] sm:$0xff] %v224
                %v226 = vld [vmem:[%s156 + $0x440] sm:$0xff]
                %227 = vst [vmem:[%s157 + $0x110] sm:$0xff] %v226
                %v228 = vld [vmem:[%s156 + $0x460] sm:$0xff]
                %229 = vst [vmem:[%s157 + $0x118] sm:$0xff] %v228
                %v230 = vld [vmem:[%s156 + $0x480] sm:$0xff]
                %231 = vst [vmem:[%s157 + $0x120] sm:$0xff] %v230
                %v232 = vld [vmem:[%s156 + $0x4a0] sm:$0xff]
                %233 = vst [vmem:[%s157 + $0x128] sm:$0xff] %v232
                %v234 = vld [vmem:[%s156 + $0x4c0] sm:$0xff]
                %235 = vst [vmem:[%s157 + $0x130] sm:$0xff] %v234
                %v236 = vld [vmem:[%s156 + $0x4e0] sm:$0xff]
                %237 = vst [vmem:[%s157 + $0x138] sm:$0xff] %v236
                %v238 = vld [vmem:[%s156 + $0x500] sm:$0xff]
                %239 = vst [vmem:[%s157 + $0x140] sm:$0xff] %v238
                %v240 = vld [vmem:[%s156 + $0x520] sm:$0xff]
                %241 = vst [vmem:[%s157 + $0x148] sm:$0xff] %v240
                %v242 = vld [vmem:[%s156 + $0x540] sm:$0xff]
                %243 = vst [vmem:[%s157 + $0x150] sm:$0xff] %v242
                %v244 = vld [vmem:[%s156 + $0x560] sm:$0xff]
                %245 = vst [vmem:[%s157 + $0x158] sm:$0xff] %v244
                %v246 = vld [vmem:[%s156 + $0x580] sm:$0xff]
                %247 = vst [vmem:[%s157 + $0x160] sm:$0xff] %v246
                %v248 = vld [vmem:[%s156 + $0x5a0] sm:$0xff]
                %249 = vst [vmem:[%s157 + $0x168] sm:$0xff] %v248
                %v250 = vld [vmem:[%s156 + $0x5c0] sm:$0xff]
                %251 = vst [vmem:[%s157 + $0x170] sm:$0xff] %v250
                %v252 = vld [vmem:[%s156 + $0x5e0] sm:$0xff]
                %253 = vst [vmem:[%s157 + $0x178] sm:$0xff] %v252
                %v254 = vld [vmem:[%s156 + $0x600] sm:$0xff]
                %255 = vst [vmem:[%s157 + $0x180] sm:$0xff] %v254
                %v256 = vld [vmem:[%s156 + $0x620] sm:$0xff]
                %257 = vst [vmem:[%s157 + $0x188] sm:$0xff] %v256
                %v258 = vld [vmem:[%s156 + $0x640] sm:$0xff]
                %259 = vst [vmem:[%s157 + $0x190] sm:$0xff] %v258
                %v260 = vld [vmem:[%s156 + $0x660] sm:$0xff]
                %261 = vst [vmem:[%s157 + $0x198] sm:$0xff] %v260
                %v262 = vld [vmem:[%s156 + $0x680] sm:$0xff]
                %263 = vst [vmem:[%s157 + $0x1a0] sm:$0xff] %v262
                %v264 = vld [vmem:[%s156 + $0x6a0] sm:$0xff]
                %265 = vst [vmem:[%s157 + $0x1a8] sm:$0xff] %v264
                %v266 = vld [vmem:[%s156 + $0x6c0] sm:$0xff]
                %267 = vst [vmem:[%s157 + $0x1b0] sm:$0xff] %v266
                %v268 = vld [vmem:[%s156 + $0x6e0] sm:$0xff]
                %269 = vst [vmem:[%s157 + $0x1b8] sm:$0xff] %v268
                %v270 = vld [vmem:[%s156 + $0x700] sm:$0xff]
                %271 = vst [vmem:[%s157 + $0x1c0] sm:$0xff] %v270
                %v272 = vld [vmem:[%s156 + $0x720] sm:$0xff]
                %273 = vst [vmem:[%s157 + $0x1c8] sm:$0xff] %v272
                %v274 = vld [vmem:[%s156 + $0x740] sm:$0xff]
                %275 = vst [vmem:[%s157 + $0x1d0] sm:$0xff] %v274
                %v276 = vld [vmem:[%s156 + $0x760] sm:$0xff]
                %277 = vst [vmem:[%s157 + $0x1d8] sm:$0xff] %v276
                %v278 = vld [vmem:[%s156 + $0x780] sm:$0xff]
                %279 = vst [vmem:[%s157 + $0x1e0] sm:$0xff] %v278
                %v280 = vld [vmem:[%s156 + $0x7a0] sm:$0xff]
                %281 = vst [vmem:[%s157 + $0x1e8] sm:$0xff] %v280
                %v282 = vld [vmem:[%s156 + $0x7c0] sm:$0xff]
                %283 = vst [vmem:[%s157 + $0x1f0] sm:$0xff] %v282
                %v284 = vld [vmem:[%s156 + $0x7e0] sm:$0xff]
                %285 = vst [vmem:[%s157 + $0x1f8] sm:$0xff] %v284
                %v286 = vld [vmem:[%s156 + $0x800] sm:$0xff]
                %287 = vst [vmem:[%s157 + $0x200] sm:$0xff] %v286
                %v288 = vld [vmem:[%s156 + $0x820] sm:$0xff]
                %289 = vst [vmem:[%s157 + $0x208] sm:$0xff] %v288
                %v290 = vld [vmem:[%s156 + $0x840] sm:$0xff]
                %291 = vst [vmem:[%s157 + $0x210] sm:$0xff] %v290
                %v292 = vld [vmem:[%s156 + $0x860] sm:$0xff]
                %293 = vst [vmem:[%s157 + $0x218] sm:$0xff] %v292
                %v294 = vld [vmem:[%s156 + $0x880] sm:$0xff]
                %295 = vst [vmem:[%s157 + $0x220] sm:$0xff] %v294
                %v296 = vld [vmem:[%s156 + $0x8a0] sm:$0xff]
                %297 = vst [vmem:[%s157 + $0x228] sm:$0xff] %v296
                %v298 = vld [vmem:[%s156 + $0x8c0] sm:$0xff]
                %299 = vst [vmem:[%s157 + $0x230] sm:$0xff] %v298
                %v300 = vld [vmem:[%s156 + $0x8e0] sm:$0xff]
                %301 = vst [vmem:[%s157 + $0x238] sm:$0xff] %v300
                %v302 = vld [vmem:[%s156 + $0x900] sm:$0xff]
                %303 = vst [vmem:[%s157 + $0x240] sm:$0xff] %v302
                %v304 = vld [vmem:[%s156 + $0x920] sm:$0xff]
                %305 = vst [vmem:[%s157 + $0x248] sm:$0xff] %v304
                %v306 = vld [vmem:[%s156 + $0x940] sm:$0xff]
                %307 = vst [vmem:[%s157 + $0x250] sm:$0xff] %v306
                %v308 = vld [vmem:[%s156 + $0x960] sm:$0xff]
                %309 = vst [vmem:[%s157 + $0x258] sm:$0xff] %v308
                %v310 = vld [vmem:[%s156 + $0x980] sm:$0xff]
                %311 = vst [vmem:[%s157 + $0x260] sm:$0xff] %v310
                %v312 = vld [vmem:[%s156 + $0x9a0] sm:$0xff]
                %313 = vst [vmem:[%s157 + $0x268] sm:$0xff] %v312
                %v314 = vld [vmem:[%s156 + $0x9c0] sm:$0xff]
                %315 = vst [vmem:[%s157 + $0x270] sm:$0xff] %v314
                %v316 = vld [vmem:[%s156 + $0x9e0] sm:$0xff]
                %317 = vst [vmem:[%s157 + $0x278] sm:$0xff] %v316
                %v318 = vld [vmem:[%s156 + $0xa00] sm:$0xff]
                %319 = vst [vmem:[%s157 + $0x280] sm:$0xff] %v318
                %v320 = vld [vmem:[%s156 + $0xa20] sm:$0xff]
                %321 = vst [vmem:[%s157 + $0x288] sm:$0xff] %v320
                %v322 = vld [vmem:[%s156 + $0xa40] sm:$0xff]
                %323 = vst [vmem:[%s157 + $0x290] sm:$0xff] %v322
                %v324 = vld [vmem:[%s156 + $0xa60] sm:$0xff]
                %325 = vst [vmem:[%s157 + $0x298] sm:$0xff] %v324
                %v326 = vld [vmem:[%s156 + $0xa80] sm:$0xff]
                %327 = vst [vmem:[%s157 + $0x2a0] sm:$0xff] %v326
                %v328 = vld [vmem:[%s156 + $0xaa0] sm:$0xff]
                %329 = vst [vmem:[%s157 + $0x2a8] sm:$0xff] %v328
                %v330 = vld [vmem:[%s156 + $0xac0] sm:$0xff]
                %331 = vst [vmem:[%s157 + $0x2b0] sm:$0xff] %v330
                %v332 = vld [vmem:[%s156 + $0xae0] sm:$0xff]
                %333 = vst [vmem:[%s157 + $0x2b8] sm:$0xff] %v332
                %v334 = vld [vmem:[%s156 + $0xb00] sm:$0xff]
                %335 = vst [vmem:[%s157 + $0x2c0] sm:$0xff] %v334
                %v336 = vld [vmem:[%s156 + $0xb20] sm:$0xff]
                %337 = vst [vmem:[%s157 + $0x2c8] sm:$0xff] %v336
                %v338 = vld [vmem:[%s156 + $0xb40] sm:$0xff]
                %339 = vst [vmem:[%s157 + $0x2d0] sm:$0xff] %v338
                %v340 = vld [vmem:[%s156 + $0xb60] sm:$0xff]
                %341 = vst [vmem:[%s157 + $0x2d8] sm:$0xff] %v340
                %v342 = vld [vmem:[%s156 + $0xb80] sm:$0xff]
                %343 = vst [vmem:[%s157 + $0x2e0] sm:$0xff] %v342
                %v344 = vld [vmem:[%s156 + $0xba0] sm:$0xff]
                %345 = vst [vmem:[%s157 + $0x2e8] sm:$0xff] %v344
                %v346 = vld [vmem:[%s156 + $0xbc0] sm:$0xff]
                %347 = vst [vmem:[%s157 + $0x2f0] sm:$0xff] %v346
                %v348 = vld [vmem:[%s156 + $0xbe0] sm:$0xff]
                %349 = vst [vmem:[%s157 + $0x2f8] sm:$0xff] %v348
              $region41: #{vae_forward.5} parent=35 // loop_footer
                %s155 = sadd.s32 1, %s151
              $region42: #{vae_forward.5} parent=35 // loop_footer_branch
                %150 = sbr.rel target = $region38
              $region43: #{vae_forward.5} parent=35 // loop_exit
                _
            $region36: #{vae_forward.5} parent=27 // pred_fallthru
              _
          $region28: #{vae_forward.5} parent=23 // pred_fallthru
            _
          %554 = vnop
        $region24: #{vae_forward.5} parent=19 // pred_fallthru
          _
        // Predicated region
        $region59: #{vae_forward.5} parent=19 // pred_check
          %p555 = pneg %p79
        $region60: #{vae_forward.5} parent=19 // pred_check_branch
          %557 = sbr.rel (%p555) target = $region62
        $region61: #{vae_forward.5} parent=19 // pred_region
          %s558 = smul.u32 2, %s12
          %p559 = scmp.lt.s32.totalorder %s558, 7
          %s560 = scalar_select %p559, %s558, 7
          %s561 = scalar_lea.vmem %s2, %s560
          %s562 = smul.u32 2, %s12
        $region62: #{vae_forward.5} parent=19 // pred_fallthru
          _
      $region20: #{vae_forward.5} parent=5 // pred_fallthru
        _
      %p563 = scmp.le.s32.totalorder 1, %s12
      %p564 = scmp.lt.s32.totalorder %s12, 5
      %p565 = pnand %p563, %p564
      %p566 = pneg %p565
      // Predicated region
      $region63: #{vae_forward.5} parent=5 // pred_check
        _
      $region64: #{vae_forward.5} parent=5 // pred_check_branch
        %568 = sbr.rel (%p565) target = $region66
      $region65: #{vae_forward.5} parent=5 // pred_region
        %s569 = ssub.s32 %s12, 1
        %s570 = sand.u32 %s46, 1
        %s571 = sand.u32 %s46, 1
        %s572 = smul.addr %s571, 768
        %s573 = scalar_lea.vmem [#allocation2], %s572
        // Predicated region
        $region67: #{vae_forward.5} parent=65 // pred_check
          %p574 = pneg %p59
        $region68: #{vae_forward.5} parent=65 // pred_check_branch
          %576 = sbr.rel (%p574) target = $region70
        $region69: #{vae_forward.5} parent=65 // pred_region
          _
        $region70: #{vae_forward.5} parent=65 // pred_fallthru
          _
        %p577 = pneg %p33
        %p578 = pneg %p30
        %s579 = sand.u32 %s46, 1
        %s580 = sand.u32 %s46, 1
        %s581 = smul.addr %s580, 768
        %s582 = scalar_lea.vmem [#allocation2], %s581
        %p583 = pneg %p59
        %p584 = pneg %p56
        %s585 = smul.u32 2, %s17
        %p586 = scmp.lt.s32.totalorder %s585, 7
        %s587 = scalar_select %p586, %s585, 7
        %s588 = scalar_lea.vmem %s2, %s587
        %p589 = pneg %p85
        %p590 = pneg %p82
        %p591 = pneg %p111
        %p592 = pneg %p108
        %s593 = sand.u32 %s98, 1
        %s594 = scalar_lea.sflag [#allocation4], %s593
        %s595 = sand.u32 %s98, 1
        %s596 = smul.addr %s595, 8
        %s597 = scalar_lea.vmem [#allocation3], %s596
        %s598 = smul.u32 2, %s17
        %s599 = smul.u32 2, %s17
        %p600 = scmp.lt.s32.totalorder %s599, 7
        %s601 = scalar_select %p600, %s599, 7
        %s602 = scalar_lea.vmem %s2, %s601
        %s603 = smul.u32 2, %s17
        %s604 = smul.u32 2, %s17
        %v605 = vld [vmem:[%s0] sm:$0xff]
        %v606 = vld [vmem:[%s0 + $0x8] sm:$0xff]
        %v607 = vld [vmem:[%s0 + $0x10] sm:$0xff]
        %v608 = vld [vmem:[%s573] sm:$0xff]
        %v609 = vld [vmem:[%s573 + $0x8] sm:$0xff]
        %v610 = vld [vmem:[%s573 + $0x10] sm:$0xff]
        %v611 = vld [vmem:[%s573 + $0x18] sm:$0xff]
        %v612 = vld [vmem:[%s573 + $0x20] sm:$0xff]
        %v613 = vld [vmem:[%s573 + $0x28] sm:$0xff]
        %v614 = vld [vmem:[%s573 + $0x30] sm:$0xff]
        %v615 = vld [vmem:[%s573 + $0x38] sm:$0xff]
        %v616 = vld [vmem:[%s573 + $0x40] sm:$0xff]
        %v617 = vld [vmem:[%s573 + $0x48] sm:$0xff]
        %v618 = vld [vmem:[%s573 + $0x50] sm:$0xff]
        %v619 = vld [vmem:[%s573 + $0x58] sm:$0xff]
        %v620 = vld [vmem:[%s573 + $0x60] sm:$0xff]
        %v621 = vld [vmem:[%s573 + $0x68] sm:$0xff]
        %v622 = vld [vmem:[%s573 + $0x70] sm:$0xff]
        %v623 = vld [vmem:[%s573 + $0x78] sm:$0xff]
        %v624 = vld [vmem:[%s573 + $0x80] sm:$0xff]
        %v625 = vld [vmem:[%s573 + $0x88] sm:$0xff]
        %v626 = vld [vmem:[%s573 + $0x90] sm:$0xff]
        %v627 = vld [vmem:[%s573 + $0x98] sm:$0xff]
        %v628 = vld [vmem:[%s573 + $0xa0] sm:$0xff]
        %v629 = vld [vmem:[%s573 + $0xa8] sm:$0xff]
        %v630 = vld [vmem:[%s573 + $0xb0] sm:$0xff]
        %v631 = vld [vmem:[%s573 + $0xb8] sm:$0xff]
        %v632 = vld [vmem:[%s573 + $0xc0] sm:$0xff]
        %v633 = vld [vmem:[%s573 + $0xc8] sm:$0xff]
        %v634 = vld [vmem:[%s573 + $0xd0] sm:$0xff]
        %v635 = vld [vmem:[%s573 + $0xd8] sm:$0xff]
        %v636 = vld [vmem:[%s573 + $0xe0] sm:$0xff]
        %v637 = vld [vmem:[%s573 + $0xe8] sm:$0xff]
        %v638 = vld [vmem:[%s573 + $0xf0] sm:$0xff]
        %v639 = vld [vmem:[%s573 + $0xf8] sm:$0xff]
        %v640 = vld [vmem:[%s573 + $0x100] sm:$0xff]
        %v641 = vld [vmem:[%s573 + $0x108] sm:$0xff]
        %v642 = vld [vmem:[%s573 + $0x110] sm:$0xff]
        %v643 = vld [vmem:[%s573 + $0x118] sm:$0xff]
        %v644 = vld [vmem:[%s573 + $0x120] sm:$0xff]
        %v645 = vld [vmem:[%s573 + $0x128] sm:$0xff]
        %v646 = vld [vmem:[%s573 + $0x130] sm:$0xff]
        %v647 = vld [vmem:[%s573 + $0x138] sm:$0xff]
        %v648 = vld [vmem:[%s573 + $0x140] sm:$0xff]
        %v649 = vld [vmem:[%s573 + $0x148] sm:$0xff]
        %v650 = vld [vmem:[%s573 + $0x150] sm:$0xff]
        %v651 = vld [vmem:[%s573 + $0x158] sm:$0xff]
        %v652 = vld [vmem:[%s573 + $0x160] sm:$0xff]
        %v653 = vld [vmem:[%s573 + $0x168] sm:$0xff]
        %v654 = vld [vmem:[%s573 + $0x170] sm:$0xff]
        %v655 = vld [vmem:[%s573 + $0x178] sm:$0xff]
        %v656 = vld [vmem:[%s573 + $0x180] sm:$0xff]
        %v657 = vld [vmem:[%s573 + $0x188] sm:$0xff]
        %v658 = vld [vmem:[%s573 + $0x190] sm:$0xff]
        %v659 = vld [vmem:[%s573 + $0x198] sm:$0xff]
        %v660 = vld [vmem:[%s573 + $0x1a0] sm:$0xff]
        %v661 = vld [vmem:[%s573 + $0x1a8] sm:$0xff]
        %v662 = vld [vmem:[%s573 + $0x1b0] sm:$0xff]
        %v663 = vld [vmem:[%s573 + $0x1b8] sm:$0xff]
        %v664 = vld [vmem:[%s573 + $0x1c0] sm:$0xff]
        %v665 = vld [vmem:[%s573 + $0x1c8] sm:$0xff]
        %v666 = vld [vmem:[%s573 + $0x1d0] sm:$0xff]
        %v667 = vld [vmem:[%s573 + $0x1d8] sm:$0xff]
        %v668 = vld [vmem:[%s573 + $0x1e0] sm:$0xff]
        %v669 = vld [vmem:[%s573 + $0x1e8] sm:$0xff]
        %v670 = vld [vmem:[%s573 + $0x1f0] sm:$0xff]
        %v671 = vld [vmem:[%s573 + $0x1f8] sm:$0xff]
        %v672 = vld [vmem:[%s573 + $0x200] sm:$0xff]
        %v673 = vld [vmem:[%s573 + $0x208] sm:$0xff]
        %v674 = vld [vmem:[%s573 + $0x210] sm:$0xff]
        %v675 = vld [vmem:[%s573 + $0x218] sm:$0xff]
        %v676 = vld [vmem:[%s573 + $0x220] sm:$0xff]
        %v677 = vld [vmem:[%s573 + $0x228] sm:$0xff]
        %v678 = vld [vmem:[%s573 + $0x230] sm:$0xff]
        %v679 = vld [vmem:[%s573 + $0x238] sm:$0xff]
        %v680 = vld [vmem:[%s573 + $0x240] sm:$0xff]
        %v681 = vld [vmem:[%s573 + $0x248] sm:$0xff]
        %v682 = vld [vmem:[%s573 + $0x250] sm:$0xff]
        %v683 = vld [vmem:[%s573 + $0x258] sm:$0xff]
        %v684 = vld [vmem:[%s573 + $0x260] sm:$0xff]
        %v685 = vld [vmem:[%s573 + $0x268] sm:$0xff]
        %v686 = vld [vmem:[%s573 + $0x270] sm:$0xff]
        %v687 = vld [vmem:[%s573 + $0x278] sm:$0xff]
        %v688 = vld [vmem:[%s573 + $0x280] sm:$0xff]
        %v689 = vld [vmem:[%s573 + $0x288] sm:$0xff]
        %v690 = vld [vmem:[%s573 + $0x290] sm:$0xff]
        %v691 = vld [vmem:[%s573 + $0x298] sm:$0xff]
        %v692 = vld [vmem:[%s573 + $0x2a0] sm:$0xff]
        %v693 = vld [vmem:[%s573 + $0x2a8] sm:$0xff]
        %v694 = vld [vmem:[%s573 + $0x2b0] sm:$0xff]
        %v695 = vld [vmem:[%s573 + $0x2b8] sm:$0xff]
        %v696 = vld [vmem:[%s573 + $0x2c0] sm:$0xff]
        %v697 = vld [vmem:[%s573 + $0x2c8] sm:$0xff]
        %v698 = vld [vmem:[%s573 + $0x2d0] sm:$0xff]
        %v699 = vld [vmem:[%s573 + $0x2d8] sm:$0xff]
        %v700 = vld [vmem:[%s573 + $0x2e0] sm:$0xff]
        %v701 = vld [vmem:[%s573 + $0x2e8] sm:$0xff]
        %v702 = vld [vmem:[%s573 + $0x2f0] sm:$0xff]
        %v703 = vld [vmem:[%s573 + $0x2f8] sm:$0xff]
        %v704 = vld [vmem:[%s602] sm:$0x3]
        %v706 = vlaneseq
        %v707 = vshrl.u32 %v706, 7
        %v708 = vsub.s32 0, %v707
        %v709 = vrot.slane %v704, %v708
        %v710 = vlaneseq
        %v711 = vshrl.u32 %v710, 7
        %v712 = vsub.s32 1, %v711
        %v713 = vrot.slane %v704, %v712
        %v719 = vunpack.c.l.b16 %v605
        %v720 = vunpack.c.h.b16 %v605
        %v721 = vunpack.c.l.b16 %v606
        %v722 = vunpack.c.h.b16 %v606
        %v723 = vunpack.c.l.b16 %v607
        %v724 = vunpack.c.h.b16 %v607
        %v725 = vpack.c.b16 %v719, %v719
        %v726 = vpack.c.b16 %v720, %v720
        %v727 = vpack.c.b16 %v721, %v721
        %v728 = vpack.c.b16 %v722, %v722
        %v729 = vpack.c.b16 %v723, %v723
        %v730 = vpack.c.b16 %v724, %v724
        %v833 = vunpack.c.l.b16 %v608
        %v834 = vunpack.c.h.b16 %v608
        %v835 = vunpack.c.l.b16 %v609
        %v836 = vunpack.c.h.b16 %v609
        %v837 = vunpack.c.l.b16 %v610
        %v838 = vunpack.c.h.b16 %v610
        %v839 = vunpack.c.l.b16 %v611
        %v840 = vunpack.c.h.b16 %v611
        %v841 = vunpack.c.l.b16 %v612
        %v842 = vunpack.c.h.b16 %v612
        %v843 = vunpack.c.l.b16 %v613
        %v844 = vunpack.c.h.b16 %v613
        %v845 = vunpack.c.l.b16 %v614
        %v846 = vunpack.c.h.b16 %v614
        %v847 = vunpack.c.l.b16 %v615
        %v848 = vunpack.c.h.b16 %v615
        %v849 = vunpack.c.l.b16 %v616
        %v850 = vunpack.c.h.b16 %v616
        %v851 = vunpack.c.l.b16 %v617
        %v852 = vunpack.c.h.b16 %v617
        %v853 = vunpack.c.l.b16 %v618
        %v854 = vunpack.c.h.b16 %v618
        %v855 = vunpack.c.l.b16 %v619
        %v856 = vunpack.c.h.b16 %v619
        %v857 = vunpack.c.l.b16 %v620
        %v858 = vunpack.c.h.b16 %v620
        %v859 = vunpack.c.l.b16 %v621
        %v860 = vunpack.c.h.b16 %v621
        %v861 = vunpack.c.l.b16 %v622
        %v862 = vunpack.c.h.b16 %v622
        %v863 = vunpack.c.l.b16 %v623
        %v864 = vunpack.c.h.b16 %v623
        %v865 = vunpack.c.l.b16 %v624
        %v866 = vunpack.c.h.b16 %v624
        %v867 = vunpack.c.l.b16 %v625
        %v868 = vunpack.c.h.b16 %v625
        %v869 = vunpack.c.l.b16 %v626
        %v870 = vunpack.c.h.b16 %v626
        %v871 = vunpack.c.l.b16 %v627
        %v872 = vunpack.c.h.b16 %v627
        %v873 = vunpack.c.l.b16 %v628
        %v874 = vunpack.c.h.b16 %v628
        %v875 = vunpack.c.l.b16 %v629
        %v876 = vunpack.c.h.b16 %v629
        %v877 = vunpack.c.l.b16 %v630
        %v878 = vunpack.c.h.b16 %v630
        %v879 = vunpack.c.l.b16 %v631
        %v880 = vunpack.c.h.b16 %v631
        %v881 = vunpack.c.l.b16 %v632
        %v882 = vunpack.c.h.b16 %v632
        %v883 = vunpack.c.l.b16 %v633
        %v884 = vunpack.c.h.b16 %v633
        %v885 = vunpack.c.l.b16 %v634
        %v886 = vunpack.c.h.b16 %v634
        %v887 = vunpack.c.l.b16 %v635
        %v888 = vunpack.c.h.b16 %v635
        %v889 = vunpack.c.l.b16 %v636
        %v890 = vunpack.c.h.b16 %v636
        %v891 = vunpack.c.l.b16 %v637
        %v892 = vunpack.c.h.b16 %v637
        %v893 = vunpack.c.l.b16 %v638
        %v894 = vunpack.c.h.b16 %v638
        %v895 = vunpack.c.l.b16 %v639
        %v896 = vunpack.c.h.b16 %v639
        %v897 = vunpack.c.l.b16 %v640
        %v898 = vunpack.c.h.b16 %v640
        %v899 = vunpack.c.l.b16 %v641
        %v900 = vunpack.c.h.b16 %v641
        %v901 = vunpack.c.l.b16 %v642
        %v902 = vunpack.c.h.b16 %v642
        %v903 = vunpack.c.l.b16 %v643
        %v904 = vunpack.c.h.b16 %v643
        %v905 = vunpack.c.l.b16 %v644
        %v906 = vunpack.c.h.b16 %v644
        %v907 = vunpack.c.l.b16 %v645
        %v908 = vunpack.c.h.b16 %v645
        %v909 = vunpack.c.l.b16 %v646
        %v910 = vunpack.c.h.b16 %v646
        %v911 = vunpack.c.l.b16 %v647
        %v912 = vunpack.c.h.b16 %v647
        %v913 = vunpack.c.l.b16 %v648
        %v914 = vunpack.c.h.b16 %v648
        %v915 = vunpack.c.l.b16 %v649
        %v916 = vunpack.c.h.b16 %v649
        %v917 = vunpack.c.l.b16 %v650
        %v918 = vunpack.c.h.b16 %v650
        %v919 = vunpack.c.l.b16 %v651
        %v920 = vunpack.c.h.b16 %v651
        %v921 = vunpack.c.l.b16 %v652
        %v922 = vunpack.c.h.b16 %v652
        %v923 = vunpack.c.l.b16 %v653
        %v924 = vunpack.c.h.b16 %v653
        %v925 = vunpack.c.l.b16 %v654
        %v926 = vunpack.c.h.b16 %v654
        %v927 = vunpack.c.l.b16 %v655
        %v928 = vunpack.c.h.b16 %v655
        %v929 = vunpack.c.l.b16 %v656
        %v930 = vunpack.c.h.b16 %v656
        %v931 = vunpack.c.l.b16 %v657
        %v932 = vunpack.c.h.b16 %v657
        %v933 = vunpack.c.l.b16 %v658
        %v934 = vunpack.c.h.b16 %v658
        %v935 = vunpack.c.l.b16 %v659
        %v936 = vunpack.c.h.b16 %v659
        %v937 = vunpack.c.l.b16 %v660
        %v938 = vunpack.c.h.b16 %v660
        %v939 = vunpack.c.l.b16 %v661
        %v940 = vunpack.c.h.b16 %v661
        %v941 = vunpack.c.l.b16 %v662
        %v942 = vunpack.c.h.b16 %v662
        %v943 = vunpack.c.l.b16 %v663
        %v944 = vunpack.c.h.b16 %v663
        %v945 = vunpack.c.l.b16 %v664
        %v946 = vunpack.c.h.b16 %v664
        %v947 = vunpack.c.l.b16 %v665
        %v948 = vunpack.c.h.b16 %v665
        %v949 = vunpack.c.l.b16 %v666
        %v950 = vunpack.c.h.b16 %v666
        %v951 = vunpack.c.l.b16 %v667
        %v952 = vunpack.c.h.b16 %v667
        %v953 = vunpack.c.l.b16 %v668
        %v954 = vunpack.c.h.b16 %v668
        %v955 = vunpack.c.l.b16 %v669
        %v956 = vunpack.c.h.b16 %v669
        %v957 = vunpack.c.l.b16 %v670
        %v958 = vunpack.c.h.b16 %v670
        %v959 = vunpack.c.l.b16 %v671
        %v960 = vunpack.c.h.b16 %v671
        %v961 = vunpack.c.l.b16 %v672
        %v962 = vunpack.c.h.b16 %v672
        %v963 = vunpack.c.l.b16 %v673
        %v964 = vunpack.c.h.b16 %v673
        %v965 = vunpack.c.l.b16 %v674
        %v966 = vunpack.c.h.b16 %v674
        %v967 = vunpack.c.l.b16 %v675
        %v968 = vunpack.c.h.b16 %v675
        %v969 = vunpack.c.l.b16 %v676
        %v970 = vunpack.c.h.b16 %v676
        %v971 = vunpack.c.l.b16 %v677
        %v972 = vunpack.c.h.b16 %v677
        %v973 = vunpack.c.l.b16 %v678
        %v974 = vunpack.c.h.b16 %v678
        %v975 = vunpack.c.l.b16 %v679
        %v976 = vunpack.c.h.b16 %v679
        %v977 = vunpack.c.l.b16 %v680
        %v978 = vunpack.c.h.b16 %v680
        %v979 = vunpack.c.l.b16 %v681
        %v980 = vunpack.c.h.b16 %v681
        %v981 = vunpack.c.l.b16 %v682
        %v982 = vunpack.c.h.b16 %v682
        %v983 = vunpack.c.l.b16 %v683
        %v984 = vunpack.c.h.b16 %v683
        %v985 = vunpack.c.l.b16 %v684
        %v986 = vunpack.c.h.b16 %v684
        %v987 = vunpack.c.l.b16 %v685
        %v988 = vunpack.c.h.b16 %v685
        %v989 = vunpack.c.l.b16 %v686
        %v990 = vunpack.c.h.b16 %v686
        %v991 = vunpack.c.l.b16 %v687
        %v992 = vunpack.c.h.b16 %v687
        %v993 = vunpack.c.l.b16 %v688
        %v994 = vunpack.c.h.b16 %v688
        %v995 = vunpack.c.l.b16 %v689
        %v996 = vunpack.c.h.b16 %v689
        %v997 = vunpack.c.l.b16 %v690
        %v998 = vunpack.c.h.b16 %v690
        %v999 = vunpack.c.l.b16 %v691
        %v1000 = vunpack.c.h.b16 %v691
        %v1001 = vunpack.c.l.b16 %v692
        %v1002 = vunpack.c.h.b16 %v692
        %v1003 = vunpack.c.l.b16 %v693
        %v1004 = vunpack.c.h.b16 %v693
        %v1005 = vunpack.c.l.b16 %v694
        %v1006 = vunpack.c.h.b16 %v694
        %v1007 = vunpack.c.l.b16 %v695
        %v1008 = vunpack.c.h.b16 %v695
        %v1009 = vunpack.c.l.b16 %v696
        %v1010 = vunpack.c.h.b16 %v696
        %v1011 = vunpack.c.l.b16 %v697
        %v1012 = vunpack.c.h.b16 %v697
        %v1013 = vunpack.c.l.b16 %v698
        %v1014 = vunpack.c.h.b16 %v698
        %v1015 = vunpack.c.l.b16 %v699
        %v1016 = vunpack.c.h.b16 %v699
        %v1017 = vunpack.c.l.b16 %v700
        %v1018 = vunpack.c.h.b16 %v700
        %v1019 = vunpack.c.l.b16 %v701
        %v1020 = vunpack.c.h.b16 %v701
        %v1021 = vunpack.c.l.b16 %v702
        %v1022 = vunpack.c.h.b16 %v702
        %v1023 = vunpack.c.l.b16 %v703
        %v1024 = vunpack.c.h.b16 %v703
        %v1025 = vpack.c.b16 %v835, %v833
        %v1026 = vpack.c.b16 %v836, %v834
        %v1027 = vpack.c.b16 %v839, %v837
        %v1028 = vpack.c.b16 %v840, %v838
        %v1029 = vpack.c.b16 %v843, %v841
        %v1030 = vpack.c.b16 %v844, %v842
        %v1031 = vpack.c.b16 %v847, %v845
        %v1032 = vpack.c.b16 %v848, %v846
        %v1033 = vpack.c.b16 %v851, %v849
        %v1034 = vpack.c.b16 %v852, %v850
        %v1035 = vpack.c.b16 %v855, %v853
        %v1036 = vpack.c.b16 %v856, %v854
        %v1037 = vpack.c.b16 %v859, %v857
        %v1038 = vpack.c.b16 %v860, %v858
        %v1039 = vpack.c.b16 %v863, %v861
        %v1040 = vpack.c.b16 %v864, %v862
        %v1041 = vpack.c.b16 %v867, %v865
        %v1042 = vpack.c.b16 %v868, %v866
        %v1043 = vpack.c.b16 %v871, %v869
        %v1044 = vpack.c.b16 %v872, %v870
        %v1045 = vpack.c.b16 %v875, %v873
        %v1046 = vpack.c.b16 %v876, %v874
        %v1047 = vpack.c.b16 %v879, %v877
        %v1048 = vpack.c.b16 %v880, %v878
        %v1049 = vpack.c.b16 %v883, %v881
        %v1050 = vpack.c.b16 %v884, %v882
        %v1051 = vpack.c.b16 %v887, %v885
        %v1052 = vpack.c.b16 %v888, %v886
        %v1053 = vpack.c.b16 %v891, %v889
        %v1054 = vpack.c.b16 %v892, %v890
        %v1055 = vpack.c.b16 %v895, %v893
        %v1056 = vpack.c.b16 %v896, %v894
        %v1057 = vpack.c.b16 %v899, %v897
        %v1058 = vpack.c.b16 %v900, %v898
        %v1059 = vpack.c.b16 %v903, %v901
        %v1060 = vpack.c.b16 %v904, %v902
        %v1061 = vpack.c.b16 %v907, %v905
        %v1062 = vpack.c.b16 %v908, %v906
        %v1063 = vpack.c.b16 %v911, %v909
        %v1064 = vpack.c.b16 %v912, %v910
        %v1065 = vpack.c.b16 %v915, %v913
        %v1066 = vpack.c.b16 %v916, %v914
        %v1067 = vpack.c.b16 %v919, %v917
        %v1068 = vpack.c.b16 %v920, %v918
        %v1069 = vpack.c.b16 %v923, %v921
        %v1070 = vpack.c.b16 %v924, %v922
        %v1071 = vpack.c.b16 %v927, %v925
        %v1072 = vpack.c.b16 %v928, %v926
        %v1073 = vpack.c.b16 %v931, %v929
        %v1074 = vpack.c.b16 %v932, %v930
        %v1075 = vpack.c.b16 %v935, %v933
        %v1076 = vpack.c.b16 %v936, %v934
        %v1077 = vpack.c.b16 %v939, %v937
        %v1078 = vpack.c.b16 %v940, %v938
        %v1079 = vpack.c.b16 %v943, %v941
        %v1080 = vpack.c.b16 %v944, %v942
        %v1081 = vpack.c.b16 %v947, %v945
        %v1082 = vpack.c.b16 %v948, %v946
        %v1083 = vpack.c.b16 %v951, %v949
        %v1084 = vpack.c.b16 %v952, %v950
        %v1085 = vpack.c.b16 %v955, %v953
        %v1086 = vpack.c.b16 %v956, %v954
        %v1087 = vpack.c.b16 %v959, %v957
        %v1088 = vpack.c.b16 %v960, %v958
        %v1089 = vpack.c.b16 %v963, %v961
        %v1090 = vpack.c.b16 %v964, %v962
        %v1091 = vpack.c.b16 %v967, %v965
        %v1092 = vpack.c.b16 %v968, %v966
        %v1093 = vpack.c.b16 %v971, %v969
        %v1094 = vpack.c.b16 %v972, %v970
        %v1095 = vpack.c.b16 %v975, %v973
        %v1096 = vpack.c.b16 %v976, %v974
        %v1097 = vpack.c.b16 %v979, %v977
        %v1098 = vpack.c.b16 %v980, %v978
        %v1099 = vpack.c.b16 %v983, %v981
        %v1100 = vpack.c.b16 %v984, %v982
        %v1101 = vpack.c.b16 %v987, %v985
        %v1102 = vpack.c.b16 %v988, %v986
        %v1103 = vpack.c.b16 %v991, %v989
        %v1104 = vpack.c.b16 %v992, %v990
        %v1105 = vpack.c.b16 %v995, %v993
        %v1106 = vpack.c.b16 %v996, %v994
        %v1107 = vpack.c.b16 %v999, %v997
        %v1108 = vpack.c.b16 %v1000, %v998
        %v1109 = vpack.c.b16 %v1003, %v1001
        %v1110 = vpack.c.b16 %v1004, %v1002
        %v1111 = vpack.c.b16 %v1007, %v1005
        %v1112 = vpack.c.b16 %v1008, %v1006
        %v1113 = vpack.c.b16 %v1011, %v1009
        %v1114 = vpack.c.b16 %v1012, %v1010
        %v1115 = vpack.c.b16 %v1015, %v1013
        %v1116 = vpack.c.b16 %v1016, %v1014
        %v1117 = vpack.c.b16 %v1019, %v1017
        %v1118 = vpack.c.b16 %v1020, %v1018
        %v1119 = vpack.c.b16 %v1023, %v1021
        %v1120 = vpack.c.b16 %v1024, %v1022
        %1217 = vmatprep.subr.bf16.mxu0 %v1026
        %1218 = vmatpush1.bf16.msra.mxu0 %v1025
        %1219 = vmatprep.subr.bf16.mxu0 %v1028
        %1220 = vmatpush1.bf16.msra.mxu0 %v1027
        %1221 = vmatprep.subr.bf16.mxu0 %v1030
        %1222 = vmatpush1.bf16.msra.mxu0 %v1029
        %1223 = vmatprep.subr.bf16.mxu0 %v1032
        %1224 = vmatpush1.bf16.msra.mxu0 %v1031
        %1225 = vmatprep.subr.bf16.mxu0 %v1034
        %1226 = vmatpush1.bf16.msra.mxu0 %v1033
        %1227 = vmatprep.subr.bf16.mxu0 %v1036
        %1228 = vmatpush1.bf16.msra.mxu0 %v1035
        %1229 = vmatprep.subr.bf16.mxu0 %v1038
        %1230 = vmatpush1.bf16.msra.mxu0 %v1037
        %1231 = vmatprep.subr.bf16.mxu0 %v1040
        %1232 = vmatpush1.bf16.msra.mxu0 %v1039
        %1233 = vmatprep.subr.bf16.mxu0 %v1042
        %1234 = vmatpush1.bf16.msra.mxu0 %v1041
        %1235 = vmatprep.subr.bf16.mxu0 %v1044
        %1236 = vmatpush1.bf16.msra.mxu0 %v1043
        %1237 = vmatprep.subr.bf16.mxu0 %v1046
        %1238 = vmatpush1.bf16.msra.mxu0 %v1045
        %1239 = vmatprep.subr.bf16.mxu0 %v1048
        %1240 = vmatpush1.bf16.msra.mxu0 %v1047
        %1241 = vmatprep.subr.bf16.mxu0 %v1050
        %1242 = vmatpush1.bf16.msra.mxu0 %v1049
        %1243 = vmatprep.subr.bf16.mxu0 %v1052
        %1244 = vmatpush1.bf16.msra.mxu0 %v1051
        %1245 = vmatprep.subr.bf16.mxu0 %v1054
        %1246 = vmatpush1.bf16.msra.mxu0 %v1053
        %1247 = vmatprep.subr.bf16.mxu0 %v1056
        %1248 = vmatpush1.bf16.msra.mxu0 %v1055
        %1249 = vmatprep.mubr.bf16.mxu0 %v726
        %1250 = vmatmul.mubr.bf16.gmra.mrb[0].mxu0 %v725
        %v1251 = vpop.f32.mrb[0].mxu0
        %v1252 = vadd.f32 %v709, %v1251
        %v1253 = vpop.f32.mrb[0].mxu0
        %v1254 = vadd.f32 %v713, %v1253
        %v1255 = vpop.f32.mrb[0].mxu0
        %v1256 = vpop.f32.mrb[0].mxu0
        %1257 = vdwg.mxu0
        %1258 = vmatprep.subr.bf16.mxu0 %v1058
        %1259 = vmatpush1.bf16.msra.mxu0 %v1057
        %1260 = vmatprep.subr.bf16.mxu0 %v1060
        %1261 = vmatpush1.bf16.msra.mxu0 %v1059
        %1262 = vmatprep.subr.bf16.mxu0 %v1062
        %1263 = vmatpush1.bf16.msra.mxu0 %v1061
        %1264 = vmatprep.subr.bf16.mxu0 %v1064
        %1265 = vmatpush1.bf16.msra.mxu0 %v1063
        %1266 = vmatprep.subr.bf16.mxu0 %v1066
        %1267 = vmatpush1.bf16.msra.mxu0 %v1065
        %1268 = vmatprep.subr.bf16.mxu0 %v1068
        %1269 = vmatpush1.bf16.msra.mxu0 %v1067
        %1270 = vmatprep.subr.bf16.mxu0 %v1070
        %1271 = vmatpush1.bf16.msra.mxu0 %v1069
        %1272 = vmatprep.subr.bf16.mxu0 %v1072
        %1273 = vmatpush1.bf16.msra.mxu0 %v1071
        %1274 = vmatprep.subr.bf16.mxu0 %v1074
        %1275 = vmatpush1.bf16.msra.mxu0 %v1073
        %1276 = vmatprep.subr.bf16.mxu0 %v1076
        %1277 = vmatpush1.bf16.msra.mxu0 %v1075
        %1278 = vmatprep.subr.bf16.mxu0 %v1078
        %1279 = vmatpush1.bf16.msra.mxu0 %v1077
        %1280 = vmatprep.subr.bf16.mxu0 %v1080
        %1281 = vmatpush1.bf16.msra.mxu0 %v1079
        %1282 = vmatprep.subr.bf16.mxu0 %v1082
        %1283 = vmatpush1.bf16.msra.mxu0 %v1081
        %1284 = vmatprep.subr.bf16.mxu0 %v1084
        %1285 = vmatpush1.bf16.msra.mxu0 %v1083
        %1286 = vmatprep.subr.bf16.mxu0 %v1086
        %1287 = vmatpush1.bf16.msra.mxu0 %v1085
        %1288 = vmatprep.subr.bf16.mxu0 %v1088
        %1289 = vmatpush1.bf16.msra.mxu0 %v1087
        %1290 = vmatprep.mubr.bf16.mxu0 %v728
        %1291 = vmatmul.mubr.bf16.gmra.mrb[0].mxu0 %v727
        %v1292 = vpop.f32.mrb[0].mxu0
        %v1293 = vadd.f32 %v1252, %v1292
        %v1294 = vpop.f32.mrb[0].mxu0
        %v1295 = vadd.f32 %v1254, %v1294
        %v1296 = vpop.f32.mrb[0].mxu0
        %v1297 = vpop.f32.mrb[0].mxu0
        %1298 = vdwg.mxu0
        %1299 = vmatprep.subr.bf16.mxu0 %v1090
        %1300 = vmatpush1.bf16.msra.mxu0 %v1089
        %1301 = vmatprep.subr.bf16.mxu0 %v1092
        %1302 = vmatpush1.bf16.msra.mxu0 %v1091
        %1303 = vmatprep.subr.bf16.mxu0 %v1094
        %1304 = vmatpush1.bf16.msra.mxu0 %v1093
        %1305 = vmatprep.subr.bf16.mxu0 %v1096
        %1306 = vmatpush1.bf16.msra.mxu0 %v1095
        %1307 = vmatprep.subr.bf16.mxu0 %v1098
        %1308 = vmatpush1.bf16.msra.mxu0 %v1097
        %1309 = vmatprep.subr.bf16.mxu0 %v1100
        %1310 = vmatpush1.bf16.msra.mxu0 %v1099
        %1311 = vmatprep.subr.bf16.mxu0 %v1102
        %1312 = vmatpush1.bf16.msra.mxu0 %v1101
        %1313 = vmatprep.subr.bf16.mxu0 %v1104
        %1314 = vmatpush1.bf16.msra.mxu0 %v1103
        %1315 = vmatprep.subr.bf16.mxu0 %v1106
        %1316 = vmatpush1.bf16.msra.mxu0 %v1105
        %1317 = vmatprep.subr.bf16.mxu0 %v1108
        %1318 = vmatpush1.bf16.msra.mxu0 %v1107
        %1319 = vmatprep.subr.bf16.mxu0 %v1110
        %1320 = vmatpush1.bf16.msra.mxu0 %v1109
        %1321 = vmatprep.subr.bf16.mxu0 %v1112
        %1322 = vmatpush1.bf16.msra.mxu0 %v1111
        %1323 = vmatprep.subr.bf16.mxu0 %v1114
        %1324 = vmatpush1.bf16.msra.mxu0 %v1113
        %1325 = vmatprep.subr.bf16.mxu0 %v1116
        %1326 = vmatpush1.bf16.msra.mxu0 %v1115
        %1327 = vmatprep.subr.bf16.mxu0 %v1118
        %1328 = vmatpush1.bf16.msra.mxu0 %v1117
        %1329 = vmatprep.subr.bf16.mxu0 %v1120
        %1330 = vmatpush1.bf16.msra.mxu0 %v1119
        %1331 = vmatprep.mubr.bf16.mxu0 %v730
        %1332 = vmatmul.mubr.bf16.gmra.mrb[0].mxu0 %v729
        %v1333 = vpop.f32.mrb[0].mxu0
        %v1334 = vadd.f32 %v1293, %v1333
        %v1335 = vpop.f32.mrb[0].mxu0
        %v1336 = vadd.f32 %v1295, %v1335
        %v1337 = vpop.f32.mrb[0].mxu0
        %v1338 = vpop.f32.mrb[0].mxu0
        %1339 = vdwg.mxu0
        %v1340 = vxor.u32 %v1334, 2147483648
        %v1341 = vxor.u32 %v1336, 2147483648
        %v1342 = vmul.f32 %v1340, 1.442695
        %v1343 = vpow.pop %v1342
        %v1344 = vmul.f32 %v1341, 1.442695
        %v1345 = vpow.pop %v1344
        %v1346 = vadd.f32 %v1343, 1.0
        %v1347 = vadd.f32 %v1345, 1.0
        %v1348 = vrcp.pop %v1346
        %v1349 = vmul.f32 1.0, %v1348
        %v1350 = vrcp.pop %v1347
        %v1351 = vmul.f32 1.0, %v1350
        %v1352 = vpack.c.bf16 %v1349, %v1349
        %v1353 = vpack.c.bf16 %v1351, %v1351
        %v1356 = vunpack.c.l.b16 %v1352
        %v1357 = vunpack.c.l.b16 %v1353
        %v1358 = vpack.c.b16 %v1357, %v1356
        %1360 = vst [vmem:[%s597] sm:$0xff] %v1358
        %s1361 = sand.u32 %s98, 1
        %s1362 = scalar_lea.sflag [#allocation4], %s1361
        %s1363 = sand.u32 %s98, 1
        %s1364 = smul.addr %s1363, 8
        %s1365 = scalar_lea.vmem [#allocation3], %s1364
        // Predicated region
        $region71: #{vae_forward.5} parent=65 // pred_check
          %p1366 = pneg %p108
        $region72: #{vae_forward.5} parent=65 // pred_check_branch
          %1368 = sbr.rel (%p1366) target = $region74
        $region73: #{vae_forward.5} parent=65 // pred_region
          %s1369 = smul.u32 2, %s17
          %s1371 = ssub.s32 128, 128
          %1372 = vsyncadd %s1362, %s1371
          %s1373 = smul.addr %s1369, 64
          %s1374 = scalar_lea.hbm %s3, %s1373
          %s1376 = sshll.u32 %s1365, 4
          %s1377 = int_to_ptr.vmem [resolvable:$true] %s1376
          %1379 = dma.vmem_to_hbm [thread:$0]  %s1377, 128, %s1374, %s1362
        $region74: #{vae_forward.5} parent=65 // pred_fallthru
          _
      $region66: #{vae_forward.5} parent=5 // pred_fallthru
        _
      %p1380 = scmp.le.s32.totalorder 2, %s12
      // Predicated region
      $region75: #{vae_forward.5} parent=5 // pred_check
        %p1381 = pneg %p1380
      $region76: #{vae_forward.5} parent=5 // pred_check_branch
        %1383 = sbr.rel (%p1381) target = $region78
      $region77: #{vae_forward.5} parent=5 // pred_region
        %s1384 = ssub.s32 %s12, 2
        // Predicated region
        $region79: #{vae_forward.5} parent=77 // pred_check
          %p1385 = pneg %p114
        $region80: #{vae_forward.5} parent=77 // pred_check_branch
          %1387 = sbr.rel (%p1385) target = $region82
        $region81: #{vae_forward.5} parent=77 // pred_region
          %s1388 = sand.u32 %s99, 1
          %s1389 = scalar_lea.sflag [#allocation4], %s1388
          %s1390 = sand.u32 %s99, 1
          %s1391 = smul.addr %s1390, 8
          %s1392 = scalar_lea.vmem [#allocation3], %s1391
          %1393 = dma.done %s1389, 128
        $region82: #{vae_forward.5} parent=77 // pred_fallthru
          _
      $region78: #{vae_forward.5} parent=5 // pred_fallthru
        _
    $region6: #{vae_forward.5} parent=1 // loop_footer
      %s16 = sadd.s32 1, %s12
    $region7: #{vae_forward.5} parent=1 // loop_footer_branch
      %11 = sbr.rel target = $region3
    $region8: #{vae_forward.5} parent=1 // loop_exit
      _
    %1394 = vsyncpa [#allocation4], 1
    %s1395 = scalar_lea.sflag [#allocation4], 1
    %1396 = vsyncpa %s1395, 1

// kernel: vae_forward.4
$region0: #{vae_forward.4}
  #allocation0 [shape = 'u32[]', space=smem, size = 0x4, offset = 0x4, fixed_abs, tag = 'smem constant byte address 0x4 - core index']
  #allocation1 [shape = 'u32[144,128]{1,0:T(1,128)}', space=vmem, size = 0x12000, scoped, tag = 'internal scratch']
  %s0 = inlined_call_operand.vmem [shape: f32[8,768], index: 0, kind: input, shape index: {}]
  %s1 = inlined_call_operand.vmem [shape: f32[1,768], index: 1, kind: input, shape index: {}]
  %s2 = inlined_call_operand.vmem [shape: f32[1,768], index: 2, kind: input, shape index: {}]
  %s3 = inlined_call_operand.vmem [shape: f32[1,768], index: 3, kind: input, shape index: {}]
  %s4 = inlined_call_operand.hbm [shape: bf16[768,256], index: 4, kind: input, shape index: {}]
  %s5 = inlined_call_operand.vmem [shape: f32[1,256], index: 5, kind: input, shape index: {}]
  %s6 = inlined_call_operand.vmem [shape: f32[1,256], index: 6, kind: input, shape index: {}]
  %s7 = inlined_call_operand.vmem [shape: f32[1,256], index: 7, kind: input, shape index: {}]
  %s8 = inlined_call_operand.vmem [shape: bf16[256,256], index: 8, kind: input, shape index: {}]
  %s9 = inlined_call_operand.vmem [shape: f32[1,256], index: 9, kind: input, shape index: {}]
  %s10 = inlined_call_operand.hbm [shape: bf16[128,256], index: 10, kind: input, shape index: {}]
  %s11 = inlined_call_operand.vmem [shape: f32[1,256], index: 11, kind: input, shape index: {}]
  %s12 = inlined_call_operand.hbm [shape: bf16[256,768], index: 12, kind: input, shape index: {}]
  %s13 = inlined_call_operand.vmem [shape: f32[1,768], index: 13, kind: input, shape index: {}]
  %s14 = inlined_call_operand.vmem [shape: f32[1,768], index: 14, kind: input, shape index: {}]
  %s15 = inlined_call_operand.vmem [shape: f32[1,768], index: 15, kind: input, shape index: {}]
  %s16 = inlined_call_operand.vmem [shape: f32[8,128], index: 16, kind: input, shape index: {}]
  %s17 = inlined_call_operand.vmem [shape: bf16[8,768], index: 17, kind: output, shape index: {0}]
  %s18 = inlined_call_operand.hbm [shape: f32[8,128], index: 18, kind: output, shape index: {1}]
  %s19 = inlined_call_operand.hbm [shape: f32[8,128], index: 19, kind: output, shape index: {2}]
  %s20 = inlined_call_operand.hbm [shape: f32[8,128], index: 20, kind: output, shape index: {3}]
  %21 = xla_tuple %s17, %s18, %s19, %s20
  %s22 = sld [smem:[#allocation0]]
  $region114: #{vae_forward.4} parent=0
    _
  %s24 = ssub.s32 1, %s22
  %s25 = scalar_select 0, %s24, %s22
  $region1: #{vae_forward.4} parent=0
    #allocation2 [shape = 'u8[393216]{0}', space=vmem, size = 0x60000, scoped, tag = 'input window, operand 4, single buffered']
    #allocation3 [shape = 's32[1]{0}', space=sflag, size = 0x4, scoped, tag = 'scoped memory for vae_forward.4']
    #allocation4 [shape = 's32[1]{0}', space=sflag, size = 0x4, scoped, tag = 'scoped memory for vae_forward.4']
    #allocation5 [shape = 'u8[65536]{0}', space=vmem, size = 0x10000, scoped, tag = 'input window, operand 10, single buffered']
    #allocation6 [shape = 's32[1]{0}', space=sflag, size = 0x4, scoped, tag = 'scoped memory for vae_forward.4']
    #allocation7 [shape = 'u8[393216]{0}', space=vmem, size = 0x60000, scoped, tag = 'input window, operand 12, single buffered']
    #allocation8 [shape = 'u8[4096]{0}', space=vmem, size = 0x1000, scoped, tag = 'output window, operand 1, single buffered']
    #allocation9 [shape = 'u8[4096]{0}', space=vmem, size = 0x1000, scoped, tag = 'output window, operand 2, single buffered']
    #allocation10 [shape = 's32[1]{0}', space=sflag, size = 0x4, scoped, tag = 'scoped memory for vae_forward.4']
    #allocation11 [shape = 'u8[4096]{0}', space=vmem, size = 0x1000, scoped, tag = 'output window, operand 3, single buffered']
    %26 = vsyncpa [#allocation3], 0
    %27 = vsyncpa [#allocation6], 0
    %28 = vsyncpa [#allocation4], 0
    %29 = vsyncpa [#allocation10], 0
    // Predicated region
    $region2: #{vae_forward.4} parent=1 // pred_check
      _
    $region3: #{vae_forward.4} parent=1 // pred_check_branch
      %31 = sbr.rel (0) target = $region5
    $region4: #{vae_forward.4} parent=1 // pred_region
      _
    $region5: #{vae_forward.4} parent=1 // pred_fallthru
      _
    // Predicated region
    $region6: #{vae_forward.4} parent=1 // pred_check
      _
    $region7: #{vae_forward.4} parent=1 // pred_check_branch
      %33 = sbr.rel (0) target = $region9
    $region8: #{vae_forward.4} parent=1 // pred_region
      _
    $region9: #{vae_forward.4} parent=1 // pred_fallthru
      _
    // Predicated region
    $region10: #{vae_forward.4} parent=1 // pred_check
      _
    $region11: #{vae_forward.4} parent=1 // pred_check_branch
      %35 = sbr.rel (0) target = $region13
    $region12: #{vae_forward.4} parent=1 // pred_region
      _
    $region13: #{vae_forward.4} parent=1 // pred_fallthru
      _
    // Predicated region
    $region14: #{vae_forward.4} parent=1 // pred_check
      _
    $region15: #{vae_forward.4} parent=1 // pred_check_branch
      %37 = sbr.rel (0) target = $region17
    $region16: #{vae_forward.4} parent=1 // pred_region
      _
    $region17: #{vae_forward.4} parent=1 // pred_fallthru
      _
    // Predicated region
    $region18: #{vae_forward.4} parent=1 // pred_check
      _
    $region19: #{vae_forward.4} parent=1 // pred_check_branch
      %39 = sbr.rel (0) target = $region21
    $region20: #{vae_forward.4} parent=1 // pred_region
      %s41 = ssub.s32 12288, 12288
      %42 = vsyncadd [#allocation3], %s41
      %s43 = sshll.u32 [#allocation2], 4
      %s44 = int_to_ptr.vmem [resolvable:$true] %s43
      %49 = dma.hbm_to_vmem [thread:$0]  %s4, 12288, %s44, [#allocation3], 128, 128, 8
    $region21: #{vae_forward.4} parent=1 // pred_fallthru
      _
    // Predicated region
    $region22: #{vae_forward.4} parent=1 // pred_check
      _
    $region23: #{vae_forward.4} parent=1 // pred_check_branch
      %51 = sbr.rel (0) target = $region25
    $region24: #{vae_forward.4} parent=1 // pred_region
      _
    $region25: #{vae_forward.4} parent=1 // pred_fallthru
      _
    // Predicated region
    $region26: #{vae_forward.4} parent=1 // pred_check
      _
    $region27: #{vae_forward.4} parent=1 // pred_check_branch
      %53 = sbr.rel (0) target = $region29
    $region28: #{vae_forward.4} parent=1 // pred_region
      _
    $region29: #{vae_forward.4} parent=1 // pred_fallthru
      _
    // Predicated region
    $region30: #{vae_forward.4} parent=1 // pred_check
      _
    $region31: #{vae_forward.4} parent=1 // pred_check_branch
      %55 = sbr.rel (0) target = $region33
    $region32: #{vae_forward.4} parent=1 // pred_region
      _
    $region33: #{vae_forward.4} parent=1 // pred_fallthru
      _
    // Predicated region
    $region34: #{vae_forward.4} parent=1 // pred_check
      _
    $region35: #{vae_forward.4} parent=1 // pred_check_branch
      %57 = sbr.rel (0) target = $region37
    $region36: #{vae_forward.4} parent=1 // pred_region
      _
    $region37: #{vae_forward.4} parent=1 // pred_fallthru
      _
    // Predicated region
    $region38: #{vae_forward.4} parent=1 // pred_check
      _
    $region39: #{vae_forward.4} parent=1 // pred_check_branch
      %59 = sbr.rel (0) target = $region41
    $region40: #{vae_forward.4} parent=1 // pred_region
      _
    $region41: #{vae_forward.4} parent=1 // pred_fallthru
      _
    // Predicated region
    $region42: #{vae_forward.4} parent=1 // pred_check
      _
    $region43: #{vae_forward.4} parent=1 // pred_check_branch
      %61 = sbr.rel (0) target = $region45
    $region44: #{vae_forward.4} parent=1 // pred_region
      %s63 = ssub.s32 2048, 2048
      %64 = vsyncadd [#allocation6], %s63
      %s65 = sshll.u32 [#allocation5], 4
      %s66 = int_to_ptr.vmem [resolvable:$true] %s65
      %71 = dma.hbm_to_vmem [thread:$0]  %s10, 2048, %s66, [#allocation6], 128, 128, 8
    $region45: #{vae_forward.4} parent=1 // pred_fallthru
      _
    // Predicated region
    $region46: #{vae_forward.4} parent=1 // pred_check
      _
    $region47: #{vae_forward.4} parent=1 // pred_check_branch
      %73 = sbr.rel (0) target = $region49
    $region48: #{vae_forward.4} parent=1 // pred_region
      _
    $region49: #{vae_forward.4} parent=1 // pred_fallthru
      _
    // Predicated region
    $region50: #{vae_forward.4} parent=1 // pred_check
      _
    $region51: #{vae_forward.4} parent=1 // pred_check_branch
      %75 = sbr.rel (0) target = $region53
    $region52: #{vae_forward.4} parent=1 // pred_region
      %s77 = ssub.s32 12288, 12288
      %78 = vsyncadd [#allocation6], %s77
      %s79 = sshll.u32 [#allocation7], 4
      %s80 = int_to_ptr.vmem [resolvable:$true] %s79
      %85 = dma.hbm_to_vmem [thread:$0]  %s12, 12288, %s80, [#allocation6], 384, 384, 24
    $region53: #{vae_forward.4} parent=1 // pred_fallthru
      _
    // Predicated region
    $region54: #{vae_forward.4} parent=1 // pred_check
      _
    $region55: #{vae_forward.4} parent=1 // pred_check_branch
      %87 = sbr.rel (0) target = $region57
    $region56: #{vae_forward.4} parent=1 // pred_region
      _
    $region57: #{vae_forward.4} parent=1 // pred_fallthru
      _
    // Predicated region
    $region58: #{vae_forward.4} parent=1 // pred_check
      _
    $region59: #{vae_forward.4} parent=1 // pred_check_branch
      %89 = sbr.rel (0) target = $region61
    $region60: #{vae_forward.4} parent=1 // pred_region
      _
    $region61: #{vae_forward.4} parent=1 // pred_fallthru
      _
    // Predicated region
    $region62: #{vae_forward.4} parent=1 // pred_check
      _
    $region63: #{vae_forward.4} parent=1 // pred_check_branch
      %91 = sbr.rel (0) target = $region65
    $region64: #{vae_forward.4} parent=1 // pred_region
      _
    $region65: #{vae_forward.4} parent=1 // pred_fallthru
      _
    // Predicated region
    $region66: #{vae_forward.4} parent=1 // pred_check
      _
    $region67: #{vae_forward.4} parent=1 // pred_check_branch
      %93 = sbr.rel (0) target = $region69
    $region68: #{vae_forward.4} parent=1 // pred_region
      _
    $region69: #{vae_forward.4} parent=1 // pred_fallthru
      _
    // Predicated region
    $region70: #{vae_forward.4} parent=1 // pred_check
      _
    $region71: #{vae_forward.4} parent=1 // pred_check_branch
      %95 = sbr.rel (0) target = $region73
    $region72: #{vae_forward.4} parent=1 // pred_region
      %96 = dma.done [#allocation3], 12288
    $region73: #{vae_forward.4} parent=1 // pred_fallthru
      _
    // Predicated region
    $region74: #{vae_forward.4} parent=1 // pred_check
      _
    $region75: #{vae_forward.4} parent=1 // pred_check_branch
      %98 = sbr.rel (0) target = $region77
    $region76: #{vae_forward.4} parent=1 // pred_region
      %99 = dma.done [#allocation6], 2048
    $region77: #{vae_forward.4} parent=1 // pred_fallthru
      _
    // Predicated region
    $region78: #{vae_forward.4} parent=1 // pred_check
      _
    $region79: #{vae_forward.4} parent=1 // pred_check_branch
      %101 = sbr.rel (0) target = $region81
    $region80: #{vae_forward.4} parent=1 // pred_region
      %102 = dma.done [#allocation6], 12288
    $region81: #{vae_forward.4} parent=1 // pred_fallthru
      _
    %v104 = vld [vmem:[%s0] sm:$0xff]
    %v105 = vld [vmem:[%s0 + $0x8] sm:$0xff]
    %v106 = vld [vmem:[%s0 + $0x10] sm:$0xff]
    %v107 = vld [vmem:[%s0 + $0x18] sm:$0xff]
    %v108 = vld [vmem:[%s0 + $0x20] sm:$0xff]
    %v109 = vld [vmem:[%s0 + $0x28] sm:$0xff]
    %v110 = vld [vmem:[%s1] sm:$0x3f]
    %v112 = vlaneseq
    %v113 = vshrl.u32 %v112, 7
    %v114 = vsub.s32 0, %v113
    %v115 = vrot.slane %v110, %v114
    %v116 = vlaneseq
    %v117 = vshrl.u32 %v116, 7
    %v118 = vsub.s32 1, %v117
    %v119 = vrot.slane %v110, %v118
    %v120 = vlaneseq
    %v121 = vshrl.u32 %v120, 7
    %v122 = vsub.s32 2, %v121
    %v123 = vrot.slane %v110, %v122
    %v124 = vlaneseq
    %v125 = vshrl.u32 %v124, 7
    %v126 = vsub.s32 3, %v125
    %v127 = vrot.slane %v110, %v126
    %v128 = vlaneseq
    %v129 = vshrl.u32 %v128, 7
    %v130 = vsub.s32 4, %v129
    %v131 = vrot.slane %v110, %v130
    %v132 = vlaneseq
    %v133 = vshrl.u32 %v132, 7
    %v134 = vsub.s32 5, %v133
    %v135 = vrot.slane %v110, %v134
    %v142 = vadd.f32 %v104, %v115
    %v143 = vadd.f32 %v105, %v119
    %v144 = vadd.f32 %v106, %v123
    %v145 = vadd.f32 %v107, %v127
    %v146 = vadd.f32 %v108, %v131
    %v147 = vadd.f32 %v109, %v135
    %v148 = vld [vmem:[%s2] sm:$0x3f]
    %v149 = vld [vmem:[%s3] sm:$0x3f]
    %v150 = vrot.slane %v142, 4
    %v151 = vadd.f32 %v142, %v150
    %v152 = vrot.slane %v151, 2
    %v153 = vadd.f32 %v151, %v152
    %v154 = vrot.slane %v153, 1
    %v155 = vadd.f32 %v153, %v154
    %v156 = vrot.slane %v143, 4
    %v157 = vadd.f32 %v143, %v156
    %v158 = vrot.slane %v157, 2
    %v159 = vadd.f32 %v157, %v158
    %v160 = vrot.slane %v159, 1
    %v161 = vadd.f32 %v159, %v160
    %v162 = vrot.slane %v144, 4
    %v163 = vadd.f32 %v144, %v162
    %v164 = vrot.slane %v163, 2
    %v165 = vadd.f32 %v163, %v164
    %v166 = vrot.slane %v165, 1
    %v167 = vadd.f32 %v165, %v166
    %v168 = vrot.slane %v145, 4
    %v169 = vadd.f32 %v145, %v168
    %v170 = vrot.slane %v169, 2
    %v171 = vadd.f32 %v169, %v170
    %v172 = vrot.slane %v171, 1
    %v173 = vadd.f32 %v171, %v172
    %v174 = vrot.slane %v146, 4
    %v175 = vadd.f32 %v146, %v174
    %v176 = vrot.slane %v175, 2
    %v177 = vadd.f32 %v175, %v176
    %v178 = vrot.slane %v177, 1
    %v179 = vadd.f32 %v177, %v178
    %v180 = vrot.slane %v147, 4
    %v181 = vadd.f32 %v147, %v180
    %v182 = vrot.slane %v181, 2
    %v183 = vadd.f32 %v181, %v182
    %v184 = vrot.slane %v183, 1
    %v185 = vadd.f32 %v183, %v184
    %v186 = vrcp.pop 8.0
    %v187 = vmul.f32 %v155, %v186
    %v188 = vmul.f32 %v161, %v186
    %v189 = vmul.f32 %v167, %v186
    %v190 = vmul.f32 %v173, %v186
    %v191 = vmul.f32 %v179, %v186
    %v192 = vmul.f32 %v185, %v186
    %v193 = vsub.f32 %v142, %v187
    %v194 = vsub.f32 %v143, %v188
    %v195 = vsub.f32 %v144, %v189
    %v196 = vsub.f32 %v145, %v190
    %v197 = vsub.f32 %v146, %v191
    %v198 = vsub.f32 %v147, %v192
    %v199 = vmul.f32 %v193, %v193
    %v200 = vmul.f32 %v194, %v194
    %v201 = vmul.f32 %v195, %v195
    %v202 = vmul.f32 %v196, %v196
    %v203 = vmul.f32 %v197, %v197
    %v204 = vmul.f32 %v198, %v198
    %v205 = vrot.slane %v199, 4
    %v206 = vadd.f32 %v199, %v205
    %v207 = vrot.slane %v206, 2
    %v208 = vadd.f32 %v206, %v207
    %v209 = vrot.slane %v208, 1
    %v210 = vadd.f32 %v208, %v209
    %v211 = vrot.slane %v200, 4
    %v212 = vadd.f32 %v200, %v211
    %v213 = vrot.slane %v212, 2
    %v214 = vadd.f32 %v212, %v213
    %v215 = vrot.slane %v214, 1
    %v216 = vadd.f32 %v214, %v215
    %v217 = vrot.slane %v201, 4
    %v218 = vadd.f32 %v201, %v217
    %v219 = vrot.slane %v218, 2
    %v220 = vadd.f32 %v218, %v219
    %v221 = vrot.slane %v220, 1
    %v222 = vadd.f32 %v220, %v221
    %v223 = vrot.slane %v202, 4
    %v224 = vadd.f32 %v202, %v223
    %v225 = vrot.slane %v224, 2
    %v226 = vadd.f32 %v224, %v225
    %v227 = vrot.slane %v226, 1
    %v228 = vadd.f32 %v226, %v227
    %v229 = vrot.slane %v203, 4
    %v230 = vadd.f32 %v203, %v229
    %v231 = vrot.slane %v230, 2
    %v232 = vadd.f32 %v230, %v231
    %v233 = vrot.slane %v232, 1
    %v234 = vadd.f32 %v232, %v233
    %v235 = vrot.slane %v204, 4
    %v236 = vadd.f32 %v204, %v235
    %v237 = vrot.slane %v236, 2
    %v238 = vadd.f32 %v236, %v237
    %v239 = vrot.slane %v238, 1
    %v240 = vadd.f32 %v238, %v239
    %v241 = vmul.f32 %v210, %v186
    %v242 = vmul.f32 %v216, %v186
    %v243 = vmul.f32 %v222, %v186
    %v244 = vmul.f32 %v228, %v186
    %v245 = vmul.f32 %v234, %v186
    %v246 = vmul.f32 %v240, %v186
    %v248 = vlaneseq
    %v249 = vshrl.u32 %v248, 7
    %v250 = vsub.s32 0, %v249
    %v251 = vrot.slane %v148, %v250
    %v252 = vlaneseq
    %v253 = vshrl.u32 %v252, 7
    %v254 = vsub.s32 1, %v253
    %v255 = vrot.slane %v148, %v254
    %v256 = vlaneseq
    %v257 = vshrl.u32 %v256, 7
    %v258 = vsub.s32 2, %v257
    %v259 = vrot.slane %v148, %v258
    %v260 = vlaneseq
    %v261 = vshrl.u32 %v260, 7
    %v262 = vsub.s32 3, %v261
    %v263 = vrot.slane %v148, %v262
    %v264 = vlaneseq
    %v265 = vshrl.u32 %v264, 7
    %v266 = vsub.s32 4, %v265
    %v267 = vrot.slane %v148, %v266
    %v268 = vlaneseq
    %v269 = vshrl.u32 %v268, 7
    %v270 = vsub.s32 5, %v269
    %v271 = vrot.slane %v148, %v270
    %v278 = vmul.f32 %v251, %v193
    %v279 = vmul.f32 %v255, %v194
    %v280 = vmul.f32 %v259, %v195
    %v281 = vmul.f32 %v263, %v196
    %v282 = vmul.f32 %v267, %v197
    %v283 = vmul.f32 %v271, %v198
    %v284 = vadd.f32 %v241, 1e-05
    %v285 = vadd.f32 %v242, 1e-05
    %v286 = vadd.f32 %v243, 1e-05
    %v287 = vadd.f32 %v244, 1e-05
    %v288 = vadd.f32 %v245, 1e-05
    %v289 = vadd.f32 %v246, 1e-05
    %v290 = vrsqrt.pop %v284
    %v291 = vrsqrt.pop %v285
    %v292 = vrsqrt.pop %v286
    %v293 = vrsqrt.pop %v287
    %v294 = vrsqrt.pop %v288
    %v295 = vrsqrt.pop %v289
    %v296 = vmul.f32 %v278, %v290
    %v297 = vmul.f32 %v279, %v291
    %v298 = vmul.f32 %v280, %v292
    %v299 = vmul.f32 %v281, %v293
    %v300 = vmul.f32 %v282, %v294
    %v301 = vmul.f32 %v283, %v295
    %v303 = vlaneseq
    %v304 = vshrl.u32 %v303, 7
    %v305 = vsub.s32 0, %v304
    %v306 = vrot.slane %v149, %v305
    %v307 = vlaneseq
    %v308 = vshrl.u32 %v307, 7
    %v309 = vsub.s32 1, %v308
    %v310 = vrot.slane %v149, %v309
    %v311 = vlaneseq
    %v312 = vshrl.u32 %v311, 7
    %v313 = vsub.s32 2, %v312
    %v314 = vrot.slane %v149, %v313
    %v315 = vlaneseq
    %v316 = vshrl.u32 %v315, 7
    %v317 = vsub.s32 3, %v316
    %v318 = vrot.slane %v149, %v317
    %v319 = vlaneseq
    %v320 = vshrl.u32 %v319, 7
    %v321 = vsub.s32 4, %v320
    %v322 = vrot.slane %v149, %v321
    %v323 = vlaneseq
    %v324 = vshrl.u32 %v323, 7
    %v325 = vsub.s32 5, %v324
    %v326 = vrot.slane %v149, %v325
    %v333 = vadd.f32 %v296, %v306
    %v334 = vadd.f32 %v297, %v310
    %v335 = vadd.f32 %v298, %v314
    %v336 = vadd.f32 %v299, %v318
    %v337 = vadd.f32 %v300, %v322
    %v338 = vadd.f32 %v301, %v326
    %v339 = vmax.f32 %v333, 0.0
    %v340 = vmax.f32 %v334, 0.0
    %v341 = vmax.f32 %v335, 0.0
    %v342 = vmax.f32 %v336, 0.0
    %v343 = vmax.f32 %v337, 0.0
    %v344 = vmax.f32 %v338, 0.0
    %v345 = vpack.c.bf16 %v339, %v339
    %v346 = vpack.c.bf16 %v340, %v340
    %v347 = vpack.c.bf16 %v341, %v341
    %v348 = vpack.c.bf16 %v342, %v342
    %v349 = vpack.c.bf16 %v343, %v343
    %v350 = vpack.c.bf16 %v344, %v344
    %v351 = vld [vmem:[#allocation2] sm:$0xff]
    %v352 = vld [vmem:[#allocation2 + $0x8] sm:$0xff]
    %v353 = vld [vmem:[#allocation2 + $0x10] sm:$0xff]
    %v354 = vld [vmem:[#allocation2 + $0x18] sm:$0xff]
    %v355 = vld [vmem:[#allocation2 + $0x20] sm:$0xff]
    %v356 = vld [vmem:[#allocation2 + $0x28] sm:$0xff]
    %v357 = vld [vmem:[#allocation2 + $0x30] sm:$0xff]
    %v358 = vld [vmem:[#allocation2 + $0x38] sm:$0xff]
    %v359 = vld [vmem:[#allocation2 + $0x40] sm:$0xff]
    %v360 = vld [vmem:[#allocation2 + $0x48] sm:$0xff]
    %v361 = vld [vmem:[#allocation2 + $0x50] sm:$0xff]
    %v362 = vld [vmem:[#allocation2 + $0x58] sm:$0xff]
    %v363 = vld [vmem:[#allocation2 + $0x60] sm:$0xff]
    %v364 = vld [vmem:[#allocation2 + $0x68] sm:$0xff]
    %v365 = vld [vmem:[#allocation2 + $0x70] sm:$0xff]
    %v366 = vld [vmem:[#allocation2 + $0x78] sm:$0xff]
    %v367 = vld [vmem:[#allocation2 + $0x80] sm:$0xff]
    %v368 = vld [vmem:[#allocation2 + $0x88] sm:$0xff]
    %v369 = vld [vmem:[#allocation2 + $0x90] sm:$0xff]
    %v370 = vld [vmem:[#allocation2 + $0x98] sm:$0xff]
    %v371 = vld [vmem:[#allocation2 + $0xa0] sm:$0xff]
    %v372 = vld [vmem:[#allocation2 + $0xa8] sm:$0xff]
    %v373 = vld [vmem:[#allocation2 + $0xb0] sm:$0xff]
    %v374 = vld [vmem:[#allocation2 + $0xb8] sm:$0xff]
    %v375 = vld [vmem:[#allocation2 + $0xc0] sm:$0xff]
    %v376 = vld [vmem:[#allocation2 + $0xc8] sm:$0xff]
    %v377 = vld [vmem:[#allocation2 + $0xd0] sm:$0xff]
    %v378 = vld [vmem:[#allocation2 + $0xd8] sm:$0xff]
    %v379 = vld [vmem:[#allocation2 + $0xe0] sm:$0xff]
    %v380 = vld [vmem:[#allocation2 + $0xe8] sm:$0xff]
    %v381 = vld [vmem:[#allocation2 + $0xf0] sm:$0xff]
    %v382 = vld [vmem:[#allocation2 + $0xf8] sm:$0xff]
    %v383 = vld [vmem:[#allocation2 + $0x100] sm:$0xff]
    %v384 = vld [vmem:[#allocation2 + $0x108] sm:$0xff]
    %v385 = vld [vmem:[#allocation2 + $0x110] sm:$0xff]
    %v386 = vld [vmem:[#allocation2 + $0x118] sm:$0xff]
    %v387 = vld [vmem:[#allocation2 + $0x120] sm:$0xff]
    %v388 = vld [vmem:[#allocation2 + $0x128] sm:$0xff]
    %v389 = vld [vmem:[#allocation2 + $0x130] sm:$0xff]
    %v390 = vld [vmem:[#allocation2 + $0x138] sm:$0xff]
    %v391 = vld [vmem:[#allocation2 + $0x140] sm:$0xff]
    %v392 = vld [vmem:[#allocation2 + $0x148] sm:$0xff]
    %v393 = vld [vmem:[#allocation2 + $0x150] sm:$0xff]
    %v394 = vld [vmem:[#allocation2 + $0x158] sm:$0xff]
    %v395 = vld [vmem:[#allocation2 + $0x160] sm:$0xff]
    %v396 = vld [vmem:[#allocation2 + $0x168] sm:$0xff]
    %v397 = vld [vmem:[#allocation2 + $0x170] sm:$0xff]
    %v398 = vld [vmem:[#allocation2 + $0x178] sm:$0xff]
    %v399 = vld [vmem:[#allocation2 + $0x180] sm:$0xff]
    %v400 = vld [vmem:[#allocation2 + $0x188] sm:$0xff]
    %v401 = vld [vmem:[#allocation2 + $0x190] sm:$0xff]
    %v402 = vld [vmem:[#allocation2 + $0x198] sm:$0xff]
    %v403 = vld [vmem:[#allocation2 + $0x1a0] sm:$0xff]
    %v404 = vld [vmem:[#allocation2 + $0x1a8] sm:$0xff]
    %v405 = vld [vmem:[#allocation2 + $0x1b0] sm:$0xff]
    %v406 = vld [vmem:[#allocation2 + $0x1b8] sm:$0xff]
    %v407 = vld [vmem:[#allocation2 + $0x1c0] sm:$0xff]
    %v408 = vld [vmem:[#allocation2 + $0x1c8] sm:$0xff]
    %v409 = vld [vmem:[#allocation2 + $0x1d0] sm:$0xff]
    %v410 = vld [vmem:[#allocation2 + $0x1d8] sm:$0xff]
    %v411 = vld [vmem:[#allocation2 + $0x1e0] sm:$0xff]
    %v412 = vld [vmem:[#allocation2 + $0x1e8] sm:$0xff]
    %v413 = vld [vmem:[#allocation2 + $0x1f0] sm:$0xff]
    %v414 = vld [vmem:[#allocation2 + $0x1f8] sm:$0xff]
    %v415 = vld [vmem:[#allocation2 + $0x200] sm:$0xff]
    %v416 = vld [vmem:[#allocation2 + $0x208] sm:$0xff]
    %v417 = vld [vmem:[#allocation2 + $0x210] sm:$0xff]
    %v418 = vld [vmem:[#allocation2 + $0x218] sm:$0xff]
    %v419 = vld [vmem:[#allocation2 + $0x220] sm:$0xff]
    %v420 = vld [vmem:[#allocation2 + $0x228] sm:$0xff]
    %v421 = vld [vmem:[#allocation2 + $0x230] sm:$0xff]
    %v422 = vld [vmem:[#allocation2 + $0x238] sm:$0xff]
    %v423 = vld [vmem:[#allocation2 + $0x240] sm:$0xff]
    %v424 = vld [vmem:[#allocation2 + $0x248] sm:$0xff]
    %v425 = vld [vmem:[#allocation2 + $0x250] sm:$0xff]
    %v426 = vld [vmem:[#allocation2 + $0x258] sm:$0xff]
    %v427 = vld [vmem:[#allocation2 + $0x260] sm:$0xff]
    %v428 = vld [vmem:[#allocation2 + $0x268] sm:$0xff]
    %v429 = vld [vmem:[#allocation2 + $0x270] sm:$0xff]
    %v430 = vld [vmem:[#allocation2 + $0x278] sm:$0xff]
    %v431 = vld [vmem:[#allocation2 + $0x280] sm:$0xff]
    %v432 = vld [vmem:[#allocation2 + $0x288] sm:$0xff]
    %v433 = vld [vmem:[#allocation2 + $0x290] sm:$0xff]
    %v434 = vld [vmem:[#allocation2 + $0x298] sm:$0xff]
    %v435 = vld [vmem:[#allocation2 + $0x2a0] sm:$0xff]
    %v436 = vld [vmem:[#allocation2 + $0x2a8] sm:$0xff]
    %v437 = vld [vmem:[#allocation2 + $0x2b0] sm:$0xff]
    %v438 = vld [vmem:[#allocation2 + $0x2b8] sm:$0xff]
    %v439 = vld [vmem:[#allocation2 + $0x2c0] sm:$0xff]
    %v440 = vld [vmem:[#allocation2 + $0x2c8] sm:$0xff]
    %v441 = vld [vmem:[#allocation2 + $0x2d0] sm:$0xff]
    %v442 = vld [vmem:[#allocation2 + $0x2d8] sm:$0xff]
    %v443 = vld [vmem:[#allocation2 + $0x2e0] sm:$0xff]
    %v444 = vld [vmem:[#allocation2 + $0x2e8] sm:$0xff]
    %v445 = vld [vmem:[#allocation2 + $0x2f0] sm:$0xff]
    %v446 = vld [vmem:[#allocation2 + $0x2f8] sm:$0xff]
    %v447 = vld [vmem:[%s5] sm:$0x3]
    %v449 = vlaneseq
    %v450 = vshrl.u32 %v449, 7
    %v451 = vsub.s32 0, %v450
    %v452 = vrot.slane %v447, %v451
    %v453 = vlaneseq
    %v454 = vshrl.u32 %v453, 7
    %v455 = vsub.s32 1, %v454
    %v456 = vrot.slane %v447, %v455
    %v555 = vunpack.c.l.b16 %v351
    %v556 = vunpack.c.h.b16 %v351
    %v557 = vunpack.c.l.b16 %v352
    %v558 = vunpack.c.h.b16 %v352
    %v559 = vunpack.c.l.b16 %v353
    %v560 = vunpack.c.h.b16 %v353
    %v561 = vunpack.c.l.b16 %v354
    %v562 = vunpack.c.h.b16 %v354
    %v563 = vunpack.c.l.b16 %v355
    %v564 = vunpack.c.h.b16 %v355
    %v565 = vunpack.c.l.b16 %v356
    %v566 = vunpack.c.h.b16 %v356
    %v567 = vunpack.c.l.b16 %v357
    %v568 = vunpack.c.h.b16 %v357
    %v569 = vunpack.c.l.b16 %v358
    %v570 = vunpack.c.h.b16 %v358
    %v571 = vunpack.c.l.b16 %v359
    %v572 = vunpack.c.h.b16 %v359
    %v573 = vunpack.c.l.b16 %v360
    %v574 = vunpack.c.h.b16 %v360
    %v575 = vunpack.c.l.b16 %v361
    %v576 = vunpack.c.h.b16 %v361
    %v577 = vunpack.c.l.b16 %v362
    %v578 = vunpack.c.h.b16 %v362
    %v579 = vunpack.c.l.b16 %v363
    %v580 = vunpack.c.h.b16 %v363
    %v581 = vunpack.c.l.b16 %v364
    %v582 = vunpack.c.h.b16 %v364
    %v583 = vunpack.c.l.b16 %v365
    %v584 = vunpack.c.h.b16 %v365
    %v585 = vunpack.c.l.b16 %v366
    %v586 = vunpack.c.h.b16 %v366
    %v587 = vunpack.c.l.b16 %v367
    %v588 = vunpack.c.h.b16 %v367
    %v589 = vunpack.c.l.b16 %v368
    %v590 = vunpack.c.h.b16 %v368
    %v591 = vunpack.c.l.b16 %v369
    %v592 = vunpack.c.h.b16 %v369
    %v593 = vunpack.c.l.b16 %v370
    %v594 = vunpack.c.h.b16 %v370
    %v595 = vunpack.c.l.b16 %v371
    %v596 = vunpack.c.h.b16 %v371
    %v597 = vunpack.c.l.b16 %v372
    %v598 = vunpack.c.h.b16 %v372
    %v599 = vunpack.c.l.b16 %v373
    %v600 = vunpack.c.h.b16 %v373
    %v601 = vunpack.c.l.b16 %v374
    %v602 = vunpack.c.h.b16 %v374
    %v603 = vunpack.c.l.b16 %v375
    %v604 = vunpack.c.h.b16 %v375
    %v605 = vunpack.c.l.b16 %v376
    %v606 = vunpack.c.h.b16 %v376
    %v607 = vunpack.c.l.b16 %v377
    %v608 = vunpack.c.h.b16 %v377
    %v609 = vunpack.c.l.b16 %v378
    %v610 = vunpack.c.h.b16 %v378
    %v611 = vunpack.c.l.b16 %v379
    %v612 = vunpack.c.h.b16 %v379
    %v613 = vunpack.c.l.b16 %v380
    %v614 = vunpack.c.h.b16 %v380
    %v615 = vunpack.c.l.b16 %v381
    %v616 = vunpack.c.h.b16 %v381
    %v617 = vunpack.c.l.b16 %v382
    %v618 = vunpack.c.h.b16 %v382
    %v619 = vunpack.c.l.b16 %v383
    %v620 = vunpack.c.h.b16 %v383
    %v621 = vunpack.c.l.b16 %v384
    %v622 = vunpack.c.h.b16 %v384
    %v623 = vunpack.c.l.b16 %v385
    %v624 = vunpack.c.h.b16 %v385
    %v625 = vunpack.c.l.b16 %v386
    %v626 = vunpack.c.h.b16 %v386
    %v627 = vunpack.c.l.b16 %v387
    %v628 = vunpack.c.h.b16 %v387
    %v629 = vunpack.c.l.b16 %v388
    %v630 = vunpack.c.h.b16 %v388
    %v631 = vunpack.c.l.b16 %v389
    %v632 = vunpack.c.h.b16 %v389
    %v633 = vunpack.c.l.b16 %v390
    %v634 = vunpack.c.h.b16 %v390
    %v635 = vunpack.c.l.b16 %v391
    %v636 = vunpack.c.h.b16 %v391
    %v637 = vunpack.c.l.b16 %v392
    %v638 = vunpack.c.h.b16 %v392
    %v639 = vunpack.c.l.b16 %v393
    %v640 = vunpack.c.h.b16 %v393
    %v641 = vunpack.c.l.b16 %v394
    %v642 = vunpack.c.h.b16 %v394
    %v643 = vunpack.c.l.b16 %v395
    %v644 = vunpack.c.h.b16 %v395
    %v645 = vunpack.c.l.b16 %v396
    %v646 = vunpack.c.h.b16 %v396
    %v647 = vunpack.c.l.b16 %v397
    %v648 = vunpack.c.h.b16 %v397
    %v649 = vunpack.c.l.b16 %v398
    %v650 = vunpack.c.h.b16 %v398
    %v651 = vunpack.c.l.b16 %v399
    %v652 = vunpack.c.h.b16 %v399
    %v653 = vunpack.c.l.b16 %v400
    %v654 = vunpack.c.h.b16 %v400
    %v655 = vunpack.c.l.b16 %v401
    %v656 = vunpack.c.h.b16 %v401
    %v657 = vunpack.c.l.b16 %v402
    %v658 = vunpack.c.h.b16 %v402
    %v659 = vunpack.c.l.b16 %v403
    %v660 = vunpack.c.h.b16 %v403
    %v661 = vunpack.c.l.b16 %v404
    %v662 = vunpack.c.h.b16 %v404
    %v663 = vunpack.c.l.b16 %v405
    %v664 = vunpack.c.h.b16 %v405
    %v665 = vunpack.c.l.b16 %v406
    %v666 = vunpack.c.h.b16 %v406
    %v667 = vunpack.c.l.b16 %v407
    %v668 = vunpack.c.h.b16 %v407
    %v669 = vunpack.c.l.b16 %v408
    %v670 = vunpack.c.h.b16 %v408
    %v671 = vunpack.c.l.b16 %v409
    %v672 = vunpack.c.h.b16 %v409
    %v673 = vunpack.c.l.b16 %v410
    %v674 = vunpack.c.h.b16 %v410
    %v675 = vunpack.c.l.b16 %v411
    %v676 = vunpack.c.h.b16 %v411
    %v677 = vunpack.c.l.b16 %v412
    %v678 = vunpack.c.h.b16 %v412
    %v679 = vunpack.c.l.b16 %v413
    %v680 = vunpack.c.h.b16 %v413
    %v681 = vunpack.c.l.b16 %v414
    %v682 = vunpack.c.h.b16 %v414
    %v683 = vunpack.c.l.b16 %v415
    %v684 = vunpack.c.h.b16 %v415
    %v685 = vunpack.c.l.b16 %v416
    %v686 = vunpack.c.h.b16 %v416
    %v687 = vunpack.c.l.b16 %v417
    %v688 = vunpack.c.h.b16 %v417
    %v689 = vunpack.c.l.b16 %v418
    %v690 = vunpack.c.h.b16 %v418
    %v691 = vunpack.c.l.b16 %v419
    %v692 = vunpack.c.h.b16 %v419
    %v693 = vunpack.c.l.b16 %v420
    %v694 = vunpack.c.h.b16 %v420
    %v695 = vunpack.c.l.b16 %v421
    %v696 = vunpack.c.h.b16 %v421
    %v697 = vunpack.c.l.b16 %v422
    %v698 = vunpack.c.h.b16 %v422
    %v699 = vunpack.c.l.b16 %v423
    %v700 = vunpack.c.h.b16 %v423
    %v701 = vunpack.c.l.b16 %v424
    %v702 = vunpack.c.h.b16 %v424
    %v703 = vunpack.c.l.b16 %v425
    %v704 = vunpack.c.h.b16 %v425
    %v705 = vunpack.c.l.b16 %v426
    %v706 = vunpack.c.h.b16 %v426
    %v707 = vunpack.c.l.b16 %v427
    %v708 = vunpack.c.h.b16 %v427
    %v709 = vunpack.c.l.b16 %v428
    %v710 = vunpack.c.h.b16 %v428
    %v711 = vunpack.c.l.b16 %v429
    %v712 = vunpack.c.h.b16 %v429
    %v713 = vunpack.c.l.b16 %v430
    %v714 = vunpack.c.h.b16 %v430
    %v715 = vunpack.c.l.b16 %v431
    %v716 = vunpack.c.h.b16 %v431
    %v717 = vunpack.c.l.b16 %v432
    %v718 = vunpack.c.h.b16 %v432
    %v719 = vunpack.c.l.b16 %v433
    %v720 = vunpack.c.h.b16 %v433
    %v721 = vunpack.c.l.b16 %v434
    %v722 = vunpack.c.h.b16 %v434
    %v723 = vunpack.c.l.b16 %v435
    %v724 = vunpack.c.h.b16 %v435
    %v725 = vunpack.c.l.b16 %v436
    %v726 = vunpack.c.h.b16 %v436
    %v727 = vunpack.c.l.b16 %v437
    %v728 = vunpack.c.h.b16 %v437
    %v729 = vunpack.c.l.b16 %v438
    %v730 = vunpack.c.h.b16 %v438
    %v731 = vunpack.c.l.b16 %v439
    %v732 = vunpack.c.h.b16 %v439
    %v733 = vunpack.c.l.b16 %v440
    %v734 = vunpack.c.h.b16 %v440
    %v735 = vunpack.c.l.b16 %v441
    %v736 = vunpack.c.h.b16 %v441
    %v737 = vunpack.c.l.b16 %v442
    %v738 = vunpack.c.h.b16 %v442
    %v739 = vunpack.c.l.b16 %v443
    %v740 = vunpack.c.h.b16 %v443
    %v741 = vunpack.c.l.b16 %v444
    %v742 = vunpack.c.h.b16 %v444
    %v743 = vunpack.c.l.b16 %v445
    %v744 = vunpack.c.h.b16 %v445
    %v745 = vunpack.c.l.b16 %v446
    %v746 = vunpack.c.h.b16 %v446
    %v747 = vpack.c.b16 %v557, %v555
    %v748 = vpack.c.b16 %v558, %v556
    %v749 = vpack.c.b16 %v561, %v559
    %v750 = vpack.c.b16 %v562, %v560
    %v751 = vpack.c.b16 %v565, %v563
    %v752 = vpack.c.b16 %v566, %v564
    %v753 = vpack.c.b16 %v569, %v567
    %v754 = vpack.c.b16 %v570, %v568
    %v755 = vpack.c.b16 %v573, %v571
    %v756 = vpack.c.b16 %v574, %v572
    %v757 = vpack.c.b16 %v577, %v575
    %v758 = vpack.c.b16 %v578, %v576
    %v759 = vpack.c.b16 %v581, %v579
    %v760 = vpack.c.b16 %v582, %v580
    %v761 = vpack.c.b16 %v585, %v583
    %v762 = vpack.c.b16 %v586, %v584
    %v763 = vpack.c.b16 %v589, %v587
    %v764 = vpack.c.b16 %v590, %v588
    %v765 = vpack.c.b16 %v593, %v591
    %v766 = vpack.c.b16 %v594, %v592
    %v767 = vpack.c.b16 %v597, %v595
    %v768 = vpack.c.b16 %v598, %v596
    %v769 = vpack.c.b16 %v601, %v599
    %v770 = vpack.c.b16 %v602, %v600
    %v771 = vpack.c.b16 %v605, %v603
    %v772 = vpack.c.b16 %v606, %v604
    %v773 = vpack.c.b16 %v609, %v607
    %v774 = vpack.c.b16 %v610, %v608
    %v775 = vpack.c.b16 %v613, %v611
    %v776 = vpack.c.b16 %v614, %v612
    %v777 = vpack.c.b16 %v617, %v615
    %v778 = vpack.c.b16 %v618, %v616
    %v779 = vpack.c.b16 %v621, %v619
    %v780 = vpack.c.b16 %v622, %v620
    %v781 = vpack.c.b16 %v625, %v623
    %v782 = vpack.c.b16 %v626, %v624
    %v783 = vpack.c.b16 %v629, %v627
    %v784 = vpack.c.b16 %v630, %v628
    %v785 = vpack.c.b16 %v633, %v631
    %v786 = vpack.c.b16 %v634, %v632
    %v787 = vpack.c.b16 %v637, %v635
    %v788 = vpack.c.b16 %v638, %v636
    %v789 = vpack.c.b16 %v641, %v639
    %v790 = vpack.c.b16 %v642, %v640
    %v791 = vpack.c.b16 %v645, %v643
    %v792 = vpack.c.b16 %v646, %v644
    %v793 = vpack.c.b16 %v649, %v647
    %v794 = vpack.c.b16 %v650, %v648
    %v795 = vpack.c.b16 %v653, %v651
    %v796 = vpack.c.b16 %v654, %v652
    %v797 = vpack.c.b16 %v657, %v655
    %v798 = vpack.c.b16 %v658, %v656
    %v799 = vpack.c.b16 %v661, %v659
    %v800 = vpack.c.b16 %v662, %v660
    %v801 = vpack.c.b16 %v665, %v663
    %v802 = vpack.c.b16 %v666, %v664
    %v803 = vpack.c.b16 %v669, %v667
    %v804 = vpack.c.b16 %v670, %v668
    %v805 = vpack.c.b16 %v673, %v671
    %v806 = vpack.c.b16 %v674, %v672
    %v807 = vpack.c.b16 %v677, %v675
    %v808 = vpack.c.b16 %v678, %v676
    %v809 = vpack.c.b16 %v681, %v679
    %v810 = vpack.c.b16 %v682, %v680
    %v811 = vpack.c.b16 %v685, %v683
    %v812 = vpack.c.b16 %v686, %v684
    %v813 = vpack.c.b16 %v689, %v687
    %v814 = vpack.c.b16 %v690, %v688
    %v815 = vpack.c.b16 %v693, %v691
    %v816 = vpack.c.b16 %v694, %v692
    %v817 = vpack.c.b16 %v697, %v695
    %v818 = vpack.c.b16 %v698, %v696
    %v819 = vpack.c.b16 %v701, %v699
    %v820 = vpack.c.b16 %v702, %v700
    %v821 = vpack.c.b16 %v705, %v703
    %v822 = vpack.c.b16 %v706, %v704
    %v823 = vpack.c.b16 %v709, %v707
    %v824 = vpack.c.b16 %v710, %v708
    %v825 = vpack.c.b16 %v713, %v711
    %v826 = vpack.c.b16 %v714, %v712
    %v827 = vpack.c.b16 %v717, %v715
    %v828 = vpack.c.b16 %v718, %v716
    %v829 = vpack.c.b16 %v721, %v719
    %v830 = vpack.c.b16 %v722, %v720
    %v831 = vpack.c.b16 %v725, %v723
    %v832 = vpack.c.b16 %v726, %v724
    %v833 = vpack.c.b16 %v729, %v727
    %v834 = vpack.c.b16 %v730, %v728
    %v835 = vpack.c.b16 %v733, %v731
    %v836 = vpack.c.b16 %v734, %v732
    %v837 = vpack.c.b16 %v737, %v735
    %v838 = vpack.c.b16 %v738, %v736
    %v839 = vpack.c.b16 %v741, %v739
    %v840 = vpack.c.b16 %v742, %v740
    %v841 = vpack.c.b16 %v745, %v743
    %v842 = vpack.c.b16 %v746, %v744
    %939 = vmatprep.subr.bf16.mxu0 %v748
    %940 = vmatpush1.bf16.msra.mxu0 %v747
    %941 = vmatprep.subr.bf16.mxu0 %v750
    %942 = vmatpush1.bf16.msra.mxu0 %v749
    %943 = vmatprep.subr.bf16.mxu0 %v752
    %944 = vmatpush1.bf16.msra.mxu0 %v751
    %945 = vmatprep.subr.bf16.mxu0 %v754
    %946 = vmatpush1.bf16.msra.mxu0 %v753
    %947 = vmatprep.subr.bf16.mxu0 %v756
    %948 = vmatpush1.bf16.msra.mxu0 %v755
    %949 = vmatprep.subr.bf16.mxu0 %v758
    %950 = vmatpush1.bf16.msra.mxu0 %v757
    %951 = vmatprep.subr.bf16.mxu0 %v760
    %952 = vmatpush1.bf16.msra.mxu0 %v759
    %953 = vmatprep.subr.bf16.mxu0 %v762
    %954 = vmatpush1.bf16.msra.mxu0 %v761
    %955 = vmatprep.subr.bf16.mxu0 %v764
    %956 = vmatpush1.bf16.msra.mxu0 %v763
    %957 = vmatprep.subr.bf16.mxu0 %v766
    %958 = vmatpush1.bf16.msra.mxu0 %v765
    %959 = vmatprep.subr.bf16.mxu0 %v768
    %960 = vmatpush1.bf16.msra.mxu0 %v767
    %961 = vmatprep.subr.bf16.mxu0 %v770
    %962 = vmatpush1.bf16.msra.mxu0 %v769
    %963 = vmatprep.subr.bf16.mxu0 %v772
    %964 = vmatpush1.bf16.msra.mxu0 %v771
    %965 = vmatprep.subr.bf16.mxu0 %v774
    %966 = vmatpush1.bf16.msra.mxu0 %v773
    %967 = vmatprep.subr.bf16.mxu0 %v776
    %968 = vmatpush1.bf16.msra.mxu0 %v775
    %969 = vmatprep.subr.bf16.mxu0 %v778
    %970 = vmatpush1.bf16.msra.mxu0 %v777
    %971 = vmatprep.mubr.bf16.mxu0 %v346
    %972 = vmatmul.mubr.bf16.gmra.mrb[0].mxu0 %v345
    %v973 = vpop.f32.mrb[0].mxu0
    %v974 = vadd.f32 %v452, %v973
    %v975 = vpop.f32.mrb[0].mxu0
    %v976 = vadd.f32 %v456, %v975
    %v977 = vpop.f32.mrb[0].mxu0
    %v978 = vpop.f32.mrb[0].mxu0
    %979 = vdwg.mxu0
    %980 = vmatprep.subr.bf16.mxu0 %v780
    %981 = vmatpush1.bf16.msra.mxu0 %v779
    %982 = vmatprep.subr.bf16.mxu0 %v782
    %983 = vmatpush1.bf16.msra.mxu0 %v781
    %984 = vmatprep.subr.bf16.mxu0 %v784
    %985 = vmatpush1.bf16.msra.mxu0 %v783
    %986 = vmatprep.subr.bf16.mxu0 %v786
    %987 = vmatpush1.bf16.msra.mxu0 %v785
    %988 = vmatprep.subr.bf16.mxu0 %v788
    %989 = vmatpush1.bf16.msra.mxu0 %v787
    %990 = vmatprep.subr.bf16.mxu0 %v790
    %991 = vmatpush1.bf16.msra.mxu0 %v789
    %992 = vmatprep.subr.bf16.mxu0 %v792
    %993 = vmatpush1.bf16.msra.mxu0 %v791
    %994 = vmatprep.subr.bf16.mxu0 %v794
    %995 = vmatpush1.bf16.msra.mxu0 %v793
    %996 = vmatprep.subr.bf16.mxu0 %v796
    %997 = vmatpush1.bf16.msra.mxu0 %v795
    %998 = vmatprep.subr.bf16.mxu0 %v798
    %999 = vmatpush1.bf16.msra.mxu0 %v797
    %1000 = vmatprep.subr.bf16.mxu0 %v800
    %1001 = vmatpush1.bf16.msra.mxu0 %v799
    %1002 = vmatprep.subr.bf16.mxu0 %v802
    %1003 = vmatpush1.bf16.msra.mxu0 %v801
    %1004 = vmatprep.subr.bf16.mxu0 %v804
    %1005 = vmatpush1.bf16.msra.mxu0 %v803
    %1006 = vmatprep.subr.bf16.mxu0 %v806
    %1007 = vmatpush1.bf16.msra.mxu0 %v805
    %1008 = vmatprep.subr.bf16.mxu0 %v808
    %1009 = vmatpush1.bf16.msra.mxu0 %v807
    %1010 = vmatprep.subr.bf16.mxu0 %v810
    %1011 = vmatpush1.bf16.msra.mxu0 %v809
    %1012 = vmatprep.mubr.bf16.mxu0 %v348
    %1013 = vmatmul.mubr.bf16.gmra.mrb[0].mxu0 %v347
    %v1014 = vpop.f32.mrb[0].mxu0
    %v1015 = vadd.f32 %v974, %v1014
    %v1016 = vpop.f32.mrb[0].mxu0
    %v1017 = vadd.f32 %v976, %v1016
    %v1018 = vpop.f32.mrb[0].mxu0
    %v1019 = vpop.f32.mrb[0].mxu0
    %1020 = vdwg.mxu0
    %1021 = vmatprep.subr.bf16.mxu0 %v812
    %1022 = vmatpush1.bf16.msra.mxu0 %v811
    %1023 = vmatprep.subr.bf16.mxu0 %v814
    %1024 = vmatpush1.bf16.msra.mxu0 %v813
    %1025 = vmatprep.subr.bf16.mxu0 %v816
    %1026 = vmatpush1.bf16.msra.mxu0 %v815
    %1027 = vmatprep.subr.bf16.mxu0 %v818
    %1028 = vmatpush1.bf16.msra.mxu0 %v817
    %1029 = vmatprep.subr.bf16.mxu0 %v820
    %1030 = vmatpush1.bf16.msra.mxu0 %v819
    %1031 = vmatprep.subr.bf16.mxu0 %v822
    %1032 = vmatpush1.bf16.msra.mxu0 %v821
    %1033 = vmatprep.subr.bf16.mxu0 %v824
    %1034 = vmatpush1.bf16.msra.mxu0 %v823
    %1035 = vmatprep.subr.bf16.mxu0 %v826
    %1036 = vmatpush1.bf16.msra.mxu0 %v825
    %1037 = vmatprep.subr.bf16.mxu0 %v828
    %1038 = vmatpush1.bf16.msra.mxu0 %v827
    %1039 = vmatprep.subr.bf16.mxu0 %v830
    %1040 = vmatpush1.bf16.msra.mxu0 %v829
    %1041 = vmatprep.subr.bf16.mxu0 %v832
    %1042 = vmatpush1.bf16.msra.mxu0 %v831
    %1043 = vmatprep.subr.bf16.mxu0 %v834
    %1044 = vmatpush1.bf16.msra.mxu0 %v833
    %1045 = vmatprep.subr.bf16.mxu0 %v836
    %1046 = vmatpush1.bf16.msra.mxu0 %v835
    %1047 = vmatprep.subr.bf16.mxu0 %v838
    %1048 = vmatpush1.bf16.msra.mxu0 %v837
    %1049 = vmatprep.subr.bf16.mxu0 %v840
    %1050 = vmatpush1.bf16.msra.mxu0 %v839
    %1051 = vmatprep.subr.bf16.mxu0 %v842
    %1052 = vmatpush1.bf16.msra.mxu0 %v841
    %1053 = vmatprep.mubr.bf16.mxu0 %v350
    %1054 = vmatmul.mubr.bf16.gmra.mrb[0].mxu0 %v349
    %v1055 = vpop.f32.mrb[0].mxu0
    %v1056 = vadd.f32 %v1015, %v1055
    %v1057 = vpop.f32.mrb[0].mxu0
    %v1058 = vadd.f32 %v1017, %v1057
    %v1059 = vpop.f32.mrb[0].mxu0
    %v1060 = vpop.f32.mrb[0].mxu0
    %1061 = vdwg.mxu0
    %v1062 = vld [vmem:[%s6] sm:$0x3]
    %v1063 = vld [vmem:[%s7] sm:$0x3]
    %v1064 = vrot.slane %v1056, 4
    %v1065 = vadd.f32 %v1056, %v1064
    %v1066 = vrot.slane %v1065, 2
    %v1067 = vadd.f32 %v1065, %v1066
    %v1068 = vrot.slane %v1067, 1
    %v1069 = vadd.f32 %v1067, %v1068
    %v1070 = vrot.slane %v1058, 4
    %v1071 = vadd.f32 %v1058, %v1070
    %v1072 = vrot.slane %v1071, 2
    %v1073 = vadd.f32 %v1071, %v1072
    %v1074 = vrot.slane %v1073, 1
    %v1075 = vadd.f32 %v1073, %v1074
    %v1076 = vmul.f32 %v1069, %v186
    %v1077 = vmul.f32 %v1075, %v186
    %v1078 = vsub.f32 %v1056, %v1076
    %v1079 = vsub.f32 %v1058, %v1077
    %v1080 = vmul.f32 %v1078, %v1078
    %v1081 = vmul.f32 %v1079, %v1079
    %v1082 = vrot.slane %v1080, 4
    %v1083 = vadd.f32 %v1080, %v1082
    %v1084 = vrot.slane %v1083, 2
    %v1085 = vadd.f32 %v1083, %v1084
    %v1086 = vrot.slane %v1085, 1
    %v1087 = vadd.f32 %v1085, %v1086
    %v1088 = vrot.slane %v1081, 4
    %v1089 = vadd.f32 %v1081, %v1088
    %v1090 = vrot.slane %v1089, 2
    %v1091 = vadd.f32 %v1089, %v1090
    %v1092 = vrot.slane %v1091, 1
    %v1093 = vadd.f32 %v1091, %v1092
    %v1094 = vmul.f32 %v1087, %v186
    %v1095 = vmul.f32 %v1093, %v186
    %v1097 = vlaneseq
    %v1098 = vshrl.u32 %v1097, 7
    %v1099 = vsub.s32 0, %v1098
    %v1100 = vrot.slane %v1062, %v1099
    %v1101 = vlaneseq
    %v1102 = vshrl.u32 %v1101, 7
    %v1103 = vsub.s32 1, %v1102
    %v1104 = vrot.slane %v1062, %v1103
    %v1107 = vmul.f32 %v1100, %v1078
    %v1108 = vmul.f32 %v1104, %v1079
    %v1109 = vadd.f32 %v1094, 1e-05
    %v1110 = vadd.f32 %v1095, 1e-05
    %v1111 = vrsqrt.pop %v1109
    %v1112 = vrsqrt.pop %v1110
    %v1113 = vmul.f32 %v1107, %v1111
    %v1114 = vmul.f32 %v1108, %v1112
    %v1116 = vlaneseq
    %v1117 = vshrl.u32 %v1116, 7
    %v1118 = vsub.s32 0, %v1117
    %v1119 = vrot.slane %v1063, %v1118
    %v1120 = vlaneseq
    %v1121 = vshrl.u32 %v1120, 7
    %v1122 = vsub.s32 1, %v1121
    %v1123 = vrot.slane %v1063, %v1122
    %v1126 = vadd.f32 %v1113, %v1119
    %v1127 = vadd.f32 %v1114, %v1123
    %v1128 = vmax.f32 %v1126, 0.0
    %v1129 = vmax.f32 %v1127, 0.0
    %v1130 = vpack.c.bf16 %v1128, %v1128
    %v1131 = vpack.c.bf16 %v1129, %v1129
    %v1132 = vld [vmem:[%s8] sm:$0xff]
    %v1133 = vld [vmem:[%s8 + $0x8] sm:$0xff]
    %v1134 = vld [vmem:[%s8 + $0x10] sm:$0xff]
    %v1135 = vld [vmem:[%s8 + $0x18] sm:$0xff]
    %v1136 = vld [vmem:[%s8 + $0x20] sm:$0xff]
    %v1137 = vld [vmem:[%s8 + $0x28] sm:$0xff]
    %v1138 = vld [vmem:[%s8 + $0x30] sm:$0xff]
    %v1139 = vld [vmem:[%s8 + $0x38] sm:$0xff]
    %v1140 = vld [vmem:[%s8 + $0x40] sm:$0xff]
    %v1141 = vld [vmem:[%s8 + $0x48] sm:$0xff]
    %v1142 = vld [vmem:[%s8 + $0x50] sm:$0xff]
    %v1143 = vld [vmem:[%s8 + $0x58] sm:$0xff]
    %v1144 = vld [vmem:[%s8 + $0x60] sm:$0xff]
    %v1145 = vld [vmem:[%s8 + $0x68] sm:$0xff]
    %v1146 = vld [vmem:[%s8 + $0x70] sm:$0xff]
    %v1147 = vld [vmem:[%s8 + $0x78] sm:$0xff]
    %v1148 = vld [vmem:[%s8 + $0x80] sm:$0xff]
    %v1149 = vld [vmem:[%s8 + $0x88] sm:$0xff]
    %v1150 = vld [vmem:[%s8 + $0x90] sm:$0xff]
    %v1151 = vld [vmem:[%s8 + $0x98] sm:$0xff]
    %v1152 = vld [vmem:[%s8 + $0xa0] sm:$0xff]
    %v1153 = vld [vmem:[%s8 + $0xa8] sm:$0xff]
    %v1154 = vld [vmem:[%s8 + $0xb0] sm:$0xff]
    %v1155 = vld [vmem:[%s8 + $0xb8] sm:$0xff]
    %v1156 = vld [vmem:[%s8 + $0xc0] sm:$0xff]
    %v1157 = vld [vmem:[%s8 + $0xc8] sm:$0xff]
    %v1158 = vld [vmem:[%s8 + $0xd0] sm:$0xff]
    %v1159 = vld [vmem:[%s8 + $0xd8] sm:$0xff]
    %v1160 = vld [vmem:[%s8 + $0xe0] sm:$0xff]
    %v1161 = vld [vmem:[%s8 + $0xe8] sm:$0xff]
    %v1162 = vld [vmem:[%s8 + $0xf0] sm:$0xff]
    %v1163 = vld [vmem:[%s8 + $0xf8] sm:$0xff]
    %v1164 = vld [vmem:[%s9] sm:$0x3]
    %v1166 = vlaneseq
    %v1167 = vshrl.u32 %v1166, 7
    %v1168 = vsub.s32 0, %v1167
    %v1169 = vrot.slane %v1164, %v1168
    %v1170 = vlaneseq
    %v1171 = vshrl.u32 %v1170, 7
    %v1172 = vsub.s32 1, %v1171
    %v1173 = vrot.slane %v1164, %v1172
    %v1208 = vunpack.c.l.b16 %v1132
    %v1209 = vunpack.c.h.b16 %v1132
    %v1210 = vunpack.c.l.b16 %v1133
    %v1211 = vunpack.c.h.b16 %v1133
    %v1212 = vunpack.c.l.b16 %v1134
    %v1213 = vunpack.c.h.b16 %v1134
    %v1214 = vunpack.c.l.b16 %v1135
    %v1215 = vunpack.c.h.b16 %v1135
    %v1216 = vunpack.c.l.b16 %v1136
    %v1217 = vunpack.c.h.b16 %v1136
    %v1218 = vunpack.c.l.b16 %v1137
    %v1219 = vunpack.c.h.b16 %v1137
    %v1220 = vunpack.c.l.b16 %v1138
    %v1221 = vunpack.c.h.b16 %v1138
    %v1222 = vunpack.c.l.b16 %v1139
    %v1223 = vunpack.c.h.b16 %v1139
    %v1224 = vunpack.c.l.b16 %v1140
    %v1225 = vunpack.c.h.b16 %v1140
    %v1226 = vunpack.c.l.b16 %v1141
    %v1227 = vunpack.c.h.b16 %v1141
    %v1228 = vunpack.c.l.b16 %v1142
    %v1229 = vunpack.c.h.b16 %v1142
    %v1230 = vunpack.c.l.b16 %v1143
    %v1231 = vunpack.c.h.b16 %v1143
    %v1232 = vunpack.c.l.b16 %v1144
    %v1233 = vunpack.c.h.b16 %v1144
    %v1234 = vunpack.c.l.b16 %v1145
    %v1235 = vunpack.c.h.b16 %v1145
    %v1236 = vunpack.c.l.b16 %v1146
    %v1237 = vunpack.c.h.b16 %v1146
    %v1238 = vunpack.c.l.b16 %v1147
    %v1239 = vunpack.c.h.b16 %v1147
    %v1240 = vunpack.c.l.b16 %v1148
    %v1241 = vunpack.c.h.b16 %v1148
    %v1242 = vunpack.c.l.b16 %v1149
    %v1243 = vunpack.c.h.b16 %v1149
    %v1244 = vunpack.c.l.b16 %v1150
    %v1245 = vunpack.c.h.b16 %v1150
    %v1246 = vunpack.c.l.b16 %v1151
    %v1247 = vunpack.c.h.b16 %v1151
    %v1248 = vunpack.c.l.b16 %v1152
    %v1249 = vunpack.c.h.b16 %v1152
    %v1250 = vunpack.c.l.b16 %v1153
    %v1251 = vunpack.c.h.b16 %v1153
    %v1252 = vunpack.c.l.b16 %v1154
    %v1253 = vunpack.c.h.b16 %v1154
    %v1254 = vunpack.c.l.b16 %v1155
    %v1255 = vunpack.c.h.b16 %v1155
    %v1256 = vunpack.c.l.b16 %v1156
    %v1257 = vunpack.c.h.b16 %v1156
    %v1258 = vunpack.c.l.b16 %v1157
    %v1259 = vunpack.c.h.b16 %v1157
    %v1260 = vunpack.c.l.b16 %v1158
    %v1261 = vunpack.c.h.b16 %v1158
    %v1262 = vunpack.c.l.b16 %v1159
    %v1263 = vunpack.c.h.b16 %v1159
    %v1264 = vunpack.c.l.b16 %v1160
    %v1265 = vunpack.c.h.b16 %v1160
    %v1266 = vunpack.c.l.b16 %v1161
    %v1267 = vunpack.c.h.b16 %v1161
    %v1268 = vunpack.c.l.b16 %v1162
    %v1269 = vunpack.c.h.b16 %v1162
    %v1270 = vunpack.c.l.b16 %v1163
    %v1271 = vunpack.c.h.b16 %v1163
    %v1272 = vpack.c.b16 %v1210, %v1208
    %v1273 = vpack.c.b16 %v1211, %v1209
    %v1274 = vpack.c.b16 %v1214, %v1212
    %v1275 = vpack.c.b16 %v1215, %v1213
    %v1276 = vpack.c.b16 %v1218, %v1216
    %v1277 = vpack.c.b16 %v1219, %v1217
    %v1278 = vpack.c.b16 %v1222, %v1220
    %v1279 = vpack.c.b16 %v1223, %v1221
    %v1280 = vpack.c.b16 %v1226, %v1224
    %v1281 = vpack.c.b16 %v1227, %v1225
    %v1282 = vpack.c.b16 %v1230, %v1228
    %v1283 = vpack.c.b16 %v1231, %v1229
    %v1284 = vpack.c.b16 %v1234, %v1232
    %v1285 = vpack.c.b16 %v1235, %v1233
    %v1286 = vpack.c.b16 %v1238, %v1236
    %v1287 = vpack.c.b16 %v1239, %v1237
    %v1288 = vpack.c.b16 %v1242, %v1240
    %v1289 = vpack.c.b16 %v1243, %v1241
    %v1290 = vpack.c.b16 %v1246, %v1244
    %v1291 = vpack.c.b16 %v1247, %v1245
    %v1292 = vpack.c.b16 %v1250, %v1248
    %v1293 = vpack.c.b16 %v1251, %v1249
    %v1294 = vpack.c.b16 %v1254, %v1252
    %v1295 = vpack.c.b16 %v1255, %v1253
    %v1296 = vpack.c.b16 %v1258, %v1256
    %v1297 = vpack.c.b16 %v1259, %v1257
    %v1298 = vpack.c.b16 %v1262, %v1260
    %v1299 = vpack.c.b16 %v1263, %v1261
    %v1300 = vpack.c.b16 %v1266, %v1264
    %v1301 = vpack.c.b16 %v1267, %v1265
    %v1302 = vpack.c.b16 %v1270, %v1268
    %v1303 = vpack.c.b16 %v1271, %v1269
    %1336 = vmatprep.subr.bf16.mxu0 %v1273
    %1337 = vmatpush1.bf16.msra.mxu0 %v1272
    %1338 = vmatprep.subr.bf16.mxu0 %v1275
    %1339 = vmatpush1.bf16.msra.mxu0 %v1274
    %1340 = vmatprep.subr.bf16.mxu0 %v1277
    %1341 = vmatpush1.bf16.msra.mxu0 %v1276
    %1342 = vmatprep.subr.bf16.mxu0 %v1279
    %1343 = vmatpush1.bf16.msra.mxu0 %v1278
    %1344 = vmatprep.subr.bf16.mxu0 %v1281
    %1345 = vmatpush1.bf16.msra.mxu0 %v1280
    %1346 = vmatprep.subr.bf16.mxu0 %v1283
    %1347 = vmatpush1.bf16.msra.mxu0 %v1282
    %1348 = vmatprep.subr.bf16.mxu0 %v1285
    %1349 = vmatpush1.bf16.msra.mxu0 %v1284
    %1350 = vmatprep.subr.bf16.mxu0 %v1287
    %1351 = vmatpush1.bf16.msra.mxu0 %v1286
    %1352 = vmatprep.subr.bf16.mxu0 %v1289
    %1353 = vmatpush1.bf16.msra.mxu0 %v1288
    %1354 = vmatprep.subr.bf16.mxu0 %v1291
    %1355 = vmatpush1.bf16.msra.mxu0 %v1290
    %1356 = vmatprep.subr.bf16.mxu0 %v1293
    %1357 = vmatpush1.bf16.msra.mxu0 %v1292
    %1358 = vmatprep.subr.bf16.mxu0 %v1295
    %1359 = vmatpush1.bf16.msra.mxu0 %v1294
    %1360 = vmatprep.subr.bf16.mxu0 %v1297
    %1361 = vmatpush1.bf16.msra.mxu0 %v1296
    %1362 = vmatprep.subr.bf16.mxu0 %v1299
    %1363 = vmatpush1.bf16.msra.mxu0 %v1298
    %1364 = vmatprep.subr.bf16.mxu0 %v1301
    %1365 = vmatpush1.bf16.msra.mxu0 %v1300
    %1366 = vmatprep.subr.bf16.mxu0 %v1303
    %1367 = vmatpush1.bf16.msra.mxu0 %v1302
    %1368 = vmatprep.mubr.bf16.mxu0 %v1131
    %1369 = vmatmul.mubr.bf16.gmra.mrb[0].mxu0 %v1130
    %v1370 = vpop.f32.mrb[0].mxu0
    %v1371 = vadd.f32 %v1169, %v1370
    %v1372 = vpop.f32.mrb[0].mxu0
    %v1373 = vadd.f32 %v1173, %v1372
    %v1374 = vpop.f32.mrb[0].mxu0
    %v1375 = vpop.f32.mrb[0].mxu0
    %1376 = vdwg.mxu0
    %v1377 = vld [vmem:[%s16] sm:$0xff]
    %v1378 = vmul.f32 %v1373, 0.5
    %v1379 = vmul.f32 %v1378, 1.442695
    %v1380 = vpow.pop %v1379
    %v1381 = vmul.f32 %v1377, %v1380
    %v1382 = vadd.f32 %v1371, %v1381
    %v1383 = vpack.c.bf16 %v1382, %v1382
    %v1384 = vld [vmem:[#allocation5] sm:$0xff]
    %v1385 = vld [vmem:[#allocation5 + $0x8] sm:$0xff]
    %v1386 = vld [vmem:[#allocation5 + $0x10] sm:$0xff]
    %v1387 = vld [vmem:[#allocation5 + $0x18] sm:$0xff]
    %v1388 = vld [vmem:[#allocation5 + $0x20] sm:$0xff]
    %v1389 = vld [vmem:[#allocation5 + $0x28] sm:$0xff]
    %v1390 = vld [vmem:[#allocation5 + $0x30] sm:$0xff]
    %v1391 = vld [vmem:[#allocation5 + $0x38] sm:$0xff]
    %v1392 = vld [vmem:[#allocation5 + $0x40] sm:$0xff]
    %v1393 = vld [vmem:[#allocation5 + $0x48] sm:$0xff]
    %v1394 = vld [vmem:[#allocation5 + $0x50] sm:$0xff]
    %v1395 = vld [vmem:[#allocation5 + $0x58] sm:$0xff]
    %v1396 = vld [vmem:[#allocation5 + $0x60] sm:$0xff]
    %v1397 = vld [vmem:[#allocation5 + $0x68] sm:$0xff]
    %v1398 = vld [vmem:[#allocation5 + $0x70] sm:$0xff]
    %v1399 = vld [vmem:[#allocation5 + $0x78] sm:$0xff]
    %v1400 = vld [vmem:[%s11] sm:$0x3]
    %v1402 = vlaneseq
    %v1403 = vshrl.u32 %v1402, 7
    %v1404 = vsub.s32 0, %v1403
    %v1405 = vrot.slane %v1400, %v1404
    %v1406 = vlaneseq
    %v1407 = vshrl.u32 %v1406, 7
    %v1408 = vsub.s32 1, %v1407
    %v1409 = vrot.slane %v1400, %v1408
    %v1428 = vunpack.c.l.b16 %v1384
    %v1429 = vunpack.c.h.b16 %v1384
    %v1430 = vunpack.c.l.b16 %v1385
    %v1431 = vunpack.c.h.b16 %v1385
    %v1432 = vunpack.c.l.b16 %v1386
    %v1433 = vunpack.c.h.b16 %v1386
    %v1434 = vunpack.c.l.b16 %v1387
    %v1435 = vunpack.c.h.b16 %v1387
    %v1436 = vunpack.c.l.b16 %v1388
    %v1437 = vunpack.c.h.b16 %v1388
    %v1438 = vunpack.c.l.b16 %v1389
    %v1439 = vunpack.c.h.b16 %v1389
    %v1440 = vunpack.c.l.b16 %v1390
    %v1441 = vunpack.c.h.b16 %v1390
    %v1442 = vunpack.c.l.b16 %v1391
    %v1443 = vunpack.c.h.b16 %v1391
    %v1444 = vunpack.c.l.b16 %v1392
    %v1445 = vunpack.c.h.b16 %v1392
    %v1446 = vunpack.c.l.b16 %v1393
    %v1447 = vunpack.c.h.b16 %v1393
    %v1448 = vunpack.c.l.b16 %v1394
    %v1449 = vunpack.c.h.b16 %v1394
    %v1450 = vunpack.c.l.b16 %v1395
    %v1451 = vunpack.c.h.b16 %v1395
    %v1452 = vunpack.c.l.b16 %v1396
    %v1453 = vunpack.c.h.b16 %v1396
    %v1454 = vunpack.c.l.b16 %v1397
    %v1455 = vunpack.c.h.b16 %v1397
    %v1456 = vunpack.c.l.b16 %v1398
    %v1457 = vunpack.c.h.b16 %v1398
    %v1458 = vunpack.c.l.b16 %v1399
    %v1459 = vunpack.c.h.b16 %v1399
    %v1460 = vpack.c.b16 %v1430, %v1428
    %v1461 = vpack.c.b16 %v1431, %v1429
    %v1462 = vpack.c.b16 %v1434, %v1432
    %v1463 = vpack.c.b16 %v1435, %v1433
    %v1464 = vpack.c.b16 %v1438, %v1436
    %v1465 = vpack.c.b16 %v1439, %v1437
    %v1466 = vpack.c.b16 %v1442, %v1440
    %v1467 = vpack.c.b16 %v1443, %v1441
    %v1468 = vpack.c.b16 %v1446, %v1444
    %v1469 = vpack.c.b16 %v1447, %v1445
    %v1470 = vpack.c.b16 %v1450, %v1448
    %v1471 = vpack.c.b16 %v1451, %v1449
    %v1472 = vpack.c.b16 %v1454, %v1452
    %v1473 = vpack.c.b16 %v1455, %v1453
    %v1474 = vpack.c.b16 %v1458, %v1456
    %v1475 = vpack.c.b16 %v1459, %v1457
    %1492 = vmatprep.subr.bf16.mxu0 %v1461
    %1493 = vmatpush1.bf16.msra.mxu0 %v1460
    %1494 = vmatprep.subr.bf16.mxu0 %v1463
    %1495 = vmatpush1.bf16.msra.mxu0 %v1462
    %1496 = vmatprep.subr.bf16.mxu0 %v1465
    %1497 = vmatpush1.bf16.msra.mxu0 %v1464
    %1498 = vmatprep.subr.bf16.mxu0 %v1467
    %1499 = vmatpush1.bf16.msra.mxu0 %v1466
    %1500 = vmatprep.subr.bf16.mxu0 %v1469
    %1501 = vmatpush1.bf16.msra.mxu0 %v1468
    %1502 = vmatprep.subr.bf16.mxu0 %v1471
    %1503 = vmatpush1.bf16.msra.mxu0 %v1470
    %1504 = vmatprep.subr.bf16.mxu0 %v1473
    %1505 = vmatpush1.bf16.msra.mxu0 %v1472
    %1506 = vmatprep.subr.bf16.mxu0 %v1475
    %1507 = vmatpush1.bf16.msra.mxu0 %v1474
    %1508 = vmatprep.subr.bf16.mxu0 0
    %1509 = vmatpush1.bf16.msra.mxu0 0
    %1510 = vmatprep.subr.bf16.mxu0 0
    %1511 = vmatpush1.bf16.msra.mxu0 0
    %1512 = vmatprep.subr.bf16.mxu0 0
    %1513 = vmatpush1.bf16.msra.mxu0 0
    %1514 = vmatprep.subr.bf16.mxu0 0
    %1515 = vmatpush1.bf16.msra.mxu0 0
    %1516 = vmatprep.subr.bf16.mxu0 0
    %1517 = vmatpush1.bf16.msra.mxu0 0
    %1518 = vmatprep.subr.bf16.mxu0 0
    %1519 = vmatpush1.bf16.msra.mxu0 0
    %1520 = vmatprep.subr.bf16.mxu0 0
    %1521 = vmatpush1.bf16.msra.mxu0 0
    %1522 = vmatprep.subr.bf16.mxu0 0
    %1523 = vmatpush1.bf16.msra.mxu0 0
    %1524 = vmatprep.mubr.bf16.mxu0 0
    %1525 = vmatmul.mubr.bf16.gmra.mrb[0].mxu0 %v1383
    %v1526 = vpop.f32.mrb[0].mxu0
    %v1527 = vadd.f32 %v1405, %v1526
    %v1528 = vpop.f32.mrb[0].mxu0
    %v1529 = vadd.f32 %v1409, %v1528
    %v1530 = vpop.f32.mrb[0].mxu0
    %v1531 = vpop.f32.mrb[0].mxu0
    %1532 = vdwg.mxu0
    %v1533 = vmax.f32 %v1527, 0.0
    %v1534 = vmax.f32 %v1529, 0.0
    %v1535 = vpack.c.bf16 %v1533, %v1533
    %v1536 = vpack.c.bf16 %v1534, %v1534
    %v1537 = vld [vmem:[#allocation7] sm:$0xff]
    %v1538 = vld [vmem:[#allocation7 + $0x8] sm:$0xff]
    %v1539 = vld [vmem:[#allocation7 + $0x10] sm:$0xff]
    %v1540 = vld [vmem:[#allocation7 + $0x18] sm:$0xff]
    %v1541 = vld [vmem:[#allocation7 + $0x20] sm:$0xff]
    %v1542 = vld [vmem:[#allocation7 + $0x28] sm:$0xff]
    %v1543 = vld [vmem:[#allocation7 + $0x30] sm:$0xff]
    %v1544 = vld [vmem:[#allocation7 + $0x38] sm:$0xff]
    %v1545 = vld [vmem:[#allocation7 + $0x40] sm:$0xff]
    %v1546 = vld [vmem:[#allocation7 + $0x48] sm:$0xff]
    %v1547 = vld [vmem:[#allocation7 + $0x50] sm:$0xff]
    %v1548 = vld [vmem:[#allocation7 + $0x58] sm:$0xff]
    %v1549 = vld [vmem:[#allocation7 + $0x60] sm:$0xff]
    %v1550 = vld [vmem:[#allocation7 + $0x68] sm:$0xff]
    %v1551 = vld [vmem:[#allocation7 + $0x70] sm:$0xff]
    %v1552 = vld [vmem:[#allocation7 + $0x78] sm:$0xff]
    %v1553 = vld [vmem:[#allocation7 + $0x80] sm:$0xff]
    %v1554 = vld [vmem:[#allocation7 + $0x88] sm:$0xff]
    %v1555 = vld [vmem:[#allocation7 + $0x90] sm:$0xff]
    %v1556 = vld [vmem:[#allocation7 + $0x98] sm:$0xff]
    %v1557 = vld [vmem:[#allocation7 + $0xa0] sm:$0xff]
    %v1558 = vld [vmem:[#allocation7 + $0xa8] sm:$0xff]
    %v1559 = vld [vmem:[#allocation7 + $0xb0] sm:$0xff]
    %v1560 = vld [vmem:[#allocation7 + $0xb8] sm:$0xff]
    %v1561 = vld [vmem:[#allocation7 + $0xc0] sm:$0xff]
    %v1562 = vld [vmem:[#allocation7 + $0xc8] sm:$0xff]
    %v1563 = vld [vmem:[#allocation7 + $0xd0] sm:$0xff]
    %v1564 = vld [vmem:[#allocation7 + $0xd8] sm:$0xff]
    %v1565 = vld [vmem:[#allocation7 + $0xe0] sm:$0xff]
    %v1566 = vld [vmem:[#allocation7 + $0xe8] sm:$0xff]
    %v1567 = vld [vmem:[#allocation7 + $0xf0] sm:$0xff]
    %v1568 = vld [vmem:[#allocation7 + $0xf8] sm:$0xff]
    %v1569 = vld [vmem:[#allocation7 + $0x100] sm:$0xff]
    %v1570 = vld [vmem:[#allocation7 + $0x108] sm:$0xff]
    %v1571 = vld [vmem:[#allocation7 + $0x110] sm:$0xff]
    %v1572 = vld [vmem:[#allocation7 + $0x118] sm:$0xff]
    %v1573 = vld [vmem:[#allocation7 + $0x120] sm:$0xff]
    %v1574 = vld [vmem:[#allocation7 + $0x128] sm:$0xff]
    %v1575 = vld [vmem:[#allocation7 + $0x130] sm:$0xff]
    %v1576 = vld [vmem:[#allocation7 + $0x138] sm:$0xff]
    %v1577 = vld [vmem:[#allocation7 + $0x140] sm:$0xff]
    %v1578 = vld [vmem:[#allocation7 + $0x148] sm:$0xff]
    %v1579 = vld [vmem:[#allocation7 + $0x150] sm:$0xff]
    %v1580 = vld [vmem:[#allocation7 + $0x158] sm:$0xff]
    %v1581 = vld [vmem:[#allocation7 + $0x160] sm:$0xff]
    %v1582 = vld [vmem:[#allocation7 + $0x168] sm:$0xff]
    %v1583 = vld [vmem:[#allocation7 + $0x170] sm:$0xff]
    %v1584 = vld [vmem:[#allocation7 + $0x178] sm:$0xff]
    %v1585 = vld [vmem:[#allocation7 + $0x180] sm:$0xff]
    %v1586 = vld [vmem:[#allocation7 + $0x188] sm:$0xff]
    %v1587 = vld [vmem:[#allocation7 + $0x190] sm:$0xff]
    %v1588 = vld [vmem:[#allocation7 + $0x198] sm:$0xff]
    %v1589 = vld [vmem:[#allocation7 + $0x1a0] sm:$0xff]
    %v1590 = vld [vmem:[#allocation7 + $0x1a8] sm:$0xff]
    %v1591 = vld [vmem:[#allocation7 + $0x1b0] sm:$0xff]
    %v1592 = vld [vmem:[#allocation7 + $0x1b8] sm:$0xff]
    %v1593 = vld [vmem:[#allocation7 + $0x1c0] sm:$0xff]
    %v1594 = vld [vmem:[#allocation7 + $0x1c8] sm:$0xff]
    %v1595 = vld [vmem:[#allocation7 + $0x1d0] sm:$0xff]
    %v1596 = vld [vmem:[#allocation7 + $0x1d8] sm:$0xff]
    %v1597 = vld [vmem:[#allocation7 + $0x1e0] sm:$0xff]
    %v1598 = vld [vmem:[#allocation7 + $0x1e8] sm:$0xff]
    %v1599 = vld [vmem:[#allocation7 + $0x1f0] sm:$0xff]
    %v1600 = vld [vmem:[#allocation7 + $0x1f8] sm:$0xff]
    %v1601 = vld [vmem:[#allocation7 + $0x200] sm:$0xff]
    %v1602 = vld [vmem:[#allocation7 + $0x208] sm:$0xff]
    %v1603 = vld [vmem:[#allocation7 + $0x210] sm:$0xff]
    %v1604 = vld [vmem:[#allocation7 + $0x218] sm:$0xff]
    %v1605 = vld [vmem:[#allocation7 + $0x220] sm:$0xff]
    %v1606 = vld [vmem:[#allocation7 + $0x228] sm:$0xff]
    %v1607 = vld [vmem:[#allocation7 + $0x230] sm:$0xff]
    %v1608 = vld [vmem:[#allocation7 + $0x238] sm:$0xff]
    %v1609 = vld [vmem:[#allocation7 + $0x240] sm:$0xff]
    %v1610 = vld [vmem:[#allocation7 + $0x248] sm:$0xff]
    %v1611 = vld [vmem:[#allocation7 + $0x250] sm:$0xff]
    %v1612 = vld [vmem:[#allocation7 + $0x258] sm:$0xff]
    %v1613 = vld [vmem:[#allocation7 + $0x260] sm:$0xff]
    %v1614 = vld [vmem:[#allocation7 + $0x268] sm:$0xff]
    %v1615 = vld [vmem:[#allocation7 + $0x270] sm:$0xff]
    %v1616 = vld [vmem:[#allocation7 + $0x278] sm:$0xff]
    %v1617 = vld [vmem:[#allocation7 + $0x280] sm:$0xff]
    %v1618 = vld [vmem:[#allocation7 + $0x288] sm:$0xff]
    %v1619 = vld [vmem:[#allocation7 + $0x290] sm:$0xff]
    %v1620 = vld [vmem:[#allocation7 + $0x298] sm:$0xff]
    %v1621 = vld [vmem:[#allocation7 + $0x2a0] sm:$0xff]
    %v1622 = vld [vmem:[#allocation7 + $0x2a8] sm:$0xff]
    %v1623 = vld [vmem:[#allocation7 + $0x2b0] sm:$0xff]
    %v1624 = vld [vmem:[#allocation7 + $0x2b8] sm:$0xff]
    %v1625 = vld [vmem:[#allocation7 + $0x2c0] sm:$0xff]
    %v1626 = vld [vmem:[#allocation7 + $0x2c8] sm:$0xff]
    %v1627 = vld [vmem:[#allocation7 + $0x2d0] sm:$0xff]
    %v1628 = vld [vmem:[#allocation7 + $0x2d8] sm:$0xff]
    %v1629 = vld [vmem:[#allocation7 + $0x2e0] sm:$0xff]
    %v1630 = vld [vmem:[#allocation7 + $0x2e8] sm:$0xff]
    %v1631 = vld [vmem:[#allocation7 + $0x2f0] sm:$0xff]
    %v1632 = vld [vmem:[#allocation7 + $0x2f8] sm:$0xff]
    %v1633 = vld [vmem:[%s13] sm:$0x3f]
    %v1635 = vlaneseq
    %v1636 = vshrl.u32 %v1635, 7
    %v1637 = vsub.s32 0, %v1636
    %v1638 = vrot.slane %v1633, %v1637
    %v1639 = vlaneseq
    %v1640 = vshrl.u32 %v1639, 7
    %v1641 = vsub.s32 1, %v1640
    %v1642 = vrot.slane %v1633, %v1641
    %v1643 = vlaneseq
    %v1644 = vshrl.u32 %v1643, 7
    %v1645 = vsub.s32 2, %v1644
    %v1646 = vrot.slane %v1633, %v1645
    %v1647 = vlaneseq
    %v1648 = vshrl.u32 %v1647, 7
    %v1649 = vsub.s32 3, %v1648
    %v1650 = vrot.slane %v1633, %v1649
    %v1651 = vlaneseq
    %v1652 = vshrl.u32 %v1651, 7
    %v1653 = vsub.s32 4, %v1652
    %v1654 = vrot.slane %v1633, %v1653
    %v1655 = vlaneseq
    %v1656 = vshrl.u32 %v1655, 7
    %v1657 = vsub.s32 5, %v1656
    %v1658 = vrot.slane %v1633, %v1657
    %v1761 = vunpack.c.l.b16 %v1537
    %v1762 = vunpack.c.h.b16 %v1537
    %v1763 = vunpack.c.l.b16 %v1538
    %v1764 = vunpack.c.h.b16 %v1538
    %v1765 = vunpack.c.l.b16 %v1539
    %v1766 = vunpack.c.h.b16 %v1539
    %v1767 = vunpack.c.l.b16 %v1540
    %v1768 = vunpack.c.h.b16 %v1540
    %v1769 = vunpack.c.l.b16 %v1541
    %v1770 = vunpack.c.h.b16 %v1541
    %v1771 = vunpack.c.l.b16 %v1542
    %v1772 = vunpack.c.h.b16 %v1542
    %v1773 = vunpack.c.l.b16 %v1543
    %v1774 = vunpack.c.h.b16 %v1543
    %v1775 = vunpack.c.l.b16 %v1544
    %v1776 = vunpack.c.h.b16 %v1544
    %v1777 = vunpack.c.l.b16 %v1545
    %v1778 = vunpack.c.h.b16 %v1545
    %v1779 = vunpack.c.l.b16 %v1546
    %v1780 = vunpack.c.h.b16 %v1546
    %v1781 = vunpack.c.l.b16 %v1547
    %v1782 = vunpack.c.h.b16 %v1547
    %v1783 = vunpack.c.l.b16 %v1548
    %v1784 = vunpack.c.h.b16 %v1548
    %v1785 = vunpack.c.l.b16 %v1549
    %v1786 = vunpack.c.h.b16 %v1549
    %v1787 = vunpack.c.l.b16 %v1550
    %v1788 = vunpack.c.h.b16 %v1550
    %v1789 = vunpack.c.l.b16 %v1551
    %v1790 = vunpack.c.h.b16 %v1551
    %v1791 = vunpack.c.l.b16 %v1552
    %v1792 = vunpack.c.h.b16 %v1552
    %v1793 = vunpack.c.l.b16 %v1553
    %v1794 = vunpack.c.h.b16 %v1553
    %v1795 = vunpack.c.l.b16 %v1554
    %v1796 = vunpack.c.h.b16 %v1554
    %v1797 = vunpack.c.l.b16 %v1555
    %v1798 = vunpack.c.h.b16 %v1555
    %v1799 = vunpack.c.l.b16 %v1556
    %v1800 = vunpack.c.h.b16 %v1556
    %v1801 = vunpack.c.l.b16 %v1557
    %v1802 = vunpack.c.h.b16 %v1557
    %v1803 = vunpack.c.l.b16 %v1558
    %v1804 = vunpack.c.h.b16 %v1558
    %v1805 = vunpack.c.l.b16 %v1559
    %v1806 = vunpack.c.h.b16 %v1559
    %v1807 = vunpack.c.l.b16 %v1560
    %v1808 = vunpack.c.h.b16 %v1560
    %v1809 = vunpack.c.l.b16 %v1561
    %v1810 = vunpack.c.h.b16 %v1561
    %v1811 = vunpack.c.l.b16 %v1562
    %v1812 = vunpack.c.h.b16 %v1562
    %v1813 = vunpack.c.l.b16 %v1563
    %v1814 = vunpack.c.h.b16 %v1563
    %v1815 = vunpack.c.l.b16 %v1564
    %v1816 = vunpack.c.h.b16 %v1564
    %v1817 = vunpack.c.l.b16 %v1565
    %v1818 = vunpack.c.h.b16 %v1565
    %v1819 = vunpack.c.l.b16 %v1566
    %v1820 = vunpack.c.h.b16 %v1566
    %v1821 = vunpack.c.l.b16 %v1567
    %v1822 = vunpack.c.h.b16 %v1567
    %v1823 = vunpack.c.l.b16 %v1568
    %v1824 = vunpack.c.h.b16 %v1568
    %v1825 = vunpack.c.l.b16 %v1569
    %v1826 = vunpack.c.h.b16 %v1569
    %v1827 = vunpack.c.l.b16 %v1570
    %v1828 = vunpack.c.h.b16 %v1570
    %v1829 = vunpack.c.l.b16 %v1571
    %v1830 = vunpack.c.h.b16 %v1571
    %v1831 = vunpack.c.l.b16 %v1572
    %v1832 = vunpack.c.h.b16 %v1572
    %v1833 = vunpack.c.l.b16 %v1573
    %v1834 = vunpack.c.h.b16 %v1573
    %v1835 = vunpack.c.l.b16 %v1574
    %v1836 = vunpack.c.h.b16 %v1574
    %v1837 = vunpack.c.l.b16 %v1575
    %v1838 = vunpack.c.h.b16 %v1575
    %v1839 = vunpack.c.l.b16 %v1576
    %v1840 = vunpack.c.h.b16 %v1576
    %v1841 = vunpack.c.l.b16 %v1577
    %v1842 = vunpack.c.h.b16 %v1577
    %v1843 = vunpack.c.l.b16 %v1578
    %v1844 = vunpack.c.h.b16 %v1578
    %v1845 = vunpack.c.l.b16 %v1579
    %v1846 = vunpack.c.h.b16 %v1579
    %v1847 = vunpack.c.l.b16 %v1580
    %v1848 = vunpack.c.h.b16 %v1580
    %v1849 = vunpack.c.l.b16 %v1581
    %v1850 = vunpack.c.h.b16 %v1581
    %v1851 = vunpack.c.l.b16 %v1582
    %v1852 = vunpack.c.h.b16 %v1582
    %v1853 = vunpack.c.l.b16 %v1583
    %v1854 = vunpack.c.h.b16 %v1583
    %v1855 = vunpack.c.l.b16 %v1584
    %v1856 = vunpack.c.h.b16 %v1584
    %v1857 = vunpack.c.l.b16 %v1585
    %v1858 = vunpack.c.h.b16 %v1585
    %v1859 = vunpack.c.l.b16 %v1586
    %v1860 = vunpack.c.h.b16 %v1586
    %v1861 = vunpack.c.l.b16 %v1587
    %v1862 = vunpack.c.h.b16 %v1587
    %v1863 = vunpack.c.l.b16 %v1588
    %v1864 = vunpack.c.h.b16 %v1588
    %v1865 = vunpack.c.l.b16 %v1589
    %v1866 = vunpack.c.h.b16 %v1589
    %v1867 = vunpack.c.l.b16 %v1590
    %v1868 = vunpack.c.h.b16 %v1590
    %v1869 = vunpack.c.l.b16 %v1591
    %v1870 = vunpack.c.h.b16 %v1591
    %v1871 = vunpack.c.l.b16 %v1592
    %v1872 = vunpack.c.h.b16 %v1592
    %v1873 = vunpack.c.l.b16 %v1593
    %v1874 = vunpack.c.h.b16 %v1593
    %v1875 = vunpack.c.l.b16 %v1594
    %v1876 = vunpack.c.h.b16 %v1594
    %v1877 = vunpack.c.l.b16 %v1595
    %v1878 = vunpack.c.h.b16 %v1595
    %v1879 = vunpack.c.l.b16 %v1596
    %v1880 = vunpack.c.h.b16 %v1596
    %v1881 = vunpack.c.l.b16 %v1597
    %v1882 = vunpack.c.h.b16 %v1597
    %v1883 = vunpack.c.l.b16 %v1598
    %v1884 = vunpack.c.h.b16 %v1598
    %v1885 = vunpack.c.l.b16 %v1599
    %v1886 = vunpack.c.h.b16 %v1599
    %v1887 = vunpack.c.l.b16 %v1600
    %v1888 = vunpack.c.h.b16 %v1600
    %v1889 = vunpack.c.l.b16 %v1601
    %v1890 = vunpack.c.h.b16 %v1601
    %v1891 = vunpack.c.l.b16 %v1602
    %v1892 = vunpack.c.h.b16 %v1602
    %v1893 = vunpack.c.l.b16 %v1603
    %v1894 = vunpack.c.h.b16 %v1603
    %v1895 = vunpack.c.l.b16 %v1604
    %v1896 = vunpack.c.h.b16 %v1604
    %v1897 = vunpack.c.l.b16 %v1605
    %v1898 = vunpack.c.h.b16 %v1605
    %v1899 = vunpack.c.l.b16 %v1606
    %v1900 = vunpack.c.h.b16 %v1606
    %v1901 = vunpack.c.l.b16 %v1607
    %v1902 = vunpack.c.h.b16 %v1607
    %v1903 = vunpack.c.l.b16 %v1608
    %v1904 = vunpack.c.h.b16 %v1608
    %v1905 = vunpack.c.l.b16 %v1609
    %v1906 = vunpack.c.h.b16 %v1609
    %v1907 = vunpack.c.l.b16 %v1610
    %v1908 = vunpack.c.h.b16 %v1610
    %v1909 = vunpack.c.l.b16 %v1611
    %v1910 = vunpack.c.h.b16 %v1611
    %v1911 = vunpack.c.l.b16 %v1612
    %v1912 = vunpack.c.h.b16 %v1612
    %v1913 = vunpack.c.l.b16 %v1613
    %v1914 = vunpack.c.h.b16 %v1613
    %v1915 = vunpack.c.l.b16 %v1614
    %v1916 = vunpack.c.h.b16 %v1614
    %v1917 = vunpack.c.l.b16 %v1615
    %v1918 = vunpack.c.h.b16 %v1615
    %v1919 = vunpack.c.l.b16 %v1616
    %v1920 = vunpack.c.h.b16 %v1616
    %v1921 = vunpack.c.l.b16 %v1617
    %v1922 = vunpack.c.h.b16 %v1617
    %v1923 = vunpack.c.l.b16 %v1618
    %v1924 = vunpack.c.h.b16 %v1618
    %v1925 = vunpack.c.l.b16 %v1619
    %v1926 = vunpack.c.h.b16 %v1619
    %v1927 = vunpack.c.l.b16 %v1620
    %v1928 = vunpack.c.h.b16 %v1620
    %v1929 = vunpack.c.l.b16 %v1621
    %v1930 = vunpack.c.h.b16 %v1621
    %v1931 = vunpack.c.l.b16 %v1622
    %v1932 = vunpack.c.h.b16 %v1622
    %v1933 = vunpack.c.l.b16 %v1623
    %v1934 = vunpack.c.h.b16 %v1623
    %v1935 = vunpack.c.l.b16 %v1624
    %v1936 = vunpack.c.h.b16 %v1624
    %v1937 = vunpack.c.l.b16 %v1625
    %v1938 = vunpack.c.h.b16 %v1625
    %v1939 = vunpack.c.l.b16 %v1626
    %v1940 = vunpack.c.h.b16 %v1626
    %v1941 = vunpack.c.l.b16 %v1627
    %v1942 = vunpack.c.h.b16 %v1627
    %v1943 = vunpack.c.l.b16 %v1628
    %v1944 = vunpack.c.h.b16 %v1628
    %v1945 = vunpack.c.l.b16 %v1629
    %v1946 = vunpack.c.h.b16 %v1629
    %v1947 = vunpack.c.l.b16 %v1630
    %v1948 = vunpack.c.h.b16 %v1630
    %v1949 = vunpack.c.l.b16 %v1631
    %v1950 = vunpack.c.h.b16 %v1631
    %v1951 = vunpack.c.l.b16 %v1632
    %v1952 = vunpack.c.h.b16 %v1632
    %v1953 = vpack.c.b16 %v1767, %v1761
    %v1954 = vpack.c.b16 %v1768, %v1762
    %v1955 = vpack.c.b16 %v1769, %v1763
    %v1956 = vpack.c.b16 %v1770, %v1764
    %v1957 = vpack.c.b16 %v1771, %v1765
    %v1958 = vpack.c.b16 %v1772, %v1766
    %v1959 = vpack.c.b16 %v1779, %v1773
    %v1960 = vpack.c.b16 %v1780, %v1774
    %v1961 = vpack.c.b16 %v1781, %v1775
    %v1962 = vpack.c.b16 %v1782, %v1776
    %v1963 = vpack.c.b16 %v1783, %v1777
    %v1964 = vpack.c.b16 %v1784, %v1778
    %v1965 = vpack.c.b16 %v1791, %v1785
    %v1966 = vpack.c.b16 %v1792, %v1786
    %v1967 = vpack.c.b16 %v1793, %v1787
    %v1968 = vpack.c.b16 %v1794, %v1788
    %v1969 = vpack.c.b16 %v1795, %v1789
    %v1970 = vpack.c.b16 %v1796, %v1790
    %v1971 = vpack.c.b16 %v1803, %v1797
    %v1972 = vpack.c.b16 %v1804, %v1798
    %v1973 = vpack.c.b16 %v1805, %v1799
    %v1974 = vpack.c.b16 %v1806, %v1800
    %v1975 = vpack.c.b16 %v1807, %v1801
    %v1976 = vpack.c.b16 %v1808, %v1802
    %v1977 = vpack.c.b16 %v1815, %v1809
    %v1978 = vpack.c.b16 %v1816, %v1810
    %v1979 = vpack.c.b16 %v1817, %v1811
    %v1980 = vpack.c.b16 %v1818, %v1812
    %v1981 = vpack.c.b16 %v1819, %v1813
    %v1982 = vpack.c.b16 %v1820, %v1814
    %v1983 = vpack.c.b16 %v1827, %v1821
    %v1984 = vpack.c.b16 %v1828, %v1822
    %v1985 = vpack.c.b16 %v1829, %v1823
    %v1986 = vpack.c.b16 %v1830, %v1824
    %v1987 = vpack.c.b16 %v1831, %v1825
    %v1988 = vpack.c.b16 %v1832, %v1826
    %v1989 = vpack.c.b16 %v1839, %v1833
    %v1990 = vpack.c.b16 %v1840, %v1834
    %v1991 = vpack.c.b16 %v1841, %v1835
    %v1992 = vpack.c.b16 %v1842, %v1836
    %v1993 = vpack.c.b16 %v1843, %v1837
    %v1994 = vpack.c.b16 %v1844, %v1838
    %v1995 = vpack.c.b16 %v1851, %v1845
    %v1996 = vpack.c.b16 %v1852, %v1846
    %v1997 = vpack.c.b16 %v1853, %v1847
    %v1998 = vpack.c.b16 %v1854, %v1848
    %v1999 = vpack.c.b16 %v1855, %v1849
    %v2000 = vpack.c.b16 %v1856, %v1850
    %v2001 = vpack.c.b16 %v1863, %v1857
    %v2002 = vpack.c.b16 %v1864, %v1858
    %v2003 = vpack.c.b16 %v1865, %v1859
    %v2004 = vpack.c.b16 %v1866, %v1860
    %v2005 = vpack.c.b16 %v1867, %v1861
    %v2006 = vpack.c.b16 %v1868, %v1862
    %v2007 = vpack.c.b16 %v1875, %v1869
    %v2008 = vpack.c.b16 %v1876, %v1870
    %v2009 = vpack.c.b16 %v1877, %v1871
    %v2010 = vpack.c.b16 %v1878, %v1872
    %v2011 = vpack.c.b16 %v1879, %v1873
    %v2012 = vpack.c.b16 %v1880, %v1874
    %v2013 = vpack.c.b16 %v1887, %v1881
    %v2014 = vpack.c.b16 %v1888, %v1882
    %v2015 = vpack.c.b16 %v1889, %v1883
    %v2016 = vpack.c.b16 %v1890, %v1884
    %v2017 = vpack.c.b16 %v1891, %v1885
    %v2018 = vpack.c.b16 %v1892, %v1886
    %v2019 = vpack.c.b16 %v1899, %v1893
    %v2020 = vpack.c.b16 %v1900, %v1894
    %v2021 = vpack.c.b16 %v1901, %v1895
    %v2022 = vpack.c.b16 %v1902, %v1896
    %v2023 = vpack.c.b16 %v1903, %v1897
    %v2024 = vpack.c.b16 %v1904, %v1898
    %v2025 = vpack.c.b16 %v1911, %v1905
    %v2026 = vpack.c.b16 %v1912, %v1906
    %v2027 = vpack.c.b16 %v1913, %v1907
    %v2028 = vpack.c.b16 %v1914, %v1908
    %v2029 = vpack.c.b16 %v1915, %v1909
    %v2030 = vpack.c.b16 %v1916, %v1910
    %v2031 = vpack.c.b16 %v1923, %v1917
    %v2032 = vpack.c.b16 %v1924, %v1918
    %v2033 = vpack.c.b16 %v1925, %v1919
    %v2034 = vpack.c.b16 %v1926, %v1920
    %v2035 = vpack.c.b16 %v1927, %v1921
    %v2036 = vpack.c.b16 %v1928, %v1922
    %v2037 = vpack.c.b16 %v1935, %v1929
    %v2038 = vpack.c.b16 %v1936, %v1930
    %v2039 = vpack.c.b16 %v1937, %v1931
    %v2040 = vpack.c.b16 %v1938, %v1932
    %v2041 = vpack.c.b16 %v1939, %v1933
    %v2042 = vpack.c.b16 %v1940, %v1934
    %v2043 = vpack.c.b16 %v1947, %v1941
    %v2044 = vpack.c.b16 %v1948, %v1942
    %v2045 = vpack.c.b16 %v1949, %v1943
    %v2046 = vpack.c.b16 %v1950, %v1944
    %v2047 = vpack.c.b16 %v1951, %v1945
    %v2048 = vpack.c.b16 %v1952, %v1946
    %2145 = vmatprep.subr.bf16.mxu0 %v1954
    %2146 = vmatpush1.bf16.msra.mxu0 %v1953
    %2147 = vmatprep.subr.bf16.mxu0 %v1960
    %2148 = vmatpush1.bf16.msra.mxu0 %v1959
    %2149 = vmatprep.subr.bf16.mxu0 %v1966
    %2150 = vmatpush1.bf16.msra.mxu0 %v1965
    %2151 = vmatprep.subr.bf16.mxu0 %v1972
    %2152 = vmatpush1.bf16.msra.mxu0 %v1971
    %2153 = vmatprep.subr.bf16.mxu0 %v1978
    %2154 = vmatpush1.bf16.msra.mxu0 %v1977
    %2155 = vmatprep.subr.bf16.mxu0 %v1984
    %2156 = vmatpush1.bf16.msra.mxu0 %v1983
    %2157 = vmatprep.subr.bf16.mxu0 %v1990
    %2158 = vmatpush1.bf16.msra.mxu0 %v1989
    %2159 = vmatprep.subr.bf16.mxu0 %v1996
    %2160 = vmatpush1.bf16.msra.mxu0 %v1995
    %2161 = vmatprep.subr.bf16.mxu0 %v2002
    %2162 = vmatpush1.bf16.msra.mxu0 %v2001
    %2163 = vmatprep.subr.bf16.mxu0 %v2008
    %2164 = vmatpush1.bf16.msra.mxu0 %v2007
    %2165 = vmatprep.subr.bf16.mxu0 %v2014
    %2166 = vmatpush1.bf16.msra.mxu0 %v2013
    %2167 = vmatprep.subr.bf16.mxu0 %v2020
    %2168 = vmatpush1.bf16.msra.mxu0 %v2019
    %2169 = vmatprep.subr.bf16.mxu0 %v2026
    %2170 = vmatpush1.bf16.msra.mxu0 %v2025
    %2171 = vmatprep.subr.bf16.mxu0 %v2032
    %2172 = vmatpush1.bf16.msra.mxu0 %v2031
    %2173 = vmatprep.subr.bf16.mxu0 %v2038
    %2174 = vmatpush1.bf16.msra.mxu0 %v2037
    %2175 = vmatprep.subr.bf16.mxu0 %v2044
    %2176 = vmatpush1.bf16.msra.mxu0 %v2043
    %2177 = vmatprep.mubr.bf16.mxu0 %v1536
    %2178 = vmatmul.mubr.bf16.gmra.mrb[0].mxu0 %v1535
    %v2179 = vpop.f32.mrb[0].mxu0
    %v2180 = vadd.f32 %v1638, %v2179
    %v2181 = vpop.f32.mrb[0].mxu0
    %v2182 = vadd.f32 %v1642, %v2181
    %v2183 = vpop.f32.mrb[0].mxu0
    %v2184 = vpop.f32.mrb[0].mxu0
    %2185 = vdwg.mxu0
    %2186 = vmatprep.subr.bf16.mxu0 %v1956
    %2187 = vmatpush1.bf16.msra.mxu0 %v1955
    %2188 = vmatprep.subr.bf16.mxu0 %v1962
    %2189 = vmatpush1.bf16.msra.mxu0 %v1961
    %2190 = vmatprep.subr.bf16.mxu0 %v1968
    %2191 = vmatpush1.bf16.msra.mxu0 %v1967
    %2192 = vmatprep.subr.bf16.mxu0 %v1974
    %2193 = vmatpush1.bf16.msra.mxu0 %v1973
    %2194 = vmatprep.subr.bf16.mxu0 %v1980
    %2195 = vmatpush1.bf16.msra.mxu0 %v1979
    %2196 = vmatprep.subr.bf16.mxu0 %v1986
    %2197 = vmatpush1.bf16.msra.mxu0 %v1985
    %2198 = vmatprep.subr.bf16.mxu0 %v1992
    %2199 = vmatpush1.bf16.msra.mxu0 %v1991
    %2200 = vmatprep.subr.bf16.mxu0 %v1998
    %2201 = vmatpush1.bf16.msra.mxu0 %v1997
    %2202 = vmatprep.subr.bf16.mxu0 %v2004
    %2203 = vmatpush1.bf16.msra.mxu0 %v2003
    %2204 = vmatprep.subr.bf16.mxu0 %v2010
    %2205 = vmatpush1.bf16.msra.mxu0 %v2009
    %2206 = vmatprep.subr.bf16.mxu0 %v2016
    %2207 = vmatpush1.bf16.msra.mxu0 %v2015
    %2208 = vmatprep.subr.bf16.mxu0 %v2022
    %2209 = vmatpush1.bf16.msra.mxu0 %v2021
    %2210 = vmatprep.subr.bf16.mxu0 %v2028
    %2211 = vmatpush1.bf16.msra.mxu0 %v2027
    %2212 = vmatprep.subr.bf16.mxu0 %v2034
    %2213 = vmatpush1.bf16.msra.mxu0 %v2033
    %2214 = vmatprep.subr.bf16.mxu0 %v2040
    %2215 = vmatpush1.bf16.msra.mxu0 %v2039
    %2216 = vmatprep.subr.bf16.mxu0 %v2046
    %2217 = vmatpush1.bf16.msra.mxu0 %v2045
    %2218 = vmatprep.mubr.bf16.mxu0 %v1536
    %2219 = vmatmul.mubr.bf16.gmra.mrb[0].mxu0 %v1535
    %v2220 = vpop.f32.mrb[0].mxu0
    %v2221 = vadd.f32 %v1646, %v2220
    %v2222 = vpop.f32.mrb[0].mxu0
    %v2223 = vadd.f32 %v1650, %v2222
    %v2224 = vpop.f32.mrb[0].mxu0
    %v2225 = vpop.f32.mrb[0].mxu0
    %2226 = vdwg.mxu0
    %2227 = vmatprep.subr.bf16.mxu0 %v1958
    %2228 = vmatpush1.bf16.msra.mxu0 %v1957
    %2229 = vmatprep.subr.bf16.mxu0 %v1964
    %2230 = vmatpush1.bf16.msra.mxu0 %v1963
    %2231 = vmatprep.subr.bf16.mxu0 %v1970
    %2232 = vmatpush1.bf16.msra.mxu0 %v1969
    %2233 = vmatprep.subr.bf16.mxu0 %v1976
    %2234 = vmatpush1.bf16.msra.mxu0 %v1975
    %2235 = vmatprep.subr.bf16.mxu0 %v1982
    %2236 = vmatpush1.bf16.msra.mxu0 %v1981
    %2237 = vmatprep.subr.bf16.mxu0 %v1988
    %2238 = vmatpush1.bf16.msra.mxu0 %v1987
    %2239 = vmatprep.subr.bf16.mxu0 %v1994
    %2240 = vmatpush1.bf16.msra.mxu0 %v1993
    %2241 = vmatprep.subr.bf16.mxu0 %v2000
    %2242 = vmatpush1.bf16.msra.mxu0 %v1999
    %2243 = vmatprep.subr.bf16.mxu0 %v2006
    %2244 = vmatpush1.bf16.msra.mxu0 %v2005
    %2245 = vmatprep.subr.bf16.mxu0 %v2012
    %2246 = vmatpush1.bf16.msra.mxu0 %v2011
    %2247 = vmatprep.subr.bf16.mxu0 %v2018
    %2248 = vmatpush1.bf16.msra.mxu0 %v2017
    %2249 = vmatprep.subr.bf16.mxu0 %v2024
    %2250 = vmatpush1.bf16.msra.mxu0 %v2023
    %2251 = vmatprep.subr.bf16.mxu0 %v2030
    %2252 = vmatpush1.bf16.msra.mxu0 %v2029
    %2253 = vmatprep.subr.bf16.mxu0 %v2036
    %2254 = vmatpush1.bf16.msra.mxu0 %v2035
    %2255 = vmatprep.subr.bf16.mxu0 %v2042
    %2256 = vmatpush1.bf16.msra.mxu0 %v2041
    %2257 = vmatprep.subr.bf16.mxu0 %v2048
    %2258 = vmatpush1.bf16.msra.mxu0 %v2047
    %2259 = vmatprep.mubr.bf16.mxu0 %v1536
    %2260 = vmatmul.mubr.bf16.gmra.mrb[0].mxu0 %v1535
    %v2261 = vpop.f32.mrb[0].mxu0
    %v2262 = vadd.f32 %v1654, %v2261
    %v2263 = vpop.f32.mrb[0].mxu0
    %v2264 = vadd.f32 %v1658, %v2263
    %v2265 = vpop.f32.mrb[0].mxu0
    %v2266 = vpop.f32.mrb[0].mxu0
    %2267 = vdwg.mxu0
    %v2268 = vld [vmem:[%s14] sm:$0x3f]
    %v2269 = vld [vmem:[%s15] sm:$0x3f]
    %v2270 = vrot.slane %v2180, 4
    %v2271 = vadd.f32 %v2180, %v2270
    %v2272 = vrot.slane %v2271, 2
    %v2273 = vadd.f32 %v2271, %v2272
    %v2274 = vrot.slane %v2273, 1
    %v2275 = vadd.f32 %v2273, %v2274
    %v2276 = vrot.slane %v2182, 4
    %v2277 = vadd.f32 %v2182, %v2276
    %v2278 = vrot.slane %v2277, 2
    %v2279 = vadd.f32 %v2277, %v2278
    %v2280 = vrot.slane %v2279, 1
    %v2281 = vadd.f32 %v2279, %v2280
    %v2282 = vrot.slane %v2221, 4
    %v2283 = vadd.f32 %v2221, %v2282
    %v2284 = vrot.slane %v2283, 2
    %v2285 = vadd.f32 %v2283, %v2284
    %v2286 = vrot.slane %v2285, 1
    %v2287 = vadd.f32 %v2285, %v2286
    %v2288 = vrot.slane %v2223, 4
    %v2289 = vadd.f32 %v2223, %v2288
    %v2290 = vrot.slane %v2289, 2
    %v2291 = vadd.f32 %v2289, %v2290
    %v2292 = vrot.slane %v2291, 1
    %v2293 = vadd.f32 %v2291, %v2292
    %v2294 = vrot.slane %v2262, 4
    %v2295 = vadd.f32 %v2262, %v2294
    %v2296 = vrot.slane %v2295, 2
    %v2297 = vadd.f32 %v2295, %v2296
    %v2298 = vrot.slane %v2297, 1
    %v2299 = vadd.f32 %v2297, %v2298
    %v2300 = vrot.slane %v2264, 4
    %v2301 = vadd.f32 %v2264, %v2300
    %v2302 = vrot.slane %v2301, 2
    %v2303 = vadd.f32 %v2301, %v2302
    %v2304 = vrot.slane %v2303, 1
    %v2305 = vadd.f32 %v2303, %v2304
    %v2306 = vmul.f32 %v2275, %v186
    %v2307 = vmul.f32 %v2281, %v186
    %v2308 = vmul.f32 %v2287, %v186
    %v2309 = vmul.f32 %v2293, %v186
    %v2310 = vmul.f32 %v2299, %v186
    %v2311 = vmul.f32 %v2305, %v186
    %v2312 = vsub.f32 %v2180, %v2306
    %v2313 = vsub.f32 %v2182, %v2307
    %v2314 = vsub.f32 %v2221, %v2308
    %v2315 = vsub.f32 %v2223, %v2309
    %v2316 = vsub.f32 %v2262, %v2310
    %v2317 = vsub.f32 %v2264, %v2311
    %v2318 = vmul.f32 %v2312, %v2312
    %v2319 = vmul.f32 %v2313, %v2313
    %v2320 = vmul.f32 %v2314, %v2314
    %v2321 = vmul.f32 %v2315, %v2315
    %v2322 = vmul.f32 %v2316, %v2316
    %v2323 = vmul.f32 %v2317, %v2317
    %v2324 = vrot.slane %v2318, 4
    %v2325 = vadd.f32 %v2318, %v2324
    %v2326 = vrot.slane %v2325, 2
    %v2327 = vadd.f32 %v2325, %v2326
    %v2328 = vrot.slane %v2327, 1
    %v2329 = vadd.f32 %v2327, %v2328
    %v2330 = vrot.slane %v2319, 4
    %v2331 = vadd.f32 %v2319, %v2330
    %v2332 = vrot.slane %v2331, 2
    %v2333 = vadd.f32 %v2331, %v2332
    %v2334 = vrot.slane %v2333, 1
    %v2335 = vadd.f32 %v2333, %v2334
    %v2336 = vrot.slane %v2320, 4
    %v2337 = vadd.f32 %v2320, %v2336
    %v2338 = vrot.slane %v2337, 2
    %v2339 = vadd.f32 %v2337, %v2338
    %v2340 = vrot.slane %v2339, 1
    %v2341 = vadd.f32 %v2339, %v2340
    %v2342 = vrot.slane %v2321, 4
    %v2343 = vadd.f32 %v2321, %v2342
    %v2344 = vrot.slane %v2343, 2
    %v2345 = vadd.f32 %v2343, %v2344
    %v2346 = vrot.slane %v2345, 1
    %v2347 = vadd.f32 %v2345, %v2346
    %v2348 = vrot.slane %v2322, 4
    %v2349 = vadd.f32 %v2322, %v2348
    %v2350 = vrot.slane %v2349, 2
    %v2351 = vadd.f32 %v2349, %v2350
    %v2352 = vrot.slane %v2351, 1
    %v2353 = vadd.f32 %v2351, %v2352
    %v2354 = vrot.slane %v2323, 4
    %v2355 = vadd.f32 %v2323, %v2354
    %v2356 = vrot.slane %v2355, 2
    %v2357 = vadd.f32 %v2355, %v2356
    %v2358 = vrot.slane %v2357, 1
    %v2359 = vadd.f32 %v2357, %v2358
    %v2360 = vmul.f32 %v2329, %v186
    %v2361 = vmul.f32 %v2335, %v186
    %v2362 = vmul.f32 %v2341, %v186
    %v2363 = vmul.f32 %v2347, %v186
    %v2364 = vmul.f32 %v2353, %v186
    %v2365 = vmul.f32 %v2359, %v186
    %v2367 = vlaneseq
    %v2368 = vshrl.u32 %v2367, 7
    %v2369 = vsub.s32 0, %v2368
    %v2370 = vrot.slane %v2268, %v2369
    %v2371 = vlaneseq
    %v2372 = vshrl.u32 %v2371, 7
    %v2373 = vsub.s32 1, %v2372
    %v2374 = vrot.slane %v2268, %v2373
    %v2375 = vlaneseq
    %v2376 = vshrl.u32 %v2375, 7
    %v2377 = vsub.s32 2, %v2376
    %v2378 = vrot.slane %v2268, %v2377
    %v2379 = vlaneseq
    %v2380 = vshrl.u32 %v2379, 7
    %v2381 = vsub.s32 3, %v2380
    %v2382 = vrot.slane %v2268, %v2381
    %v2383 = vlaneseq
    %v2384 = vshrl.u32 %v2383, 7
    %v2385 = vsub.s32 4, %v2384
    %v2386 = vrot.slane %v2268, %v2385
    %v2387 = vlaneseq
    %v2388 = vshrl.u32 %v2387, 7
    %v2389 = vsub.s32 5, %v2388
    %v2390 = vrot.slane %v2268, %v2389
    %v2397 = vmul.f32 %v2370, %v2312
    %v2398 = vmul.f32 %v2374, %v2313
    %v2399 = vmul.f32 %v2378, %v2314
    %v2400 = vmul.f32 %v2382, %v2315
    %v2401 = vmul.f32 %v2386, %v2316
    %v2402 = vmul.f32 %v2390, %v2317
    %v2403 = vadd.f32 %v2360, 1e-05
    %v2404 = vadd.f32 %v2361, 1e-05
    %v2405 = vadd.f32 %v2362, 1e-05
    %v2406 = vadd.f32 %v2363, 1e-05
    %v2407 = vadd.f32 %v2364, 1e-05
    %v2408 = vadd.f32 %v2365, 1e-05
    %v2409 = vrsqrt.pop %v2403
    %v2410 = vrsqrt.pop %v2404
    %v2411 = vrsqrt.pop %v2405
    %v2412 = vrsqrt.pop %v2406
    %v2413 = vrsqrt.pop %v2407
    %v2414 = vrsqrt.pop %v2408
    %v2415 = vmul.f32 %v2397, %v2409
    %v2416 = vmul.f32 %v2398, %v2410
    %v2417 = vmul.f32 %v2399, %v2411
    %v2418 = vmul.f32 %v2400, %v2412
    %v2419 = vmul.f32 %v2401, %v2413
    %v2420 = vmul.f32 %v2402, %v2414
    %v2422 = vlaneseq
    %v2423 = vshrl.u32 %v2422, 7
    %v2424 = vsub.s32 0, %v2423
    %v2425 = vrot.slane %v2269, %v2424
    %v2426 = vlaneseq
    %v2427 = vshrl.u32 %v2426, 7
    %v2428 = vsub.s32 1, %v2427
    %v2429 = vrot.slane %v2269, %v2428
    %v2430 = vlaneseq
    %v2431 = vshrl.u32 %v2430, 7
    %v2432 = vsub.s32 2, %v2431
    %v2433 = vrot.slane %v2269, %v2432
    %v2434 = vlaneseq
    %v2435 = vshrl.u32 %v2434, 7
    %v2436 = vsub.s32 3, %v2435
    %v2437 = vrot.slane %v2269, %v2436
    %v2438 = vlaneseq
    %v2439 = vshrl.u32 %v2438, 7
    %v2440 = vsub.s32 4, %v2439
    %v2441 = vrot.slane %v2269, %v2440
    %v2442 = vlaneseq
    %v2443 = vshrl.u32 %v2442, 7
    %v2444 = vsub.s32 5, %v2443
    %v2445 = vrot.slane %v2269, %v2444
    %v2452 = vadd.f32 %v2415, %v2425
    %v2453 = vadd.f32 %v2416, %v2429
    %v2454 = vadd.f32 %v2417, %v2433
    %v2455 = vadd.f32 %v2418, %v2437
    %v2456 = vadd.f32 %v2419, %v2441
    %v2457 = vadd.f32 %v2420, %v2445
    %v2458 = vmax.f32 %v2452, 0.0
    %v2459 = vmax.f32 %v2453, 0.0
    %v2460 = vmax.f32 %v2454, 0.0
    %v2461 = vmax.f32 %v2455, 0.0
    %v2462 = vmax.f32 %v2456, 0.0
    %v2463 = vmax.f32 %v2457, 0.0
    %v2464 = vpack.c.bf16 %v2458, %v2458
    %v2465 = vpack.c.bf16 %v2459, %v2459
    %v2466 = vpack.c.bf16 %v2460, %v2460
    %v2467 = vpack.c.bf16 %v2461, %v2461
    %v2468 = vpack.c.bf16 %v2462, %v2462
    %v2469 = vpack.c.bf16 %v2463, %v2463
    %v2476 = vunpack.c.l.b16 %v2464
    %v2477 = vunpack.c.l.b16 %v2465
    %v2478 = vunpack.c.l.b16 %v2466
    %v2479 = vunpack.c.l.b16 %v2467
    %v2480 = vunpack.c.l.b16 %v2468
    %v2481 = vunpack.c.l.b16 %v2469
    %v2482 = vpack.c.b16 %v2477, %v2476
    %v2483 = vpack.c.b16 %v2479, %v2478
    %v2484 = vpack.c.b16 %v2481, %v2480
    %2488 = vst [vmem:[%s17] sm:$0xff] %v2482
    %2489 = vst [vmem:[%s17 + $0x8] sm:$0xff] %v2483
    %2490 = vst [vmem:[%s17 + $0x10] sm:$0xff] %v2484
    %2491 = vst [vmem:[#allocation8] sm:$0xff] %v1371
    %2492 = vst [vmem:[#allocation9] sm:$0xff] %v1373
    %2493 = vst [vmem:[#allocation11] sm:$0xff] %v1382
    // Predicated region
    $region82: #{vae_forward.4} parent=1 // pred_check
      _
    $region83: #{vae_forward.4} parent=1 // pred_check_branch
      %2495 = sbr.rel (0) target = $region85
    $region84: #{vae_forward.4} parent=1 // pred_region
      _
    $region85: #{vae_forward.4} parent=1 // pred_fallthru
      _
    // Predicated region
    $region86: #{vae_forward.4} parent=1 // pred_check
      _
    $region87: #{vae_forward.4} parent=1 // pred_check_branch
      %2497 = sbr.rel (0) target = $region89
    $region88: #{vae_forward.4} parent=1 // pred_region
      %s2499 = ssub.s32 128, 128
      %2500 = vsyncadd [#allocation4], %s2499
      %s2502 = sshll.u32 [#allocation8], 4
      %s2503 = int_to_ptr.vmem [resolvable:$true] %s2502
      %2505 = dma.vmem_to_hbm [thread:$0]  %s2503, 128, %s18, [#allocation4]
    $region89: #{vae_forward.4} parent=1 // pred_fallthru
      _
    // Predicated region
    $region90: #{vae_forward.4} parent=1 // pred_check
      _
    $region91: #{vae_forward.4} parent=1 // pred_check_branch
      %2507 = sbr.rel (0) target = $region93
    $region92: #{vae_forward.4} parent=1 // pred_region
      %s2509 = ssub.s32 128, 128
      %2510 = vsyncadd [#allocation10], %s2509
      %s2512 = sshll.u32 [#allocation9], 4
      %s2513 = int_to_ptr.vmem [resolvable:$true] %s2512
      %2515 = dma.vmem_to_hbm [thread:$0]  %s2513, 128, %s19, [#allocation10]
    $region93: #{vae_forward.4} parent=1 // pred_fallthru
      _
    // Predicated region
    $region94: #{vae_forward.4} parent=1 // pred_check
      _
    $region95: #{vae_forward.4} parent=1 // pred_check_branch
      %2517 = sbr.rel (0) target = $region97
    $region96: #{vae_forward.4} parent=1 // pred_region
      %s2519 = ssub.s32 128, 128
      %2520 = vsyncadd [#allocation10], %s2519
      %s2522 = sshll.u32 [#allocation11], 4
      %s2523 = int_to_ptr.vmem [resolvable:$true] %s2522
      %2525 = dma.vmem_to_hbm [thread:$0]  %s2523, 128, %s20, [#allocation10]
    $region97: #{vae_forward.4} parent=1 // pred_fallthru
      _
    // Predicated region
    $region98: #{vae_forward.4} parent=1 // pred_check
      _
    $region99: #{vae_forward.4} parent=1 // pred_check_branch
      %2527 = sbr.rel (0) target = $region101
    $region100: #{vae_forward.4} parent=1 // pred_region
      _
    $region101: #{vae_forward.4} parent=1 // pred_fallthru
      _
    // Predicated region
    $region102: #{vae_forward.4} parent=1 // pred_check
      _
    $region103: #{vae_forward.4} parent=1 // pred_check_branch
      %2529 = sbr.rel (0) target = $region105
    $region104: #{vae_forward.4} parent=1 // pred_region
      %2530 = dma.done [#allocation4], 128
    $region105: #{vae_forward.4} parent=1 // pred_fallthru
      _
    // Predicated region
    $region106: #{vae_forward.4} parent=1 // pred_check
      _
    $region107: #{vae_forward.4} parent=1 // pred_check_branch
      %2532 = sbr.rel (0) target = $region109
    $region108: #{vae_forward.4} parent=1 // pred_region
      %2533 = dma.done [#allocation10], 128
    $region109: #{vae_forward.4} parent=1 // pred_fallthru
      _
    // Predicated region
    $region110: #{vae_forward.4} parent=1 // pred_check
      _
    $region111: #{vae_forward.4} parent=1 // pred_check_branch
      %2535 = sbr.rel (0) target = $region113
    $region112: #{vae_forward.4} parent=1 // pred_region
      %2536 = dma.done [#allocation10], 128
    $region113: #{vae_forward.4} parent=1 // pred_fallthru
      _
    %2537 = vsyncpa [#allocation3], 1
    %2538 = vsyncpa [#allocation6], 1
    %2539 = vsyncpa [#allocation4], 1
    %2540 = vsyncpa [#allocation10], 1

</llo_original>
